<compile_context>
chip_gen: v5e
topology: v5e:2x2
jax: 0.10.0
libtpu: 0.0.40
codegen_flags: <defaults>
</compile_context>

<pallas_src>
import jax
import jax.numpy as jnp
from jax.experimental import pallas as pl
from jax.experimental.pallas import tpu as pltpu

NEG_SLOPE = 0.1
BN_EPS = 1e-5
LANE = 128
_REF_PREC = jax.lax.Precision.HIGHEST  # reference only


def _leaky(y):
    return jnp.where(y > 0, y, NEG_SLOPE * y)


def _round_up(v, m):
    return ((v + m - 1) // m) * m


def _largest_divisor_leq(n, cap):
    cap = max(1, min(n, cap))
    for d in range(cap, 0, -1):
        if n % d == 0:
            return d
    return 1


# ----------------------------------------------------------------------------
# Fused BasicBlock kernel (nb images per grid step).
# ----------------------------------------------------------------------------
def _make_block_kernel(*, nb, H, W, Ho, Wo, cin, cout, cin_p, cout_p,
                       stride, apply_bn1, equal, narrow1, narrow2):
    M = nb * Ho * Wo
    f32 = jnp.float32
    bf16 = jnp.bfloat16

    def window(ref, kh, kw, s):
        # (nb, Ho, Wo, C) shifted (and strided) window of a padded buffer.
        if s == 1:
            return ref[:, kh:kh + Ho, kw:kw + Wo, :]
        return ref[:, pl.ds(kh, Ho, stride=s), pl.ds(kw, Wo, stride=s), :]

    def conv3x3(src_ref, col_ref, w_ref, c_real, s, narrow, acc_ref):
        # narrow: build one (M, 128) im2col patch (K = 9*c_real, zero-padded
        #         columns stay zero from the step-0 init) -> single matmul.
        # wide  : 9 tap matmuls accumulated into a VMEM scratch (bounds vreg
        #         pressure with batched M).
        if narrow:
            for k in range(9):
                kh, kw = divmod(k, 3)
                win = window(src_ref, kh, kw, s)                    # f32
                col_ref[:, k * c_real:(k + 1) * c_real] = win.reshape(M, c_real)
            return jnp.dot(col_ref[...].astype(bf16), w_ref[...],
                           preferred_element_type=f32)
        acc_ref[...] = jnp.zeros_like(acc_ref)
        for k in range(9):
            kh, kw = divmod(k, 3)
            win = window(src_ref, kh, kw, s)                        # bf16
            acc_ref[...] += jnp.dot(win.reshape(M, -1), w_ref[k],
                                    preferred_element_type=f32)
        return acc_ref[...]

    def kernel(*refs):
        x_ref, w1_ref, s1_ref, b1_ref, s2_ref, b2_ref, w2_ref = refs[:7]
        pos = 7
        ws_ref = None
        if not equal:
            ws_ref = refs[pos]
            pos += 1
        o_ref = refs[pos]
        pos += 1
        scratch = list(refs[pos:])
        si = 0
        a_pad = scratch[si]; si += 1
        col1 = None
        if narrow1:
            col1 = scratch[si]; si += 1
        o1_pad = scratch[si]; si += 1
        col2 = None
        if narrow2:
            col2 = scratch[si]; si += 1
        acc = None
        if (not narrow1) or (not narrow2):
            acc = scratch[si]; si += 1

        # Zero halos / padding columns once; interiors are rewritten each step.
        @pl.when(pl.program_id(0) == 0)
        def _init():
            for r in scratch:
                r[...] = jnp.zeros_like(r)

        # ---- Stage 1: (optional) folded BN1 + LeakyReLU into the spatially
        #      zero-padded activation buffer.
        xv = x_ref[...].astype(f32)                        # (nb, H, W, cin)
        av = _leaky(xv * s1_ref[0] + b1_ref[0]) if apply_bn1 else xv
        a_pad[:, 1:H + 1, 1:W + 1, :cin] = av.astype(a_pad.dtype)

        # ---- Stage 2: conv1 (3x3, stride) + folded BN2 + LeakyReLU.
        acc1 = conv3x3(a_pad, col1, w1_ref, cin, stride, narrow1, acc)
        out1 = _leaky(acc1 * s2_ref[0] + b2_ref[0])        # (M, cout_p) f32
        if narrow2:
            o1_pad[:, 1:Ho + 1, 1:Wo + 1, :] = (
                out1[:, :cout].reshape(nb, Ho, Wo, cout))
        else:
            o1_pad[:, 1:Ho + 1, 1:Wo + 1, :] = (
                out1.reshape(nb, Ho, Wo, cout_p).astype(o1_pad.dtype))

        # ---- Stage 3: conv2 (3x3, stride 1).
        acc2 = conv3x3(o1_pad, col2, w2_ref, cout, 1, narrow2, acc)

        # ---- Stage 4: shortcut, residual add, lane-dense store.
        if equal:
            o_ref[...] = acc2.reshape(nb, Ho, Wo, cout_p).astype(o_ref.dtype)
            # identity shortcut (raw x) added on the real channels only.
            o_ref[:, :, :, :cout] = (o_ref[:, :, :, :cout] +
                                     x_ref[...].astype(o_ref.dtype))
        else:
            if narrow1:
                # ws is embedded at the center-tap rows of the conv1 im2col K
                # layout, so the shortcut reuses the already-built col1 patch.
                res = jnp.dot(col1[...].astype(bf16), ws_ref[...],
                              preferred_element_type=f32)
            else:
                ctr = window(a_pad, 1, 1, stride).reshape(M, cin_p)
                res = jnp.dot(ctr, ws_ref[...], preferred_element_type=f32)
            y = (acc2 + res).reshape(nb, Ho, Wo, cout_p)
            o_ref[...] = y.astype(o_ref.dtype)

    return kernel


# ----------------------------------------------------------------------------
# BasicBlock forward (Pallas path).  Input/Output are NCHW like PyTorch.
# ----------------------------------------------------------------------------
def basic_block_forward(x_nchw, params, *, stride, activate_before_residual,
                        drop_rate=0.0, block_batch=8, out_dtype=jnp.float32):
    assert drop_rate == 0.0  # TODO(synk): dropout not implemented
    x = jnp.transpose(x_nchw, (0, 2, 3, 1)).astype(jnp.float32)   # NHWC
    N, H, W, cin = x.shape
    cout = params["w1"].shape[-1]
    equal = (cin == cout)
    if equal:
        assert stride == 1, "identity shortcut requires stride == 1"
    # Torch semantics: conv1/shortcut consume relu1(bn1(x)) iff equalInOut or
    # activate_before_residual; otherwise raw x.
    apply_bn1 = equal or activate_before_residual

    Ho = (H - 1) // stride + 1
    Wo = (W - 1) // stride + 1
    narrow1 = 9 * cin <= LANE
    narrow2 = 9 * cout <= LANE
    cin_p = _round_up(cin, LANE)
    cout_p = _round_up(cout, LANE)

    nb = _largest_divisor_leq(N, block_batch)   # images per grid step
    grid = (N // nb,)
    M = nb * Ho * Wo

    bf16 = jnp.bfloat16

    # ---- weights / folded-BN operands (small; padded host-side).
    def pack_w3_narrow(w):          # (3,3,ci,co) -> (LANE, cout_p), K = 9*ci
        ci, co = w.shape[2], w.shape[3]
        wk = w.reshape(9 * ci, co)
        return jnp.pad(wk, ((0, LANE - 9 * ci), (0, cout_p - co))).astype(bf16)

    def pack_w3_wide(w, ci_p):      # (3,3,ci,co) -> (9, ci_p, cout_p)
        ci, co = w.shape[2], w.shape[3]
        wp = jnp.pad(w, ((0, 0), (0, 0), (0, ci_p - ci), (0, cout_p - co)))
        return wp.reshape(9, ci_p, cout_p).astype(bf16)

    def pack_vec(v, cp):            # (1, c) / (c,) -> (1, cp)
        v = v.reshape(1, -1)
        return jnp.pad(v, ((0, 0), (0, cp - v.shape[1]))).astype(jnp.float32)

    w1p = pack_w3_narrow(params["w1"]) if narrow1 else pack_w3_wide(params["w1"], cin_p)
    w2p = pack_w3_narrow(params["w2"]) if narrow2 else pack_w3_wide(params["w2"], cout_p)
    s1p = params["bn1_scale"].reshape(1, cin).astype(jnp.float32)
    b1p = params["bn1_bias"].reshape(1, cin).astype(jnp.float32)
    s2p = pack_vec(params["bn2_scale"], cout_p)
    b2p = pack_vec(params["bn2_bias"], cout_p)

    args = [x, w1p, s1p, b1p, s2p, b2p, w2p]
    in_specs = [
        pl.BlockSpec((nb, H, W, cin), lambda g: (g, 0, 0, 0)),      # unpadded x
        pl.BlockSpec(w1p.shape, lambda g: (0,) * w1p.ndim),
        pl.BlockSpec((1, cin), lambda g: (0, 0)),
        pl.BlockSpec((1, cin), lambda g: (0, 0)),
        pl.BlockSpec((1, cout_p), lambda g: (0, 0)),
        pl.BlockSpec((1, cout_p), lambda g: (0, 0)),
        pl.BlockSpec(w2p.shape, lambda g: (0,) * w2p.ndim),
    ]
    if not equal:
        wsm = params["ws"].reshape(cin, cout)
        if narrow1:
            # Embed the 1x1 shortcut at the center-tap rows (k=4) of the conv1
            # im2col K layout so the kernel can reuse the col1 patch.
            wsp = jnp.zeros((LANE, cout_p), jnp.float32)
            wsp = wsp.at[4 * cin:5 * cin, :cout].set(wsm).astype(bf16)
        else:
            wsp = jnp.pad(wsm, ((0, cin_p - cin), (0, cout_p - cout))).astype(bf16)
        args.append(wsp)
        in_specs.append(pl.BlockSpec(wsp.shape, lambda g: (0, 0)))

    # ---- scratch buffers (narrow-path buffers are tiny -> f32 for robust
    #      unaligned-lane stores; wide-path activation buffers are bf16).
    scratch = []
    scratch.append(pltpu.VMEM(
        (nb, H + 2, W + 2, cin if narrow1 else cin_p),
        jnp.float32 if narrow1 else bf16))                 # padded activation
    if narrow1:
        scratch.append(pltpu.VMEM((M, LANE), jnp.float32))  # im2col(conv1)
    scratch.append(pltpu.VMEM(
        (nb, Ho + 2, Wo + 2, cout if narrow2 else cout_p),
        jnp.float32 if narrow2 else bf16))                 # padded out1
    if narrow2:
        scratch.append(pltpu.VMEM((M, LANE), jnp.float32))  # im2col(conv2)
    if (not narrow1) or (not narrow2):
        scratch.append(pltpu.VMEM((M, cout_p), jnp.float32))  # wide-path acc

    kernel = _make_block_kernel(
        nb=nb, H=H, W=W, Ho=Ho, Wo=Wo, cin=cin, cout=cout,
        cin_p=cin_p, cout_p=cout_p, stride=stride,
        apply_bn1=apply_bn1, equal=equal, narrow1=narrow1, narrow2=narrow2)

    y_p = pl.pallas_call(
        kernel,
        out_shape=jax.ShapeDtypeStruct((N, Ho, Wo, cout_p), out_dtype),
        grid_spec=pltpu.PrefetchScalarGridSpec(
            num_scalar_prefetch=0,
            grid=grid,
            in_specs=in_specs,
            out_specs=pl.BlockSpec((nb, Ho, Wo, cout_p), lambda g: (g, 0, 0, 0)),
            scratch_shapes=scratch,
        ),
        compiler_params=pltpu.CompilerParams(
            dimension_semantics=("parallel",),
            vmem_limit_bytes=48 * 1024 * 1024),
    )(*args)

    # NCHW epilogue to match the PyTorch interface.  When chaining blocks,
    # keep activations NHWC / channel-padded instead and skip this.
    y = y_p[..., :cout]
    return jnp.transpose(y, (0, 3, 1, 2)).astype(jnp.float32)


# ----------------------------------------------------------------------------
# Pure-JAX reference (for correctness check).
# ----------------------------------------------------------------------------
def ref_forward(x_nchw, p, *, stride, activate_before_residual):
    x = jnp.transpose(x_nchw, (0, 2, 3, 1)).astype(jnp.float32)
    cin = x.shape[-1]
    cout = p["w1"].shape[-1]
    equal = cin == cout

    def bnrelu(v, s, b):
        y = v * s.reshape(1, 1, 1, -1) + b.reshape(1, 1, 1, -1)
        return jnp.where(y > 0, y, NEG_SLOPE * y)

    def conv(v, w, s, pad):
        return jax.lax.conv_general_dilated(
            v, w, (s, s), ((pad, pad), (pad, pad)),
            dimension_numbers=("NHWC", "HWIO", "NHWC"), precision=_REF_PREC)

    if (not equal) and activate_before_residual:
        x = bnrelu(x, p["bn1_scale"], p["bn1_bias"])
        out = x
    else:
        out = bnrelu(x, p["bn1_scale"], p["bn1_bias"])
    out = conv(out if equal else x, p["w1"], stride, 1)
    out = bnrelu(out, p["bn2_scale"], p["bn2_bias"])
    out = conv(out, p["w2"], 1, 1)
    res = x if equal else conv(x, p["ws"], stride, 0)
    return jnp.transpose(res + out, (0, 3, 1, 2))


# ----------------------------------------------------------------------------
# Deterministic parameter init (synthetic, not a checkpoint).
# ----------------------------------------------------------------------------
def init_params(key, cin, cout):
    ks = jax.random.split(key, 11)

    def bn_fold(kg, kb, km, kv, c):
        gamma = jax.random.uniform(kg, (c,), jnp.float32, 0.5, 1.5)
        beta = 0.1 * jax.random.normal(kb, (c,), jnp.float32)
        mean = 0.1 * jax.random.normal(km, (c,), jnp.float32)
        var = jax.random.uniform(kv, (c,), jnp.float32, 0.5, 1.5)
        scale = gamma / jnp.sqrt(var + BN_EPS)
        bias = beta - mean * scale
        return scale.reshape(1, c), bias.reshape(1, c)

    s1, b1 = bn_fold(ks[0], ks[1], ks[2], ks[3], cin)
    s2, b2 = bn_fold(ks[4], ks[5], ks[6], ks[7], cout)
    w1 = jax.random.normal(ks[8], (3, 3, cin, cout), jnp.float32) * (2.0 / (9 * cin)) ** 0.5
    w2 = jax.random.normal(ks[9], (3, 3, cout, cout), jnp.float32) * (2.0 / (9 * cout)) ** 0.5
    ws = jax.random.normal(ks[10], (1, 1, cin, cout), jnp.float32) * (2.0 / cin) ** 0.5
    return {"bn1_scale": s1, "bn1_bias": b1, "bn2_scale": s2, "bn2_bias": b2,
            "w1": w1, "w2": w2, "ws": ws}


if __name__ == "__main__":
    key = jax.random.PRNGKey(0)
    ks = jax.random.split(key, 6)
    N, H, W = 2, 16, 16
    TOL = dict(atol=1e-1, rtol=1e-1)   # bf16 MXU inputs vs f32 HIGHEST reference

    # Case 1: 4 -> 8 channels, stride 2, activate_before_residual=True
    x1 = jax.random.normal(ks[0], (N, 4, H, W), jnp.float32)
    p1 = init_params(ks[1], 4, 8)
    y1 = jax.block_until_ready(
        basic_block_forward(x1, p1, stride=2, activate_before_residual=True))
    r1 = ref_forward(x1, p1, stride=2, activate_before_residual=True)
    assert y1.shape == (N, 8, H // 2, W // 2)
    assert jnp.allclose(y1, r1, **TOL), "case1 mismatch vs reference"

    # Case 2: equalInOut (8 -> 8), stride 1, identity shortcut
    x2 = jax.random.normal(ks[2], (N, 8, H, W), jnp.float32)
    p2 = init_params(ks[3], 8, 8)
    y2 = jax.block_until_ready(
        basic_block_forward(x2, p2, stride=1, activate_before_residual=False))
    r2 = ref_forward(x2, p2, stride=1, activate_before_residual=False)
    assert y2.shape == (N, 8, H, W)
    assert jnp.allclose(y2, r2, **TOL), "case2 mismatch vs reference"

    # Case 3: 4 -> 8, stride 2, activate_before_residual=False (raw-x conv1 path)
    x3 = jax.random.normal(ks[4], (N, 4, H, W), jnp.float32)
    p3 = init_params(ks[5], 4, 8)
    y3 = jax.block_until_ready(
        basic_block_forward(x3, p3, stride=2, activate_before_residual=False))
    r3 = ref_forward(x3, p3, stride=2, activate_before_residual=False)
    assert y3.shape == (N, 8, H // 2, W // 2)
    assert jnp.allclose(y3, r3, **TOL), "case3 mismatch vs reference"

    print("KERNEL_OK")
</pallas_src>

<mosaic_0001>
module attributes {stable_mosaic.version = 11 : i64} {
  func.func @kernel(%arg0: i32, %arg1: memref<2x16x16x4xf32, #tpu.memory_space<vmem>>, %arg2: memref<128x128xbf16, #tpu.memory_space<vmem>>, %arg3: memref<1x4xf32, #tpu.memory_space<vmem>>, %arg4: memref<1x4xf32, #tpu.memory_space<vmem>>, %arg5: memref<1x128xf32, #tpu.memory_space<vmem>>, %arg6: memref<1x128xf32, #tpu.memory_space<vmem>>, %arg7: memref<128x128xbf16, #tpu.memory_space<vmem>>, %arg8: memref<128x128xbf16, #tpu.memory_space<vmem>>, %arg9: memref<2x8x8x128xf32, #tpu.memory_space<vmem>>, %arg10: memref<2x18x18x4xf32, #tpu.memory_space<vmem>>, %arg11: memref<128x128xf32, #tpu.memory_space<vmem>>, %arg12: memref<2x10x10x8xf32, #tpu.memory_space<vmem>>, %arg13: memref<128x128xf32, #tpu.memory_space<vmem>>) attributes {dimension_semantics = [#tpu.dimension_semantics<parallel>], iteration_bounds = array<i64: 1>, scalar_prefetch = 0 : i64, scratch_operands = 4 : i64, tpu.core_type = #tpu.core_type<tc>, window_params = [{transform_indices = @transform_0, window_bounds = array<i64: 2, 16, 16, 4>}, {pipeline_mode = #tpu.pipeline_mode<synchronous>, transform_indices = @transform_1, window_bounds = array<i64: 128, 128>}, {pipeline_mode = #tpu.pipeline_mode<synchronous>, transform_indices = @transform_2, window_bounds = array<i64: 1, 4>}, {pipeline_mode = #tpu.pipeline_mode<synchronous>, transform_indices = @transform_3, window_bounds = array<i64: 1, 4>}, {pipeline_mode = #tpu.pipeline_mode<synchronous>, transform_indices = @transform_4, window_bounds = array<i64: 1, 128>}, {pipeline_mode = #tpu.pipeline_mode<synchronous>, transform_indices = @transform_5, window_bounds = array<i64: 1, 128>}, {pipeline_mode = #tpu.pipeline_mode<synchronous>, transform_indices = @transform_6, window_bounds = array<i64: 128, 128>}, {pipeline_mode = #tpu.pipeline_mode<synchronous>, transform_indices = @transform_7, window_bounds = array<i64: 128, 128>}, {transform_indices = @transform_8, window_bounds = array<i64: 2, 8, 8, 128>}]} {
    %c0_i32 = arith.constant 0 : i32
    %0 = arith.cmpi eq, %arg0, %c0_i32 : i32
    %1 = arith.extui %0 : i1 to i32
    %c0_i32_0 = arith.constant 0 : i32
    %2 = arith.cmpi ne, %1, %c0_i32_0 : i32
    scf.if %2 {
      %cst_136 = arith.constant 0.000000e+00 : f32
      %107 = vector.broadcast %cst_136 : f32 to vector<2x18x18x4xf32>
      %c0_137 = arith.constant 0 : index
      %c0_138 = arith.constant 0 : index
      %c0_139 = arith.constant 0 : index
      %c0_140 = arith.constant 0 : index
      %108 = vector.load %arg10[%c0_137, %c0_138, %c0_139, %c0_140] : memref<2x18x18x4xf32, #tpu.memory_space<vmem>>, vector<2x18x18x4xf32>
      tpu.vector_store %arg10[%c0_137, %c0_138, %c0_139, %c0_140], %107 {strides = array<i32>} : memref<2x18x18x4xf32, #tpu.memory_space<vmem>>, vector<2x18x18x4xf32>,
      %cst_141 = arith.constant 0.000000e+00 : f32
      %109 = vector.broadcast %cst_141 : f32 to vector<128x128xf32>
      %c0_142 = arith.constant 0 : index
      %c0_143 = arith.constant 0 : index
      %110 = vector.load %arg11[%c0_142, %c0_143] : memref<128x128xf32, #tpu.memory_space<vmem>>, vector<128x128xf32>
      tpu.vector_store %arg11[%c0_142, %c0_143], %109 {strides = array<i32>} : memref<128x128xf32, #tpu.memory_space<vmem>>, vector<128x128xf32>,
      %cst_144 = arith.constant 0.000000e+00 : f32
      %111 = vector.broadcast %cst_144 : f32 to vector<2x10x10x8xf32>
      %c0_145 = arith.constant 0 : index
      %c0_146 = arith.constant 0 : index
      %c0_147 = arith.constant 0 : index
      %c0_148 = arith.constant 0 : index
      %112 = vector.load %arg12[%c0_145, %c0_146, %c0_147, %c0_148] : memref<2x10x10x8xf32, #tpu.memory_space<vmem>>, vector<2x10x10x8xf32>
      tpu.vector_store %arg12[%c0_145, %c0_146, %c0_147, %c0_148], %111 {strides = array<i32>} : memref<2x10x10x8xf32, #tpu.memory_space<vmem>>, vector<2x10x10x8xf32>,
      %cst_149 = arith.constant 0.000000e+00 : f32
      %113 = vector.broadcast %cst_149 : f32 to vector<128x128xf32>
      %c0_150 = arith.constant 0 : index
      %c0_151 = arith.constant 0 : index
      %114 = vector.load %arg13[%c0_150, %c0_151] : memref<128x128xf32, #tpu.memory_space<vmem>>, vector<128x128xf32>
      tpu.vector_store %arg13[%c0_150, %c0_151], %113 {strides = array<i32>} : memref<128x128xf32, #tpu.memory_space<vmem>>, vector<128x128xf32>,
    } else {
    }
    %c0 = arith.constant 0 : index
    %c0_1 = arith.constant 0 : index
    %c0_2 = arith.constant 0 : index
    %c0_3 = arith.constant 0 : index
    %3 = vector.load %arg1[%c0, %c0_1, %c0_2, %c0_3] : memref<2x16x16x4xf32, #tpu.memory_space<vmem>>, vector<2x16x16x4xf32>
    %c0_4 = arith.constant 0 : index
    %c0_5 = arith.constant 0 : index
    %4 = vector.load %arg3[%c0_4, %c0_5] : memref<1x4xf32, #tpu.memory_space<vmem>>, vector<1x4xf32>
    %5 = vector.shape_cast %4 : vector<1x4xf32> to vector<4xf32>
    %6 = vector.shape_cast %5 : vector<4xf32> to vector<1x1x1x4xf32>
    %7 = vector.broadcast %6 : vector<1x1x1x4xf32> to vector<2x16x16x4xf32>
    %8 = arith.mulf %3, %7 : vector<2x16x16x4xf32>
    %c0_6 = arith.constant 0 : index
    %c0_7 = arith.constant 0 : index
    %9 = vector.load %arg4[%c0_6, %c0_7] : memref<1x4xf32, #tpu.memory_space<vmem>>, vector<1x4xf32>
    %10 = vector.shape_cast %9 : vector<1x4xf32> to vector<4xf32>
    %11 = vector.shape_cast %10 : vector<4xf32> to vector<1x1x1x4xf32>
    %12 = vector.broadcast %11 : vector<1x1x1x4xf32> to vector<2x16x16x4xf32>
    %13 = arith.addf %8, %12 : vector<2x16x16x4xf32>
    %cst = arith.constant 0.000000e+00 : f32
    %14 = vector.broadcast %cst : f32 to vector<2x16x16x4xf32>
    %15 = arith.cmpf ogt, %13, %14 : vector<2x16x16x4xf32>
    %cst_8 = arith.constant 1.000000e-01 : f32
    %16 = vector.broadcast %cst_8 : f32 to vector<2x16x16x4xf32>
    %17 = arith.mulf %16, %13 : vector<2x16x16x4xf32>
    %18 = arith.select %15, %13, %17 : vector<2x16x16x4xi1>, vector<2x16x16x4xf32>
    %c0_9 = arith.constant 0 : index
    %c1 = arith.constant 1 : index
    %c1_10 = arith.constant 1 : index
    %c0_11 = arith.constant 0 : index
    %19 = vector.load %arg10[%c0_9, %c1, %c1_10, %c0_11] : memref<2x18x18x4xf32, #tpu.memory_space<vmem>>, vector<2x16x16x4xf32>
    tpu.vector_store %arg10[%c0_9, %c1, %c1_10, %c0_11], %18 {strides = array<i32>} : memref<2x18x18x4xf32, #tpu.memory_space<vmem>>, vector<2x16x16x4xf32>,
    %c0_12 = arith.constant 0 : index
    %c0_13 = arith.constant 0 : index
    %c0_14 = arith.constant 0 : index
    %c0_15 = arith.constant 0 : index
    %20 = tpu.strided_load %arg10[%c0_12, %c0_13, %c0_14, %c0_15] {strides = array<i32: 1, 2, 2, 1>} : memref<2x18x18x4xf32, #tpu.memory_space<vmem>>, vector<2x8x8x4xf32>
    %21 = vector.shape_cast %20 : vector<2x8x8x4xf32> to vector<128x4xf32>
    %c0_16 = arith.constant 0 : index
    %c0_17 = arith.constant 0 : index
    %22 = vector.load %arg11[%c0_16, %c0_17] : memref<128x128xf32, #tpu.memory_space<vmem>>, vector<128x4xf32>
    tpu.vector_store %arg11[%c0_16, %c0_17], %21 {strides = array<i32>} : memref<128x128xf32, #tpu.memory_space<vmem>>, vector<128x4xf32>,
    %c0_18 = arith.constant 0 : index
    %c0_19 = arith.constant 0 : index
    %c1_20 = arith.constant 1 : index
    %c0_21 = arith.constant 0 : index
    %23 = tpu.strided_load %arg10[%c0_18, %c0_19, %c1_20, %c0_21] {strides = array<i32: 1, 2, 2, 1>} : memref<2x18x18x4xf32, #tpu.memory_space<vmem>>, vector<2x8x8x4xf32>
    %24 = vector.shape_cast %23 : vector<2x8x8x4xf32> to vector<128x4xf32>
    %c0_22 = arith.constant 0 : index
    %c4 = arith.constant 4 : index
    %25 = vector.load %arg11[%c0_22, %c4] : memref<128x128xf32, #tpu.memory_space<vmem>>, vector<128x4xf32>
    tpu.vector_store %arg11[%c0_22, %c4], %24 {strides = array<i32>} : memref<128x128xf32, #tpu.memory_space<vmem>>, vector<128x4xf32>,
    %c0_23 = arith.constant 0 : index
    %c0_24 = arith.constant 0 : index
    %c2 = arith.constant 2 : index
    %c0_25 = arith.constant 0 : index
    %26 = tpu.strided_load %arg10[%c0_23, %c0_24, %c2, %c0_25] {strides = array<i32: 1, 2, 2, 1>} : memref<2x18x18x4xf32, #tpu.memory_space<vmem>>, vector<2x8x8x4xf32>
    %27 = vector.shape_cast %26 : vector<2x8x8x4xf32> to vector<128x4xf32>
    %c0_26 = arith.constant 0 : index
    %c8 = arith.constant 8 : index
    %28 = vector.load %arg11[%c0_26, %c8] : memref<128x128xf32, #tpu.memory_space<vmem>>, vector<128x4xf32>
    tpu.vector_store %arg11[%c0_26, %c8], %27 {strides = array<i32>} : memref<128x128xf32, #tpu.memory_space<vmem>>, vector<128x4xf32>,
    %c0_27 = arith.constant 0 : index
    %c1_28 = arith.constant 1 : index
    %c0_29 = arith.constant 0 : index
    %c0_30 = arith.constant 0 : index
    %29 = tpu.strided_load %arg10[%c0_27, %c1_28, %c0_29, %c0_30] {strides = array<i32: 1, 2, 2, 1>} : memref<2x18x18x4xf32, #tpu.memory_space<vmem>>, vector<2x8x8x4xf32>
    %30 = vector.shape_cast %29 : vector<2x8x8x4xf32> to vector<128x4xf32>
    %c0_31 = arith.constant 0 : index
    %c12 = arith.constant 12 : index
    %31 = vector.load %arg11[%c0_31, %c12] : memref<128x128xf32, #tpu.memory_space<vmem>>, vector<128x4xf32>
    tpu.vector_store %arg11[%c0_31, %c12], %30 {strides = array<i32>} : memref<128x128xf32, #tpu.memory_space<vmem>>, vector<128x4xf32>,
    %c0_32 = arith.constant 0 : index
    %c1_33 = arith.constant 1 : index
    %c1_34 = arith.constant 1 : index
    %c0_35 = arith.constant 0 : index
    %32 = tpu.strided_load %arg10[%c0_32, %c1_33, %c1_34, %c0_35] {strides = array<i32: 1, 2, 2, 1>} : memref<2x18x18x4xf32, #tpu.memory_space<vmem>>, vector<2x8x8x4xf32>
    %33 = vector.shape_cast %32 : vector<2x8x8x4xf32> to vector<128x4xf32>
    %c0_36 = arith.constant 0 : index
    %c16 = arith.constant 16 : index
    %34 = vector.load %arg11[%c0_36, %c16] : memref<128x128xf32, #tpu.memory_space<vmem>>, vector<128x4xf32>
    tpu.vector_store %arg11[%c0_36, %c16], %33 {strides = array<i32>} : memref<128x128xf32, #tpu.memory_space<vmem>>, vector<128x4xf32>,
    %c0_37 = arith.constant 0 : index
    %c1_38 = arith.constant 1 : index
    %c2_39 = arith.constant 2 : index
    %c0_40 = arith.constant 0 : index
    %35 = tpu.strided_load %arg10[%c0_37, %c1_38, %c2_39, %c0_40] {strides = array<i32: 1, 2, 2, 1>} : memref<2x18x18x4xf32, #tpu.memory_space<vmem>>, vector<2x8x8x4xf32>
    %36 = vector.shape_cast %35 : vector<2x8x8x4xf32> to vector<128x4xf32>
    %c0_41 = arith.constant 0 : index
    %c20 = arith.constant 20 : index
    %37 = vector.load %arg11[%c0_41, %c20] : memref<128x128xf32, #tpu.memory_space<vmem>>, vector<128x4xf32>
    tpu.vector_store %arg11[%c0_41, %c20], %36 {strides = array<i32>} : memref<128x128xf32, #tpu.memory_space<vmem>>, vector<128x4xf32>,
    %c0_42 = arith.constant 0 : index
    %c2_43 = arith.constant 2 : index
    %c0_44 = arith.constant 0 : index
    %c0_45 = arith.constant 0 : index
    %38 = tpu.strided_load %arg10[%c0_42, %c2_43, %c0_44, %c0_45] {strides = array<i32: 1, 2, 2, 1>} : memref<2x18x18x4xf32, #tpu.memory_space<vmem>>, vector<2x8x8x4xf32>
    %39 = vector.shape_cast %38 : vector<2x8x8x4xf32> to vector<128x4xf32>
    %c0_46 = arith.constant 0 : index
    %c24 = arith.constant 24 : index
    %40 = vector.load %arg11[%c0_46, %c24] : memref<128x128xf32, #tpu.memory_space<vmem>>, vector<128x4xf32>
    tpu.vector_store %arg11[%c0_46, %c24], %39 {strides = array<i32>} : memref<128x128xf32, #tpu.memory_space<vmem>>, vector<128x4xf32>,
    %c0_47 = arith.constant 0 : index
    %c2_48 = arith.constant 2 : index
    %c1_49 = arith.constant 1 : index
    %c0_50 = arith.constant 0 : index
    %41 = tpu.strided_load %arg10[%c0_47, %c2_48, %c1_49, %c0_50] {strides = array<i32: 1, 2, 2, 1>} : memref<2x18x18x4xf32, #tpu.memory_space<vmem>>, vector<2x8x8x4xf32>
    %42 = vector.shape_cast %41 : vector<2x8x8x4xf32> to vector<128x4xf32>
    %c0_51 = arith.constant 0 : index
    %c28 = arith.constant 28 : index
    %43 = vector.load %arg11[%c0_51, %c28] : memref<128x128xf32, #tpu.memory_space<vmem>>, vector<128x4xf32>
    tpu.vector_store %arg11[%c0_51, %c28], %42 {strides = array<i32>} : memref<128x128xf32, #tpu.memory_space<vmem>>, vector<128x4xf32>,
    %c0_52 = arith.constant 0 : index
    %c2_53 = arith.constant 2 : index
    %c2_54 = arith.constant 2 : index
    %c0_55 = arith.constant 0 : index
    %44 = tpu.strided_load %arg10[%c0_52, %c2_53, %c2_54, %c0_55] {strides = array<i32: 1, 2, 2, 1>} : memref<2x18x18x4xf32, #tpu.memory_space<vmem>>, vector<2x8x8x4xf32>
    %45 = vector.shape_cast %44 : vector<2x8x8x4xf32> to vector<128x4xf32>
    %c0_56 = arith.constant 0 : index
    %c32 = arith.constant 32 : index
    %46 = vector.load %arg11[%c0_56, %c32] : memref<128x128xf32, #tpu.memory_space<vmem>>, vector<128x4xf32>
    tpu.vector_store %arg11[%c0_56, %c32], %45 {strides = array<i32>} : memref<128x128xf32, #tpu.memory_space<vmem>>, vector<128x4xf32>,
    %c0_57 = arith.constant 0 : index
    %c0_58 = arith.constant 0 : index
    %47 = vector.load %arg11[%c0_57, %c0_58] : memref<128x128xf32, #tpu.memory_space<vmem>>, vector<128x128xf32>
    %48 = arith.truncf %47 : vector<128x128xf32> to vector<128x128xbf16>
    %c0_59 = arith.constant 0 : index
    %c0_60 = arith.constant 0 : index
    %49 = vector.load %arg2[%c0_59, %c0_60] : memref<128x128xbf16, #tpu.memory_space<vmem>>, vector<128x128xbf16>
    %cst_61 = arith.constant dense<0.000000e+00> : vector<128x128xf32>
    %50 = tpu.matmul %48, %49, %cst_61 {dimension_numbers = #tpu.dot_dimension_numbers<[1], [0], [0], [1], [0, 0, 1, 1], [], []>} : vector<128x128xbf16>, vector<128x128xbf16>, vector<128x128xf32> -> vector<128x128xf32>
    %c0_62 = arith.constant 0 : index
    %c0_63 = arith.constant 0 : index
    %51 = vector.load %arg5[%c0_62, %c0_63] : memref<1x128xf32, #tpu.memory_space<vmem>>, vector<1x128xf32>
    %52 = vector.shape_cast %51 : vector<1x128xf32> to vector<128xf32>
    %53 = vector.shape_cast %52 : vector<128xf32> to vector<1x128xf32>
    %54 = vector.broadcast %53 : vector<1x128xf32> to vector<128x128xf32>
    %55 = arith.mulf %50, %54 : vector<128x128xf32>
    %c0_64 = arith.constant 0 : index
    %c0_65 = arith.constant 0 : index
    %56 = vector.load %arg6[%c0_64, %c0_65] : memref<1x128xf32, #tpu.memory_space<vmem>>, vector<1x128xf32>
    %57 = vector.shape_cast %56 : vector<1x128xf32> to vector<128xf32>
    %58 = vector.shape_cast %57 : vector<128xf32> to vector<1x128xf32>
    %59 = vector.broadcast %58 : vector<1x128xf32> to vector<128x128xf32>
    %60 = arith.addf %55, %59 : vector<128x128xf32>
    %cst_66 = arith.constant 0.000000e+00 : f32
    %61 = vector.broadcast %cst_66 : f32 to vector<128x128xf32>
    %62 = arith.cmpf ogt, %60, %61 : vector<128x128xf32>
    %cst_67 = arith.constant 1.000000e-01 : f32
    %63 = vector.broadcast %cst_67 : f32 to vector<128x128xf32>
    %64 = arith.mulf %63, %60 : vector<128x128xf32>
    %65 = arith.select %62, %60, %64 : vector<128x128xi1>, vector<128x128xf32>
    %66 = vector.extract_strided_slice %65 {offsets = [0, 0], sizes = [128, 8], strides = [1, 1]} : vector<128x128xf32> to vector<128x8xf32>
    %67 = vector.shape_cast %66 : vector<128x8xf32> to vector<2x8x8x8xf32>
    %c0_68 = arith.constant 0 : index
    %c1_69 = arith.constant 1 : index
    %c1_70 = arith.constant 1 : index
    %c0_71 = arith.constant 0 : index
    %68 = vector.load %arg12[%c0_68, %c1_69, %c1_70, %c0_71] : memref<2x10x10x8xf32, #tpu.memory_space<vmem>>, vector<2x8x8x8xf32>
    tpu.vector_store %arg12[%c0_68, %c1_69, %c1_70, %c0_71], %67 {strides = array<i32>} : memref<2x10x10x8xf32, #tpu.memory_space<vmem>>, vector<2x8x8x8xf32>,
    %c0_72 = arith.constant 0 : index
    %c0_73 = arith.constant 0 : index
    %c0_74 = arith.constant 0 : index
    %c0_75 = arith.constant 0 : index
    %69 = vector.load %arg12[%c0_72, %c0_73, %c0_74, %c0_75] : memref<2x10x10x8xf32, #tpu.memory_space<vmem>>, vector<2x8x8x8xf32>
    %70 = vector.shape_cast %69 : vector<2x8x8x8xf32> to vector<128x8xf32>
    %c0_76 = arith.constant 0 : index
    %c0_77 = arith.constant 0 : index
    %71 = vector.load %arg13[%c0_76, %c0_77] : memref<128x128xf32, #tpu.memory_space<vmem>>, vector<128x8xf32>
    tpu.vector_store %arg13[%c0_76, %c0_77], %70 {strides = array<i32>} : memref<128x128xf32, #tpu.memory_space<vmem>>, vector<128x8xf32>,
    %c0_78 = arith.constant 0 : index
    %c0_79 = arith.constant 0 : index
    %c1_80 = arith.constant 1 : index
    %c0_81 = arith.constant 0 : index
    %72 = vector.load %arg12[%c0_78, %c0_79, %c1_80, %c0_81] : memref<2x10x10x8xf32, #tpu.memory_space<vmem>>, vector<2x8x8x8xf32>
    %73 = vector.shape_cast %72 : vector<2x8x8x8xf32> to vector<128x8xf32>
    %c0_82 = arith.constant 0 : index
    %c8_83 = arith.constant 8 : index
    %74 = vector.load %arg13[%c0_82, %c8_83] : memref<128x128xf32, #tpu.memory_space<vmem>>, vector<128x8xf32>
    tpu.vector_store %arg13[%c0_82, %c8_83], %73 {strides = array<i32>} : memref<128x128xf32, #tpu.memory_space<vmem>>, vector<128x8xf32>,
    %c0_84 = arith.constant 0 : index
    %c0_85 = arith.constant 0 : index
    %c2_86 = arith.constant 2 : index
    %c0_87 = arith.constant 0 : index
    %75 = vector.load %arg12[%c0_84, %c0_85, %c2_86, %c0_87] : memref<2x10x10x8xf32, #tpu.memory_space<vmem>>, vector<2x8x8x8xf32>
    %76 = vector.shape_cast %75 : vector<2x8x8x8xf32> to vector<128x8xf32>
    %c0_88 = arith.constant 0 : index
    %c16_89 = arith.constant 16 : index
    %77 = vector.load %arg13[%c0_88, %c16_89] : memref<128x128xf32, #tpu.memory_space<vmem>>, vector<128x8xf32>
    tpu.vector_store %arg13[%c0_88, %c16_89], %76 {strides = array<i32>} : memref<128x128xf32, #tpu.memory_space<vmem>>, vector<128x8xf32>,
    %c0_90 = arith.constant 0 : index
    %c1_91 = arith.constant 1 : index
    %c0_92 = arith.constant 0 : index
    %c0_93 = arith.constant 0 : index
    %78 = vector.load %arg12[%c0_90, %c1_91, %c0_92, %c0_93] : memref<2x10x10x8xf32, #tpu.memory_space<vmem>>, vector<2x8x8x8xf32>
    %79 = vector.shape_cast %78 : vector<2x8x8x8xf32> to vector<128x8xf32>
    %c0_94 = arith.constant 0 : index
    %c24_95 = arith.constant 24 : index
    %80 = vector.load %arg13[%c0_94, %c24_95] : memref<128x128xf32, #tpu.memory_space<vmem>>, vector<128x8xf32>
    tpu.vector_store %arg13[%c0_94, %c24_95], %79 {strides = array<i32>} : memref<128x128xf32, #tpu.memory_space<vmem>>, vector<128x8xf32>,
    %c0_96 = arith.constant 0 : index
    %c1_97 = arith.constant 1 : index
    %c1_98 = arith.constant 1 : index
    %c0_99 = arith.constant 0 : index
    %81 = vector.load %arg12[%c0_96, %c1_97, %c1_98, %c0_99] : memref<2x10x10x8xf32, #tpu.memory_space<vmem>>, vector<2x8x8x8xf32>
    %82 = vector.shape_cast %81 : vector<2x8x8x8xf32> to vector<128x8xf32>
    %c0_100 = arith.constant 0 : index
    %c32_101 = arith.constant 32 : index
    %83 = vector.load %arg13[%c0_100, %c32_101] : memref<128x128xf32, #tpu.memory_space<vmem>>, vector<128x8xf32>
    tpu.vector_store %arg13[%c0_100, %c32_101], %82 {strides = array<i32>} : memref<128x128xf32, #tpu.memory_space<vmem>>, vector<128x8xf32>,
    %c0_102 = arith.constant 0 : index
    %c1_103 = arith.constant 1 : index
    %c2_104 = arith.constant 2 : index
    %c0_105 = arith.constant 0 : index
    %84 = vector.load %arg12[%c0_102, %c1_103, %c2_104, %c0_105] : memref<2x10x10x8xf32, #tpu.memory_space<vmem>>, vector<2x8x8x8xf32>
    %85 = vector.shape_cast %84 : vector<2x8x8x8xf32> to vector<128x8xf32>
    %c0_106 = arith.constant 0 : index
    %c40 = arith.constant 40 : index
    %86 = vector.load %arg13[%c0_106, %c40] : memref<128x128xf32, #tpu.memory_space<vmem>>, vector<128x8xf32>
    tpu.vector_store %arg13[%c0_106, %c40], %85 {strides = array<i32>} : memref<128x128xf32, #tpu.memory_space<vmem>>, vector<128x8xf32>,
    %c0_107 = arith.constant 0 : index
    %c2_108 = arith.constant 2 : index
    %c0_109 = arith.constant 0 : index
    %c0_110 = arith.constant 0 : index
    %87 = vector.load %arg12[%c0_107, %c2_108, %c0_109, %c0_110] : memref<2x10x10x8xf32, #tpu.memory_space<vmem>>, vector<2x8x8x8xf32>
    %88 = vector.shape_cast %87 : vector<2x8x8x8xf32> to vector<128x8xf32>
    %c0_111 = arith.constant 0 : index
    %c48 = arith.constant 48 : index
    %89 = vector.load %arg13[%c0_111, %c48] : memref<128x128xf32, #tpu.memory_space<vmem>>, vector<128x8xf32>
    tpu.vector_store %arg13[%c0_111, %c48], %88 {strides = array<i32>} : memref<128x128xf32, #tpu.memory_space<vmem>>, vector<128x8xf32>,
    %c0_112 = arith.constant 0 : index
    %c2_113 = arith.constant 2 : index
    %c1_114 = arith.constant 1 : index
    %c0_115 = arith.constant 0 : index
    %90 = vector.load %arg12[%c0_112, %c2_113, %c1_114, %c0_115] : memref<2x10x10x8xf32, #tpu.memory_space<vmem>>, vector<2x8x8x8xf32>
    %91 = vector.shape_cast %90 : vector<2x8x8x8xf32> to vector<128x8xf32>
    %c0_116 = arith.constant 0 : index
    %c56 = arith.constant 56 : index
    %92 = vector.load %arg13[%c0_116, %c56] : memref<128x128xf32, #tpu.memory_space<vmem>>, vector<128x8xf32>
    tpu.vector_store %arg13[%c0_116, %c56], %91 {strides = array<i32>} : memref<128x128xf32, #tpu.memory_space<vmem>>, vector<128x8xf32>,
    %c0_117 = arith.constant 0 : index
    %c2_118 = arith.constant 2 : index
    %c2_119 = arith.constant 2 : index
    %c0_120 = arith.constant 0 : index
    %93 = vector.load %arg12[%c0_117, %c2_118, %c2_119, %c0_120] : memref<2x10x10x8xf32, #tpu.memory_space<vmem>>, vector<2x8x8x8xf32>
    %94 = vector.shape_cast %93 : vector<2x8x8x8xf32> to vector<128x8xf32>
    %c0_121 = arith.constant 0 : index
    %c64 = arith.constant 64 : index
    %95 = vector.load %arg13[%c0_121, %c64] : memref<128x128xf32, #tpu.memory_space<vmem>>, vector<128x8xf32>
    tpu.vector_store %arg13[%c0_121, %c64], %94 {strides = array<i32>} : memref<128x128xf32, #tpu.memory_space<vmem>>, vector<128x8xf32>,
    %c0_122 = arith.constant 0 : index
    %c0_123 = arith.constant 0 : index
    %96 = vector.load %arg13[%c0_122, %c0_123] : memref<128x128xf32, #tpu.memory_space<vmem>>, vector<128x128xf32>
    %97 = arith.truncf %96 : vector<128x128xf32> to vector<128x128xbf16>
    %c0_124 = arith.constant 0 : index
    %c0_125 = arith.constant 0 : index
    %98 = vector.load %arg7[%c0_124, %c0_125] : memref<128x128xbf16, #tpu.memory_space<vmem>>, vector<128x128xbf16>
    %cst_126 = arith.constant dense<0.000000e+00> : vector<128x128xf32>
    %99 = tpu.matmul %97, %98, %cst_126 {dimension_numbers = #tpu.dot_dimension_numbers<[1], [0], [0], [1], [0, 0, 1, 1], [], []>} : vector<128x128xbf16>, vector<128x128xbf16>, vector<128x128xf32> -> vector<128x128xf32>
    %c0_127 = arith.constant 0 : index
    %c0_128 = arith.constant 0 : index
    %100 = vector.load %arg11[%c0_127, %c0_128] : memref<128x128xf32, #tpu.memory_space<vmem>>, vector<128x128xf32>
    %101 = arith.truncf %100 : vector<128x128xf32> to vector<128x128xbf16>
    %c0_129 = arith.constant 0 : index
    %c0_130 = arith.constant 0 : index
    %102 = vector.load %arg8[%c0_129, %c0_130] : memref<128x128xbf16, #tpu.memory_space<vmem>>, vector<128x128xbf16>
    %cst_131 = arith.constant dense<0.000000e+00> : vector<128x128xf32>
    %103 = tpu.matmul %101, %102, %cst_131 {dimension_numbers = #tpu.dot_dimension_numbers<[1], [0], [0], [1], [0, 0, 1, 1], [], []>} : vector<128x128xbf16>, vector<128x128xbf16>, vector<128x128xf32> -> vector<128x128xf32>
    %104 = arith.addf %99, %103 : vector<128x128xf32>
    %105 = vector.shape_cast %104 : vector<128x128xf32> to vector<2x8x8x128xf32>
    %c0_132 = arith.constant 0 : index
    %c0_133 = arith.constant 0 : index
    %c0_134 = arith.constant 0 : index
    %c0_135 = arith.constant 0 : index
    %106 = vector.load %arg9[%c0_132, %c0_133, %c0_134, %c0_135] : memref<2x8x8x128xf32, #tpu.memory_space<vmem>>, vector<2x8x8x128xf32>
    tpu.vector_store %arg9[%c0_132, %c0_133, %c0_134, %c0_135], %105 {strides = array<i32>} : memref<2x8x8x128xf32, #tpu.memory_space<vmem>>, vector<2x8x8x128xf32>,
    return
  }
  func.func @transform_0(%arg0: i32) -> (i32, i32, i32, i32) {
    %c0_i32 = arith.constant 0 : i32
    %c0_i32_0 = arith.constant 0 : i32
    %c0_i32_1 = arith.constant 0 : i32
    %c0_i32_2 = arith.constant 0 : i32
    return %arg0, %c0_i32, %c0_i32_0, %c0_i32_1 : i32, i32, i32, i32
  }
  func.func @transform_1(%arg0: i32) -> (i32, i32) {
    %c0_i32 = arith.constant 0 : i32
    %c0_i32_0 = arith.constant 0 : i32
    %c0_i32_1 = arith.constant 0 : i32
    return %c0_i32, %c0_i32_0 : i32, i32
  }
  func.func @transform_2(%arg0: i32) -> (i32, i32) {
    %c0_i32 = arith.constant 0 : i32
    %c0_i32_0 = arith.constant 0 : i32
    %c0_i32_1 = arith.constant 0 : i32
    return %c0_i32, %c0_i32_0 : i32, i32
  }
  func.func @transform_3(%arg0: i32) -> (i32, i32) {
    %c0_i32 = arith.constant 0 : i32
    %c0_i32_0 = arith.constant 0 : i32
    %c0_i32_1 = arith.constant 0 : i32
    return %c0_i32, %c0_i32_0 : i32, i32
  }
  func.func @transform_4(%arg0: i32) -> (i32, i32) {
    %c0_i32 = arith.constant 0 : i32
    %c0_i32_0 = arith.constant 0 : i32
    %c0_i32_1 = arith.constant 0 : i32
    return %c0_i32, %c0_i32_0 : i32, i32
  }
  func.func @transform_5(%arg0: i32) -> (i32, i32) {
    %c0_i32 = arith.constant 0 : i32
    %c0_i32_0 = arith.constant 0 : i32
    %c0_i32_1 = arith.constant 0 : i32
    return %c0_i32, %c0_i32_0 : i32, i32
  }
  func.func @transform_6(%arg0: i32) -> (i32, i32) {
    %c0_i32 = arith.constant 0 : i32
    %c0_i32_0 = arith.constant 0 : i32
    %c0_i32_1 = arith.constant 0 : i32
    return %c0_i32, %c0_i32_0 : i32, i32
  }
  func.func @transform_7(%arg0: i32) -> (i32, i32) {
    %c0_i32 = arith.constant 0 : i32
    %c0_i32_0 = arith.constant 0 : i32
    %c0_i32_1 = arith.constant 0 : i32
    return %c0_i32, %c0_i32_0 : i32, i32
  }
  func.func @transform_8(%arg0: i32) -> (i32, i32, i32, i32) {
    %c0_i32 = arith.constant 0 : i32
    %c0_i32_0 = arith.constant 0 : i32
    %c0_i32_1 = arith.constant 0 : i32
    %c0_i32_2 = arith.constant 0 : i32
    return %arg0, %c0_i32, %c0_i32_0, %c0_i32_1 : i32, i32, i32, i32
  }
}

</mosaic_0001>

<llo_original>
// kernel: tpu_custom_call.1
$region0: #{tpu_custom_call.1}
  #allocation0 [shape = 'u32[]', space=smem, size = 0x4, offset = 0x4, fixed_abs, tag = 'smem constant byte address 0x4 - core index']
  #allocation1 [shape = 'u32[72,128]{1,0:T(1,128)}', space=vmem, size = 0x9000, scoped, tag = 'internal scratch']
  #allocation2 [shape = 'f32[2,18,18,4]{3,2,1,0:T(8,128)}', space=vmem, size = 0x6c000, scoped, tag = 'scratch operand']
  #allocation3 [shape = 'f32[128,128]{1,0:T(8,128)}', space=vmem, size = 0x10000, scoped, tag = 'scratch operand']
  #allocation4 [shape = 'f32[2,10,10,8]{3,2,1,0:T(8,128)}', space=vmem, size = 0x28000, scoped, tag = 'scratch operand']
  #allocation5 [shape = 'f32[128,128]{1,0:T(8,128)}', space=vmem, size = 0x10000, scoped, tag = 'scratch operand']
  %s0 = inlined_call_operand.vmem [shape: f32[2,16,16,4], index: 0, kind: input, shape index: {}]
  %s1 = inlined_call_operand.vmem [shape: bf16[128,128], index: 1, kind: input, shape index: {}]
  %s2 = inlined_call_operand.vmem [shape: f32[1,4], index: 2, kind: input, shape index: {}]
  %s3 = inlined_call_operand.vmem [shape: f32[1,4], index: 3, kind: input, shape index: {}]
  %s4 = inlined_call_operand.vmem [shape: f32[1,128], index: 4, kind: input, shape index: {}]
  %s5 = inlined_call_operand.vmem [shape: f32[1,128], index: 5, kind: input, shape index: {}]
  %s6 = inlined_call_operand.vmem [shape: bf16[128,128], index: 6, kind: input, shape index: {}]
  %s7 = inlined_call_operand.vmem [shape: bf16[128,128], index: 7, kind: input, shape index: {}]
  %s8 = inlined_call_operand.hbm [shape: f32[2,8,8,128], index: 8, kind: output, shape index: {}]
  %s9 = sld [smem:[#allocation0]]
  $region46: #{tpu_custom_call.1} parent=0
    _
  %s11 = ssub.s32 1, %s9
  %s12 = scalar_select 0, %s11, %s9
  $region1: #{tpu_custom_call.1} parent=0
    #allocation6 [shape = 'u8[65536]{0}', space=vmem, size = 0x10000, scoped, tag = 'output window, operand 0, single buffered']
    #allocation7 [shape = 's32[1]{0}', space=sflag, size = 0x4, scoped, tag = 'scoped memory for tpu_custom_call.1']
    %13 = vsyncpa [#allocation7], 0
    // Predicated region
    $region2: #{tpu_custom_call.1} parent=1 // pred_check
      _
    $region3: #{tpu_custom_call.1} parent=1 // pred_check_branch
      %15 = sbr.rel (0) target = $region5
    $region4: #{tpu_custom_call.1} parent=1 // pred_region
      _
    $region5: #{tpu_custom_call.1} parent=1 // pred_fallthru
      _
    // Predicated region
    $region6: #{tpu_custom_call.1} parent=1 // pred_check
      _
    $region7: #{tpu_custom_call.1} parent=1 // pred_check_branch
      %17 = sbr.rel (0) target = $region9
    $region8: #{tpu_custom_call.1} parent=1 // pred_region
      _
    $region9: #{tpu_custom_call.1} parent=1 // pred_fallthru
      _
    // Predicated region
    $region10: #{tpu_custom_call.1} parent=1 // pred_check
      _
    $region11: #{tpu_custom_call.1} parent=1 // pred_check_branch
      %19 = sbr.rel (0) target = $region13
    $region12: #{tpu_custom_call.1} parent=1 // pred_region
      _
    $region13: #{tpu_custom_call.1} parent=1 // pred_fallthru
      _
    // Predicated region
    $region14: #{tpu_custom_call.1} parent=1 // pred_check
      _
    $region15: #{tpu_custom_call.1} parent=1 // pred_check_branch
      %21 = sbr.rel (0) target = $region17
    $region16: #{tpu_custom_call.1} parent=1 // pred_region
      _
    $region17: #{tpu_custom_call.1} parent=1 // pred_fallthru
      _
    // Predicated region
    $region18: #{tpu_custom_call.1} parent=1 // pred_check
      _
    $region19: #{tpu_custom_call.1} parent=1 // pred_check_branch
      %23 = sbr.rel (0) target = $region21
    $region20: #{tpu_custom_call.1} parent=1 // pred_region
      _
    $region21: #{tpu_custom_call.1} parent=1 // pred_fallthru
      _
    // Predicated region
    $region22: #{tpu_custom_call.1} parent=1 // pred_check
      _
    $region23: #{tpu_custom_call.1} parent=1 // pred_check_branch
      %25 = sbr.rel (0) target = $region25
    $region24: #{tpu_custom_call.1} parent=1 // pred_region
      _
    $region25: #{tpu_custom_call.1} parent=1 // pred_fallthru
      _
    // Predicated region
    $region26: #{tpu_custom_call.1} parent=1 // pred_check
      _
    $region27: #{tpu_custom_call.1} parent=1 // pred_check_branch
      %27 = sbr.rel (0) target = $region29
    $region28: #{tpu_custom_call.1} parent=1 // pred_region
      _
    $region29: #{tpu_custom_call.1} parent=1 // pred_fallthru
      _
    // Predicated region
    $region30: #{tpu_custom_call.1} parent=1 // pred_check
      _
    $region31: #{tpu_custom_call.1} parent=1 // pred_check_branch
      %29 = sbr.rel (0) target = $region33
    $region32: #{tpu_custom_call.1} parent=1 // pred_region
      _
    $region33: #{tpu_custom_call.1} parent=1 // pred_fallthru
      _
    %p30 = scmp.eq.s32.totalorder 0, 0
    // Predicated region
    $region34: #{tpu_custom_call.1} parent=1 // pred_check
      %p31 = pneg %p30
    $region35: #{tpu_custom_call.1} parent=1 // pred_check_branch
      %33 = sbr.rel (%p31) target = $region37
    $region36: #{tpu_custom_call.1} parent=1 // pred_region
      %vm34 = vcmask 31744
      %35 = vst.msk [vmem:[#allocation2] sm:$0xff] %vm34, 0.0
      %36 = vst.msk [vmem:[#allocation2 + $0x8] sm:$0xff] %vm34, 0.0
      %vm37 = vcmask 25600
      %38 = vst.msk [vmem:[#allocation2 + $0x10] sm:$0x3] %vm37, 0.0
      %39 = vst.msk [vmem:[#allocation2 + $0x18] sm:$0xff] %vm34, 0.0
      %40 = vst.msk [vmem:[#allocation2 + $0x20] sm:$0xff] %vm34, 0.0
      %41 = vst.msk [vmem:[#allocation2 + $0x28] sm:$0x3] %vm37, 0.0
      %42 = vst.msk [vmem:[#allocation2 + $0x30] sm:$0xff] %vm34, 0.0
      %43 = vst.msk [vmem:[#allocation2 + $0x38] sm:$0xff] %vm34, 0.0
      %44 = vst.msk [vmem:[#allocation2 + $0x40] sm:$0x3] %vm37, 0.0
      %45 = vst.msk [vmem:[#allocation2 + $0x48] sm:$0xff] %vm34, 0.0
      %46 = vst.msk [vmem:[#allocation2 + $0x50] sm:$0xff] %vm34, 0.0
      %47 = vst.msk [vmem:[#allocation2 + $0x58] sm:$0x3] %vm37, 0.0
      %48 = vst.msk [vmem:[#allocation2 + $0x60] sm:$0xff] %vm34, 0.0
      %49 = vst.msk [vmem:[#allocation2 + $0x68] sm:$0xff] %vm34, 0.0
      %50 = vst.msk [vmem:[#allocation2 + $0x70] sm:$0x3] %vm37, 0.0
      %51 = vst.msk [vmem:[#allocation2 + $0x78] sm:$0xff] %vm34, 0.0
      %52 = vst.msk [vmem:[#allocation2 + $0x80] sm:$0xff] %vm34, 0.0
      %53 = vst.msk [vmem:[#allocation2 + $0x88] sm:$0x3] %vm37, 0.0
      %54 = vst.msk [vmem:[#allocation2 + $0x90] sm:$0xff] %vm34, 0.0
      %55 = vst.msk [vmem:[#allocation2 + $0x98] sm:$0xff] %vm34, 0.0
      %56 = vst.msk [vmem:[#allocation2 + $0xa0] sm:$0x3] %vm37, 0.0
      %57 = vst.msk [vmem:[#allocation2 + $0xa8] sm:$0xff] %vm34, 0.0
      %58 = vst.msk [vmem:[#allocation2 + $0xb0] sm:$0xff] %vm34, 0.0
      %59 = vst.msk [vmem:[#allocation2 + $0xb8] sm:$0x3] %vm37, 0.0
      %60 = vst.msk [vmem:[#allocation2 + $0xc0] sm:$0xff] %vm34, 0.0
      %61 = vst.msk [vmem:[#allocation2 + $0xc8] sm:$0xff] %vm34, 0.0
      %62 = vst.msk [vmem:[#allocation2 + $0xd0] sm:$0x3] %vm37, 0.0
      %63 = vst.msk [vmem:[#allocation2 + $0xd8] sm:$0xff] %vm34, 0.0
      %64 = vst.msk [vmem:[#allocation2 + $0xe0] sm:$0xff] %vm34, 0.0
      %65 = vst.msk [vmem:[#allocation2 + $0xe8] sm:$0x3] %vm37, 0.0
      %66 = vst.msk [vmem:[#allocation2 + $0xf0] sm:$0xff] %vm34, 0.0
      %67 = vst.msk [vmem:[#allocation2 + $0xf8] sm:$0xff] %vm34, 0.0
      %68 = vst.msk [vmem:[#allocation2 + $0x100] sm:$0x3] %vm37, 0.0
      %69 = vst.msk [vmem:[#allocation2 + $0x108] sm:$0xff] %vm34, 0.0
      %70 = vst.msk [vmem:[#allocation2 + $0x110] sm:$0xff] %vm34, 0.0
      %71 = vst.msk [vmem:[#allocation2 + $0x118] sm:$0x3] %vm37, 0.0
      %72 = vst.msk [vmem:[#allocation2 + $0x120] sm:$0xff] %vm34, 0.0
      %73 = vst.msk [vmem:[#allocation2 + $0x128] sm:$0xff] %vm34, 0.0
      %74 = vst.msk [vmem:[#allocation2 + $0x130] sm:$0x3] %vm37, 0.0
      %75 = vst.msk [vmem:[#allocation2 + $0x138] sm:$0xff] %vm34, 0.0
      %76 = vst.msk [vmem:[#allocation2 + $0x140] sm:$0xff] %vm34, 0.0
      %77 = vst.msk [vmem:[#allocation2 + $0x148] sm:$0x3] %vm37, 0.0
      %78 = vst.msk [vmem:[#allocation2 + $0x150] sm:$0xff] %vm34, 0.0
      %79 = vst.msk [vmem:[#allocation2 + $0x158] sm:$0xff] %vm34, 0.0
      %80 = vst.msk [vmem:[#allocation2 + $0x160] sm:$0x3] %vm37, 0.0
      %81 = vst.msk [vmem:[#allocation2 + $0x168] sm:$0xff] %vm34, 0.0
      %82 = vst.msk [vmem:[#allocation2 + $0x170] sm:$0xff] %vm34, 0.0
      %83 = vst.msk [vmem:[#allocation2 + $0x178] sm:$0x3] %vm37, 0.0
      %84 = vst.msk [vmem:[#allocation2 + $0x180] sm:$0xff] %vm34, 0.0
      %85 = vst.msk [vmem:[#allocation2 + $0x188] sm:$0xff] %vm34, 0.0
      %86 = vst.msk [vmem:[#allocation2 + $0x190] sm:$0x3] %vm37, 0.0
      %87 = vst.msk [vmem:[#allocation2 + $0x198] sm:$0xff] %vm34, 0.0
      %88 = vst.msk [vmem:[#allocation2 + $0x1a0] sm:$0xff] %vm34, 0.0
      %89 = vst.msk [vmem:[#allocation2 + $0x1a8] sm:$0x3] %vm37, 0.0
      %90 = vst.msk [vmem:[#allocation2 + $0x1b0] sm:$0xff] %vm34, 0.0
      %91 = vst.msk [vmem:[#allocation2 + $0x1b8] sm:$0xff] %vm34, 0.0
      %92 = vst.msk [vmem:[#allocation2 + $0x1c0] sm:$0x3] %vm37, 0.0
      %93 = vst.msk [vmem:[#allocation2 + $0x1c8] sm:$0xff] %vm34, 0.0
      %94 = vst.msk [vmem:[#allocation2 + $0x1d0] sm:$0xff] %vm34, 0.0
      %95 = vst.msk [vmem:[#allocation2 + $0x1d8] sm:$0x3] %vm37, 0.0
      %96 = vst.msk [vmem:[#allocation2 + $0x1e0] sm:$0xff] %vm34, 0.0
      %97 = vst.msk [vmem:[#allocation2 + $0x1e8] sm:$0xff] %vm34, 0.0
      %98 = vst.msk [vmem:[#allocation2 + $0x1f0] sm:$0x3] %vm37, 0.0
      %99 = vst.msk [vmem:[#allocation2 + $0x1f8] sm:$0xff] %vm34, 0.0
      %100 = vst.msk [vmem:[#allocation2 + $0x200] sm:$0xff] %vm34, 0.0
      %101 = vst.msk [vmem:[#allocation2 + $0x208] sm:$0x3] %vm37, 0.0
      %102 = vst.msk [vmem:[#allocation2 + $0x210] sm:$0xff] %vm34, 0.0
      %103 = vst.msk [vmem:[#allocation2 + $0x218] sm:$0xff] %vm34, 0.0
      %104 = vst.msk [vmem:[#allocation2 + $0x220] sm:$0x3] %vm37, 0.0
      %105 = vst.msk [vmem:[#allocation2 + $0x228] sm:$0xff] %vm34, 0.0
      %106 = vst.msk [vmem:[#allocation2 + $0x230] sm:$0xff] %vm34, 0.0
      %107 = vst.msk [vmem:[#allocation2 + $0x238] sm:$0x3] %vm37, 0.0
      %108 = vst.msk [vmem:[#allocation2 + $0x240] sm:$0xff] %vm34, 0.0
      %109 = vst.msk [vmem:[#allocation2 + $0x248] sm:$0xff] %vm34, 0.0
      %110 = vst.msk [vmem:[#allocation2 + $0x250] sm:$0x3] %vm37, 0.0
      %111 = vst.msk [vmem:[#allocation2 + $0x258] sm:$0xff] %vm34, 0.0
      %112 = vst.msk [vmem:[#allocation2 + $0x260] sm:$0xff] %vm34, 0.0
      %113 = vst.msk [vmem:[#allocation2 + $0x268] sm:$0x3] %vm37, 0.0
      %114 = vst.msk [vmem:[#allocation2 + $0x270] sm:$0xff] %vm34, 0.0
      %115 = vst.msk [vmem:[#allocation2 + $0x278] sm:$0xff] %vm34, 0.0
      %116 = vst.msk [vmem:[#allocation2 + $0x280] sm:$0x3] %vm37, 0.0
      %117 = vst.msk [vmem:[#allocation2 + $0x288] sm:$0xff] %vm34, 0.0
      %118 = vst.msk [vmem:[#allocation2 + $0x290] sm:$0xff] %vm34, 0.0
      %119 = vst.msk [vmem:[#allocation2 + $0x298] sm:$0x3] %vm37, 0.0
      %120 = vst.msk [vmem:[#allocation2 + $0x2a0] sm:$0xff] %vm34, 0.0
      %121 = vst.msk [vmem:[#allocation2 + $0x2a8] sm:$0xff] %vm34, 0.0
      %122 = vst.msk [vmem:[#allocation2 + $0x2b0] sm:$0x3] %vm37, 0.0
      %123 = vst.msk [vmem:[#allocation2 + $0x2b8] sm:$0xff] %vm34, 0.0
      %124 = vst.msk [vmem:[#allocation2 + $0x2c0] sm:$0xff] %vm34, 0.0
      %125 = vst.msk [vmem:[#allocation2 + $0x2c8] sm:$0x3] %vm37, 0.0
      %126 = vst.msk [vmem:[#allocation2 + $0x2d0] sm:$0xff] %vm34, 0.0
      %127 = vst.msk [vmem:[#allocation2 + $0x2d8] sm:$0xff] %vm34, 0.0
      %128 = vst.msk [vmem:[#allocation2 + $0x2e0] sm:$0x3] %vm37, 0.0
      %129 = vst.msk [vmem:[#allocation2 + $0x2e8] sm:$0xff] %vm34, 0.0
      %130 = vst.msk [vmem:[#allocation2 + $0x2f0] sm:$0xff] %vm34, 0.0
      %131 = vst.msk [vmem:[#allocation2 + $0x2f8] sm:$0x3] %vm37, 0.0
      %132 = vst.msk [vmem:[#allocation2 + $0x300] sm:$0xff] %vm34, 0.0
      %133 = vst.msk [vmem:[#allocation2 + $0x308] sm:$0xff] %vm34, 0.0
      %134 = vst.msk [vmem:[#allocation2 + $0x310] sm:$0x3] %vm37, 0.0
      %135 = vst.msk [vmem:[#allocation2 + $0x318] sm:$0xff] %vm34, 0.0
      %136 = vst.msk [vmem:[#allocation2 + $0x320] sm:$0xff] %vm34, 0.0
      %137 = vst.msk [vmem:[#allocation2 + $0x328] sm:$0x3] %vm37, 0.0
      %138 = vst.msk [vmem:[#allocation2 + $0x330] sm:$0xff] %vm34, 0.0
      %139 = vst.msk [vmem:[#allocation2 + $0x338] sm:$0xff] %vm34, 0.0
      %140 = vst.msk [vmem:[#allocation2 + $0x340] sm:$0x3] %vm37, 0.0
      %141 = vst.msk [vmem:[#allocation2 + $0x348] sm:$0xff] %vm34, 0.0
      %142 = vst.msk [vmem:[#allocation2 + $0x350] sm:$0xff] %vm34, 0.0
      %143 = vst.msk [vmem:[#allocation2 + $0x358] sm:$0x3] %vm37, 0.0
      %144 = vst [vmem:[#allocation3] sm:$0xff] 0.0
      %145 = vst [vmem:[#allocation3 + $0x8] sm:$0xff] 0.0
      %146 = vst [vmem:[#allocation3 + $0x10] sm:$0xff] 0.0
      %147 = vst [vmem:[#allocation3 + $0x18] sm:$0xff] 0.0
      %148 = vst [vmem:[#allocation3 + $0x20] sm:$0xff] 0.0
      %149 = vst [vmem:[#allocation3 + $0x28] sm:$0xff] 0.0
      %150 = vst [vmem:[#allocation3 + $0x30] sm:$0xff] 0.0
      %151 = vst [vmem:[#allocation3 + $0x38] sm:$0xff] 0.0
      %152 = vst [vmem:[#allocation3 + $0x40] sm:$0xff] 0.0
      %153 = vst [vmem:[#allocation3 + $0x48] sm:$0xff] 0.0
      %154 = vst [vmem:[#allocation3 + $0x50] sm:$0xff] 0.0
      %155 = vst [vmem:[#allocation3 + $0x58] sm:$0xff] 0.0
      %156 = vst [vmem:[#allocation3 + $0x60] sm:$0xff] 0.0
      %157 = vst [vmem:[#allocation3 + $0x68] sm:$0xff] 0.0
      %158 = vst [vmem:[#allocation3 + $0x70] sm:$0xff] 0.0
      %159 = vst [vmem:[#allocation3 + $0x78] sm:$0xff] 0.0
      %vm160 = vcmask 64512
      %161 = vst.msk [vmem:[#allocation4] sm:$0xff] %vm160, 0.0
      %vm162 = vcmask 58368
      %163 = vst.msk [vmem:[#allocation4 + $0x8] sm:$0x3] %vm162, 0.0
      %164 = vst.msk [vmem:[#allocation4 + $0x10] sm:$0xff] %vm160, 0.0
      %165 = vst.msk [vmem:[#allocation4 + $0x18] sm:$0x3] %vm162, 0.0
      %166 = vst.msk [vmem:[#allocation4 + $0x20] sm:$0xff] %vm160, 0.0
      %167 = vst.msk [vmem:[#allocation4 + $0x28] sm:$0x3] %vm162, 0.0
      %168 = vst.msk [vmem:[#allocation4 + $0x30] sm:$0xff] %vm160, 0.0
      %169 = vst.msk [vmem:[#allocation4 + $0x38] sm:$0x3] %vm162, 0.0
      %170 = vst.msk [vmem:[#allocation4 + $0x40] sm:$0xff] %vm160, 0.0
      %171 = vst.msk [vmem:[#allocation4 + $0x48] sm:$0x3] %vm162, 0.0
      %172 = vst.msk [vmem:[#allocation4 + $0x50] sm:$0xff] %vm160, 0.0
      %173 = vst.msk [vmem:[#allocation4 + $0x58] sm:$0x3] %vm162, 0.0
      %174 = vst.msk [vmem:[#allocation4 + $0x60] sm:$0xff] %vm160, 0.0
      %175 = vst.msk [vmem:[#allocation4 + $0x68] sm:$0x3] %vm162, 0.0
      %176 = vst.msk [vmem:[#allocation4 + $0x70] sm:$0xff] %vm160, 0.0
      %177 = vst.msk [vmem:[#allocation4 + $0x78] sm:$0x3] %vm162, 0.0
      %178 = vst.msk [vmem:[#allocation4 + $0x80] sm:$0xff] %vm160, 0.0
      %179 = vst.msk [vmem:[#allocation4 + $0x88] sm:$0x3] %vm162, 0.0
      %180 = vst.msk [vmem:[#allocation4 + $0x90] sm:$0xff] %vm160, 0.0
      %181 = vst.msk [vmem:[#allocation4 + $0x98] sm:$0x3] %vm162, 0.0
      %182 = vst.msk [vmem:[#allocation4 + $0xa0] sm:$0xff] %vm160, 0.0
      %183 = vst.msk [vmem:[#allocation4 + $0xa8] sm:$0x3] %vm162, 0.0
      %184 = vst.msk [vmem:[#allocation4 + $0xb0] sm:$0xff] %vm160, 0.0
      %185 = vst.msk [vmem:[#allocation4 + $0xb8] sm:$0x3] %vm162, 0.0
      %186 = vst.msk [vmem:[#allocation4 + $0xc0] sm:$0xff] %vm160, 0.0
      %187 = vst.msk [vmem:[#allocation4 + $0xc8] sm:$0x3] %vm162, 0.0
      %188 = vst.msk [vmem:[#allocation4 + $0xd0] sm:$0xff] %vm160, 0.0
      %189 = vst.msk [vmem:[#allocation4 + $0xd8] sm:$0x3] %vm162, 0.0
      %190 = vst.msk [vmem:[#allocation4 + $0xe0] sm:$0xff] %vm160, 0.0
      %191 = vst.msk [vmem:[#allocation4 + $0xe8] sm:$0x3] %vm162, 0.0
      %192 = vst.msk [vmem:[#allocation4 + $0xf0] sm:$0xff] %vm160, 0.0
      %193 = vst.msk [vmem:[#allocation4 + $0xf8] sm:$0x3] %vm162, 0.0
      %194 = vst.msk [vmem:[#allocation4 + $0x100] sm:$0xff] %vm160, 0.0
      %195 = vst.msk [vmem:[#allocation4 + $0x108] sm:$0x3] %vm162, 0.0
      %196 = vst.msk [vmem:[#allocation4 + $0x110] sm:$0xff] %vm160, 0.0
      %197 = vst.msk [vmem:[#allocation4 + $0x118] sm:$0x3] %vm162, 0.0
      %198 = vst.msk [vmem:[#allocation4 + $0x120] sm:$0xff] %vm160, 0.0
      %199 = vst.msk [vmem:[#allocation4 + $0x128] sm:$0x3] %vm162, 0.0
      %200 = vst.msk [vmem:[#allocation4 + $0x130] sm:$0xff] %vm160, 0.0
      %201 = vst.msk [vmem:[#allocation4 + $0x138] sm:$0x3] %vm162, 0.0
      %202 = vst [vmem:[#allocation5] sm:$0xff] 0.0
      %203 = vst [vmem:[#allocation5 + $0x8] sm:$0xff] 0.0
      %204 = vst [vmem:[#allocation5 + $0x10] sm:$0xff] 0.0
      %205 = vst [vmem:[#allocation5 + $0x18] sm:$0xff] 0.0
      %206 = vst [vmem:[#allocation5 + $0x20] sm:$0xff] 0.0
      %207 = vst [vmem:[#allocation5 + $0x28] sm:$0xff] 0.0
      %208 = vst [vmem:[#allocation5 + $0x30] sm:$0xff] 0.0
      %209 = vst [vmem:[#allocation5 + $0x38] sm:$0xff] 0.0
      %210 = vst [vmem:[#allocation5 + $0x40] sm:$0xff] 0.0
      %211 = vst [vmem:[#allocation5 + $0x48] sm:$0xff] 0.0
      %212 = vst [vmem:[#allocation5 + $0x50] sm:$0xff] 0.0
      %213 = vst [vmem:[#allocation5 + $0x58] sm:$0xff] 0.0
      %214 = vst [vmem:[#allocation5 + $0x60] sm:$0xff] 0.0
      %215 = vst [vmem:[#allocation5 + $0x68] sm:$0xff] 0.0
      %216 = vst [vmem:[#allocation5 + $0x70] sm:$0xff] 0.0
      %217 = vst [vmem:[#allocation5 + $0x78] sm:$0xff] 0.0
    $region37: #{tpu_custom_call.1} parent=1 // pred_fallthru
      _
    %v218 = vld [vmem:[%s0] sm:$0xff]
    %v219 = vld [vmem:[%s0 + $0x8] sm:$0xff]
    %v220 = vld [vmem:[%s0 + $0x10] sm:$0xff]
    %v221 = vld [vmem:[%s0 + $0x18] sm:$0xff]
    %v222 = vld [vmem:[%s0 + $0x20] sm:$0xff]
    %v223 = vld [vmem:[%s0 + $0x28] sm:$0xff]
    %v224 = vld [vmem:[%s0 + $0x30] sm:$0xff]
    %v225 = vld [vmem:[%s0 + $0x38] sm:$0xff]
    %v226 = vld [vmem:[%s0 + $0x40] sm:$0xff]
    %v227 = vld [vmem:[%s0 + $0x48] sm:$0xff]
    %v228 = vld [vmem:[%s0 + $0x50] sm:$0xff]
    %v229 = vld [vmem:[%s0 + $0x58] sm:$0xff]
    %v230 = vld [vmem:[%s0 + $0x60] sm:$0xff]
    %v231 = vld [vmem:[%s0 + $0x68] sm:$0xff]
    %v232 = vld [vmem:[%s0 + $0x70] sm:$0xff]
    %v233 = vld [vmem:[%s0 + $0x78] sm:$0xff]
    %v234 = vld [vmem:[%s0 + $0x80] sm:$0xff]
    %v235 = vld [vmem:[%s0 + $0x88] sm:$0xff]
    %v236 = vld [vmem:[%s0 + $0x90] sm:$0xff]
    %v237 = vld [vmem:[%s0 + $0x98] sm:$0xff]
    %v238 = vld [vmem:[%s0 + $0xa0] sm:$0xff]
    %v239 = vld [vmem:[%s0 + $0xa8] sm:$0xff]
    %v240 = vld [vmem:[%s0 + $0xb0] sm:$0xff]
    %v241 = vld [vmem:[%s0 + $0xb8] sm:$0xff]
    %v242 = vld [vmem:[%s0 + $0xc0] sm:$0xff]
    %v243 = vld [vmem:[%s0 + $0xc8] sm:$0xff]
    %v244 = vld [vmem:[%s0 + $0xd0] sm:$0xff]
    %v245 = vld [vmem:[%s0 + $0xd8] sm:$0xff]
    %v246 = vld [vmem:[%s0 + $0xe0] sm:$0xff]
    %v247 = vld [vmem:[%s0 + $0xe8] sm:$0xff]
    %v248 = vld [vmem:[%s0 + $0xf0] sm:$0xff]
    %v249 = vld [vmem:[%s0 + $0xf8] sm:$0xff]
    %v250 = vld [vmem:[%s0 + $0x100] sm:$0xff]
    %v251 = vld [vmem:[%s0 + $0x108] sm:$0xff]
    %v252 = vld [vmem:[%s0 + $0x110] sm:$0xff]
    %v253 = vld [vmem:[%s0 + $0x118] sm:$0xff]
    %v254 = vld [vmem:[%s0 + $0x120] sm:$0xff]
    %v255 = vld [vmem:[%s0 + $0x128] sm:$0xff]
    %v256 = vld [vmem:[%s0 + $0x130] sm:$0xff]
    %v257 = vld [vmem:[%s0 + $0x138] sm:$0xff]
    %v258 = vld [vmem:[%s0 + $0x140] sm:$0xff]
    %v259 = vld [vmem:[%s0 + $0x148] sm:$0xff]
    %v260 = vld [vmem:[%s0 + $0x150] sm:$0xff]
    %v261 = vld [vmem:[%s0 + $0x158] sm:$0xff]
    %v262 = vld [vmem:[%s0 + $0x160] sm:$0xff]
    %v263 = vld [vmem:[%s0 + $0x168] sm:$0xff]
    %v264 = vld [vmem:[%s0 + $0x170] sm:$0xff]
    %v265 = vld [vmem:[%s0 + $0x178] sm:$0xff]
    %v266 = vld [vmem:[%s0 + $0x180] sm:$0xff]
    %v267 = vld [vmem:[%s0 + $0x188] sm:$0xff]
    %v268 = vld [vmem:[%s0 + $0x190] sm:$0xff]
    %v269 = vld [vmem:[%s0 + $0x198] sm:$0xff]
    %v270 = vld [vmem:[%s0 + $0x1a0] sm:$0xff]
    %v271 = vld [vmem:[%s0 + $0x1a8] sm:$0xff]
    %v272 = vld [vmem:[%s0 + $0x1b0] sm:$0xff]
    %v273 = vld [vmem:[%s0 + $0x1b8] sm:$0xff]
    %v274 = vld [vmem:[%s0 + $0x1c0] sm:$0xff]
    %v275 = vld [vmem:[%s0 + $0x1c8] sm:$0xff]
    %v276 = vld [vmem:[%s0 + $0x1d0] sm:$0xff]
    %v277 = vld [vmem:[%s0 + $0x1d8] sm:$0xff]
    %v278 = vld [vmem:[%s0 + $0x1e0] sm:$0xff]
    %v279 = vld [vmem:[%s0 + $0x1e8] sm:$0xff]
    %v280 = vld [vmem:[%s0 + $0x1f0] sm:$0xff]
    %v281 = vld [vmem:[%s0 + $0x1f8] sm:$0xff]
    %v282 = vld [vmem:[%s2] sm:$0x1]
    %v284 = vperm.slane %v282, 0
    %v286 = vmul.f32 %v218, %v284
    %v287 = vmul.f32 %v219, %v284
    %v288 = vmul.f32 %v220, %v284
    %v289 = vmul.f32 %v221, %v284
    %v290 = vmul.f32 %v222, %v284
    %v291 = vmul.f32 %v223, %v284
    %v292 = vmul.f32 %v224, %v284
    %v293 = vmul.f32 %v225, %v284
    %v294 = vmul.f32 %v226, %v284
    %v295 = vmul.f32 %v227, %v284
    %v296 = vmul.f32 %v228, %v284
    %v297 = vmul.f32 %v229, %v284
    %v298 = vmul.f32 %v230, %v284
    %v299 = vmul.f32 %v231, %v284
    %v300 = vmul.f32 %v232, %v284
    %v301 = vmul.f32 %v233, %v284
    %v302 = vmul.f32 %v234, %v284
    %v303 = vmul.f32 %v235, %v284
    %v304 = vmul.f32 %v236, %v284
    %v305 = vmul.f32 %v237, %v284
    %v306 = vmul.f32 %v238, %v284
    %v307 = vmul.f32 %v239, %v284
    %v308 = vmul.f32 %v240, %v284
    %v309 = vmul.f32 %v241, %v284
    %v310 = vmul.f32 %v242, %v284
    %v311 = vmul.f32 %v243, %v284
    %v312 = vmul.f32 %v244, %v284
    %v313 = vmul.f32 %v245, %v284
    %v314 = vmul.f32 %v246, %v284
    %v315 = vmul.f32 %v247, %v284
    %v316 = vmul.f32 %v248, %v284
    %v317 = vmul.f32 %v249, %v284
    %v318 = vmul.f32 %v250, %v284
    %v319 = vmul.f32 %v251, %v284
    %v320 = vmul.f32 %v252, %v284
    %v321 = vmul.f32 %v253, %v284
    %v322 = vmul.f32 %v254, %v284
    %v323 = vmul.f32 %v255, %v284
    %v324 = vmul.f32 %v256, %v284
    %v325 = vmul.f32 %v257, %v284
    %v326 = vmul.f32 %v258, %v284
    %v327 = vmul.f32 %v259, %v284
    %v328 = vmul.f32 %v260, %v284
    %v329 = vmul.f32 %v261, %v284
    %v330 = vmul.f32 %v262, %v284
    %v331 = vmul.f32 %v263, %v284
    %v332 = vmul.f32 %v264, %v284
    %v333 = vmul.f32 %v265, %v284
    %v334 = vmul.f32 %v266, %v284
    %v335 = vmul.f32 %v267, %v284
    %v336 = vmul.f32 %v268, %v284
    %v337 = vmul.f32 %v269, %v284
    %v338 = vmul.f32 %v270, %v284
    %v339 = vmul.f32 %v271, %v284
    %v340 = vmul.f32 %v272, %v284
    %v341 = vmul.f32 %v273, %v284
    %v342 = vmul.f32 %v274, %v284
    %v343 = vmul.f32 %v275, %v284
    %v344 = vmul.f32 %v276, %v284
    %v345 = vmul.f32 %v277, %v284
    %v346 = vmul.f32 %v278, %v284
    %v347 = vmul.f32 %v279, %v284
    %v348 = vmul.f32 %v280, %v284
    %v349 = vmul.f32 %v281, %v284
    %v350 = vld [vmem:[%s3] sm:$0x1]
    %v352 = vperm.slane %v350, 0
    %v354 = vadd.f32 %v286, %v352
    %v355 = vadd.f32 %v287, %v352
    %v356 = vadd.f32 %v288, %v352
    %v357 = vadd.f32 %v289, %v352
    %v358 = vadd.f32 %v290, %v352
    %v359 = vadd.f32 %v291, %v352
    %v360 = vadd.f32 %v292, %v352
    %v361 = vadd.f32 %v293, %v352
    %v362 = vadd.f32 %v294, %v352
    %v363 = vadd.f32 %v295, %v352
    %v364 = vadd.f32 %v296, %v352
    %v365 = vadd.f32 %v297, %v352
    %v366 = vadd.f32 %v298, %v352
    %v367 = vadd.f32 %v299, %v352
    %v368 = vadd.f32 %v300, %v352
    %v369 = vadd.f32 %v301, %v352
    %v370 = vadd.f32 %v302, %v352
    %v371 = vadd.f32 %v303, %v352
    %v372 = vadd.f32 %v304, %v352
    %v373 = vadd.f32 %v305, %v352
    %v374 = vadd.f32 %v306, %v352
    %v375 = vadd.f32 %v307, %v352
    %v376 = vadd.f32 %v308, %v352
    %v377 = vadd.f32 %v309, %v352
    %v378 = vadd.f32 %v310, %v352
    %v379 = vadd.f32 %v311, %v352
    %v380 = vadd.f32 %v312, %v352
    %v381 = vadd.f32 %v313, %v352
    %v382 = vadd.f32 %v314, %v352
    %v383 = vadd.f32 %v315, %v352
    %v384 = vadd.f32 %v316, %v352
    %v385 = vadd.f32 %v317, %v352
    %v386 = vadd.f32 %v318, %v352
    %v387 = vadd.f32 %v319, %v352
    %v388 = vadd.f32 %v320, %v352
    %v389 = vadd.f32 %v321, %v352
    %v390 = vadd.f32 %v322, %v352
    %v391 = vadd.f32 %v323, %v352
    %v392 = vadd.f32 %v324, %v352
    %v393 = vadd.f32 %v325, %v352
    %v394 = vadd.f32 %v326, %v352
    %v395 = vadd.f32 %v327, %v352
    %v396 = vadd.f32 %v328, %v352
    %v397 = vadd.f32 %v329, %v352
    %v398 = vadd.f32 %v330, %v352
    %v399 = vadd.f32 %v331, %v352
    %v400 = vadd.f32 %v332, %v352
    %v401 = vadd.f32 %v333, %v352
    %v402 = vadd.f32 %v334, %v352
    %v403 = vadd.f32 %v335, %v352
    %v404 = vadd.f32 %v336, %v352
    %v405 = vadd.f32 %v337, %v352
    %v406 = vadd.f32 %v338, %v352
    %v407 = vadd.f32 %v339, %v352
    %v408 = vadd.f32 %v340, %v352
    %v409 = vadd.f32 %v341, %v352
    %v410 = vadd.f32 %v342, %v352
    %v411 = vadd.f32 %v343, %v352
    %v412 = vadd.f32 %v344, %v352
    %v413 = vadd.f32 %v345, %v352
    %v414 = vadd.f32 %v346, %v352
    %v415 = vadd.f32 %v347, %v352
    %v416 = vadd.f32 %v348, %v352
    %v417 = vadd.f32 %v349, %v352
    %vm418 = vcmp.gt.f32.partialorder %v354, 0.0
    %vm419 = vcmp.gt.f32.partialorder %v355, 0.0
    %vm420 = vcmp.gt.f32.partialorder %v356, 0.0
    %vm421 = vcmp.gt.f32.partialorder %v357, 0.0
    %vm422 = vcmp.gt.f32.partialorder %v358, 0.0
    %vm423 = vcmp.gt.f32.partialorder %v359, 0.0
    %vm424 = vcmp.gt.f32.partialorder %v360, 0.0
    %vm425 = vcmp.gt.f32.partialorder %v361, 0.0
    %vm426 = vcmp.gt.f32.partialorder %v362, 0.0
    %vm427 = vcmp.gt.f32.partialorder %v363, 0.0
    %vm428 = vcmp.gt.f32.partialorder %v364, 0.0
    %vm429 = vcmp.gt.f32.partialorder %v365, 0.0
    %vm430 = vcmp.gt.f32.partialorder %v366, 0.0
    %vm431 = vcmp.gt.f32.partialorder %v367, 0.0
    %vm432 = vcmp.gt.f32.partialorder %v368, 0.0
    %vm433 = vcmp.gt.f32.partialorder %v369, 0.0
    %vm434 = vcmp.gt.f32.partialorder %v370, 0.0
    %vm435 = vcmp.gt.f32.partialorder %v371, 0.0
    %vm436 = vcmp.gt.f32.partialorder %v372, 0.0
    %vm437 = vcmp.gt.f32.partialorder %v373, 0.0
    %vm438 = vcmp.gt.f32.partialorder %v374, 0.0
    %vm439 = vcmp.gt.f32.partialorder %v375, 0.0
    %vm440 = vcmp.gt.f32.partialorder %v376, 0.0
    %vm441 = vcmp.gt.f32.partialorder %v377, 0.0
    %vm442 = vcmp.gt.f32.partialorder %v378, 0.0
    %vm443 = vcmp.gt.f32.partialorder %v379, 0.0
    %vm444 = vcmp.gt.f32.partialorder %v380, 0.0
    %vm445 = vcmp.gt.f32.partialorder %v381, 0.0
    %vm446 = vcmp.gt.f32.partialorder %v382, 0.0
    %vm447 = vcmp.gt.f32.partialorder %v383, 0.0
    %vm448 = vcmp.gt.f32.partialorder %v384, 0.0
    %vm449 = vcmp.gt.f32.partialorder %v385, 0.0
    %vm450 = vcmp.gt.f32.partialorder %v386, 0.0
    %vm451 = vcmp.gt.f32.partialorder %v387, 0.0
    %vm452 = vcmp.gt.f32.partialorder %v388, 0.0
    %vm453 = vcmp.gt.f32.partialorder %v389, 0.0
    %vm454 = vcmp.gt.f32.partialorder %v390, 0.0
    %vm455 = vcmp.gt.f32.partialorder %v391, 0.0
    %vm456 = vcmp.gt.f32.partialorder %v392, 0.0
    %vm457 = vcmp.gt.f32.partialorder %v393, 0.0
    %vm458 = vcmp.gt.f32.partialorder %v394, 0.0
    %vm459 = vcmp.gt.f32.partialorder %v395, 0.0
    %vm460 = vcmp.gt.f32.partialorder %v396, 0.0
    %vm461 = vcmp.gt.f32.partialorder %v397, 0.0
    %vm462 = vcmp.gt.f32.partialorder %v398, 0.0
    %vm463 = vcmp.gt.f32.partialorder %v399, 0.0
    %vm464 = vcmp.gt.f32.partialorder %v400, 0.0
    %vm465 = vcmp.gt.f32.partialorder %v401, 0.0
    %vm466 = vcmp.gt.f32.partialorder %v402, 0.0
    %vm467 = vcmp.gt.f32.partialorder %v403, 0.0
    %vm468 = vcmp.gt.f32.partialorder %v404, 0.0
    %vm469 = vcmp.gt.f32.partialorder %v405, 0.0
    %vm470 = vcmp.gt.f32.partialorder %v406, 0.0
    %vm471 = vcmp.gt.f32.partialorder %v407, 0.0
    %vm472 = vcmp.gt.f32.partialorder %v408, 0.0
    %vm473 = vcmp.gt.f32.partialorder %v409, 0.0
    %vm474 = vcmp.gt.f32.partialorder %v410, 0.0
    %vm475 = vcmp.gt.f32.partialorder %v411, 0.0
    %vm476 = vcmp.gt.f32.partialorder %v412, 0.0
    %vm477 = vcmp.gt.f32.partialorder %v413, 0.0
    %vm478 = vcmp.gt.f32.partialorder %v414, 0.0
    %vm479 = vcmp.gt.f32.partialorder %v415, 0.0
    %vm480 = vcmp.gt.f32.partialorder %v416, 0.0
    %vm481 = vcmp.gt.f32.partialorder %v417, 0.0
    %v482 = vmul.f32 %v354, 0.1
    %v483 = vmul.f32 %v355, 0.1
    %v484 = vmul.f32 %v356, 0.1
    %v485 = vmul.f32 %v357, 0.1
    %v486 = vmul.f32 %v358, 0.1
    %v487 = vmul.f32 %v359, 0.1
    %v488 = vmul.f32 %v360, 0.1
    %v489 = vmul.f32 %v361, 0.1
    %v490 = vmul.f32 %v362, 0.1
    %v491 = vmul.f32 %v363, 0.1
    %v492 = vmul.f32 %v364, 0.1
    %v493 = vmul.f32 %v365, 0.1
    %v494 = vmul.f32 %v366, 0.1
    %v495 = vmul.f32 %v367, 0.1
    %v496 = vmul.f32 %v368, 0.1
    %v497 = vmul.f32 %v369, 0.1
    %v498 = vmul.f32 %v370, 0.1
    %v499 = vmul.f32 %v371, 0.1
    %v500 = vmul.f32 %v372, 0.1
    %v501 = vmul.f32 %v373, 0.1
    %v502 = vmul.f32 %v374, 0.1
    %v503 = vmul.f32 %v375, 0.1
    %v504 = vmul.f32 %v376, 0.1
    %v505 = vmul.f32 %v377, 0.1
    %v506 = vmul.f32 %v378, 0.1
    %v507 = vmul.f32 %v379, 0.1
    %v508 = vmul.f32 %v380, 0.1
    %v509 = vmul.f32 %v381, 0.1
    %v510 = vmul.f32 %v382, 0.1
    %v511 = vmul.f32 %v383, 0.1
    %v512 = vmul.f32 %v384, 0.1
    %v513 = vmul.f32 %v385, 0.1
    %v514 = vmul.f32 %v386, 0.1
    %v515 = vmul.f32 %v387, 0.1
    %v516 = vmul.f32 %v388, 0.1
    %v517 = vmul.f32 %v389, 0.1
    %v518 = vmul.f32 %v390, 0.1
    %v519 = vmul.f32 %v391, 0.1
    %v520 = vmul.f32 %v392, 0.1
    %v521 = vmul.f32 %v393, 0.1
    %v522 = vmul.f32 %v394, 0.1
    %v523 = vmul.f32 %v395, 0.1
    %v524 = vmul.f32 %v396, 0.1
    %v525 = vmul.f32 %v397, 0.1
    %v526 = vmul.f32 %v398, 0.1
    %v527 = vmul.f32 %v399, 0.1
    %v528 = vmul.f32 %v400, 0.1
    %v529 = vmul.f32 %v401, 0.1
    %v530 = vmul.f32 %v402, 0.1
    %v531 = vmul.f32 %v403, 0.1
    %v532 = vmul.f32 %v404, 0.1
    %v533 = vmul.f32 %v405, 0.1
    %v534 = vmul.f32 %v406, 0.1
    %v535 = vmul.f32 %v407, 0.1
    %v536 = vmul.f32 %v408, 0.1
    %v537 = vmul.f32 %v409, 0.1
    %v538 = vmul.f32 %v410, 0.1
    %v539 = vmul.f32 %v411, 0.1
    %v540 = vmul.f32 %v412, 0.1
    %v541 = vmul.f32 %v413, 0.1
    %v542 = vmul.f32 %v414, 0.1
    %v543 = vmul.f32 %v415, 0.1
    %v544 = vmul.f32 %v416, 0.1
    %v545 = vmul.f32 %v417, 0.1
    %v546 = vsel %vm418, %v354, %v482
    %v547 = vsel %vm419, %v355, %v483
    %v548 = vsel %vm420, %v356, %v484
    %v549 = vsel %vm421, %v357, %v485
    %v550 = vsel %vm422, %v358, %v486
    %v551 = vsel %vm423, %v359, %v487
    %v552 = vsel %vm424, %v360, %v488
    %v553 = vsel %vm425, %v361, %v489
    %v554 = vsel %vm426, %v362, %v490
    %v555 = vsel %vm427, %v363, %v491
    %v556 = vsel %vm428, %v364, %v492
    %v557 = vsel %vm429, %v365, %v493
    %v558 = vsel %vm430, %v366, %v494
    %v559 = vsel %vm431, %v367, %v495
    %v560 = vsel %vm432, %v368, %v496
    %v561 = vsel %vm433, %v369, %v497
    %v562 = vsel %vm434, %v370, %v498
    %v563 = vsel %vm435, %v371, %v499
    %v564 = vsel %vm436, %v372, %v500
    %v565 = vsel %vm437, %v373, %v501
    %v566 = vsel %vm438, %v374, %v502
    %v567 = vsel %vm439, %v375, %v503
    %v568 = vsel %vm440, %v376, %v504
    %v569 = vsel %vm441, %v377, %v505
    %v570 = vsel %vm442, %v378, %v506
    %v571 = vsel %vm443, %v379, %v507
    %v572 = vsel %vm444, %v380, %v508
    %v573 = vsel %vm445, %v381, %v509
    %v574 = vsel %vm446, %v382, %v510
    %v575 = vsel %vm447, %v383, %v511
    %v576 = vsel %vm448, %v384, %v512
    %v577 = vsel %vm449, %v385, %v513
    %v578 = vsel %vm450, %v386, %v514
    %v579 = vsel %vm451, %v387, %v515
    %v580 = vsel %vm452, %v388, %v516
    %v581 = vsel %vm453, %v389, %v517
    %v582 = vsel %vm454, %v390, %v518
    %v583 = vsel %vm455, %v391, %v519
    %v584 = vsel %vm456, %v392, %v520
    %v585 = vsel %vm457, %v393, %v521
    %v586 = vsel %vm458, %v394, %v522
    %v587 = vsel %vm459, %v395, %v523
    %v588 = vsel %vm460, %v396, %v524
    %v589 = vsel %vm461, %v397, %v525
    %v590 = vsel %vm462, %v398, %v526
    %v591 = vsel %vm463, %v399, %v527
    %v592 = vsel %vm464, %v400, %v528
    %v593 = vsel %vm465, %v401, %v529
    %v594 = vsel %vm466, %v402, %v530
    %v595 = vsel %vm467, %v403, %v531
    %v596 = vsel %vm468, %v404, %v532
    %v597 = vsel %vm469, %v405, %v533
    %v598 = vsel %vm470, %v406, %v534
    %v599 = vsel %vm471, %v407, %v535
    %v600 = vsel %vm472, %v408, %v536
    %v601 = vsel %vm473, %v409, %v537
    %v602 = vsel %vm474, %v410, %v538
    %v603 = vsel %vm475, %v411, %v539
    %v604 = vsel %vm476, %v412, %v540
    %v605 = vsel %vm477, %v413, %v541
    %v606 = vsel %vm478, %v414, %v542
    %v607 = vsel %vm479, %v415, %v543
    %v608 = vsel %vm480, %v416, %v544
    %v609 = vsel %vm481, %v417, %v545
    %s610 = scalar_lea.vmem [#allocation2], 24
    %vm611 = vcmask 31744
    %612 = vst.msk [vmem:[%s610 + $0x1] sm:$0xff] %vm611, %v546
    %613 = vst.msk [vmem:[%s610 + $0x9] sm:$0xff] %vm611, %v547
    %614 = vst.msk [vmem:[%s610 + $0x19] sm:$0xff] %vm611, %v548
    %615 = vst.msk [vmem:[%s610 + $0x21] sm:$0xff] %vm611, %v549
    %616 = vst.msk [vmem:[%s610 + $0x31] sm:$0xff] %vm611, %v550
    %617 = vst.msk [vmem:[%s610 + $0x39] sm:$0xff] %vm611, %v551
    %618 = vst.msk [vmem:[%s610 + $0x49] sm:$0xff] %vm611, %v552
    %619 = vst.msk [vmem:[%s610 + $0x51] sm:$0xff] %vm611, %v553
    %620 = vst.msk [vmem:[%s610 + $0x61] sm:$0xff] %vm611, %v554
    %621 = vst.msk [vmem:[%s610 + $0x69] sm:$0xff] %vm611, %v555
    %622 = vst.msk [vmem:[%s610 + $0x79] sm:$0xff] %vm611, %v556
    %623 = vst.msk [vmem:[%s610 + $0x81] sm:$0xff] %vm611, %v557
    %624 = vst.msk [vmem:[%s610 + $0x91] sm:$0xff] %vm611, %v558
    %625 = vst.msk [vmem:[%s610 + $0x99] sm:$0xff] %vm611, %v559
    %626 = vst.msk [vmem:[%s610 + $0xa9] sm:$0xff] %vm611, %v560
    %627 = vst.msk [vmem:[%s610 + $0xb1] sm:$0xff] %vm611, %v561
    %628 = vst.msk [vmem:[%s610 + $0xc1] sm:$0xff] %vm611, %v562
    %629 = vst.msk [vmem:[%s610 + $0xc9] sm:$0xff] %vm611, %v563
    %630 = vst.msk [vmem:[%s610 + $0xd9] sm:$0xff] %vm611, %v564
    %631 = vst.msk [vmem:[%s610 + $0xe1] sm:$0xff] %vm611, %v565
    %632 = vst.msk [vmem:[%s610 + $0xf1] sm:$0xff] %vm611, %v566
    %633 = vst.msk [vmem:[%s610 + $0xf9] sm:$0xff] %vm611, %v567
    %634 = vst.msk [vmem:[%s610 + $0x109] sm:$0xff] %vm611, %v568
    %635 = vst.msk [vmem:[%s610 + $0x111] sm:$0xff] %vm611, %v569
    %636 = vst.msk [vmem:[%s610 + $0x121] sm:$0xff] %vm611, %v570
    %637 = vst.msk [vmem:[%s610 + $0x129] sm:$0xff] %vm611, %v571
    %638 = vst.msk [vmem:[%s610 + $0x139] sm:$0xff] %vm611, %v572
    %639 = vst.msk [vmem:[%s610 + $0x141] sm:$0xff] %vm611, %v573
    %640 = vst.msk [vmem:[%s610 + $0x151] sm:$0xff] %vm611, %v574
    %641 = vst.msk [vmem:[%s610 + $0x159] sm:$0xff] %vm611, %v575
    %642 = vst.msk [vmem:[%s610 + $0x169] sm:$0xff] %vm611, %v576
    %643 = vst.msk [vmem:[%s610 + $0x171] sm:$0xff] %vm611, %v577
    %644 = vst.msk [vmem:[%s610 + $0x1b1] sm:$0xff] %vm611, %v578
    %645 = vst.msk [vmem:[%s610 + $0x1b9] sm:$0xff] %vm611, %v579
    %646 = vst.msk [vmem:[%s610 + $0x1c9] sm:$0xff] %vm611, %v580
    %647 = vst.msk [vmem:[%s610 + $0x1d1] sm:$0xff] %vm611, %v581
    %648 = vst.msk [vmem:[%s610 + $0x1e1] sm:$0xff] %vm611, %v582
    %649 = vst.msk [vmem:[%s610 + $0x1e9] sm:$0xff] %vm611, %v583
    %650 = vst.msk [vmem:[%s610 + $0x1f9] sm:$0xff] %vm611, %v584
    %651 = vst.msk [vmem:[%s610 + $0x201] sm:$0xff] %vm611, %v585
    %652 = vst.msk [vmem:[%s610 + $0x211] sm:$0xff] %vm611, %v586
    %653 = vst.msk [vmem:[%s610 + $0x219] sm:$0xff] %vm611, %v587
    %654 = vst.msk [vmem:[%s610 + $0x229] sm:$0xff] %vm611, %v588
    %655 = vst.msk [vmem:[%s610 + $0x231] sm:$0xff] %vm611, %v589
    %656 = vst.msk [vmem:[%s610 + $0x241] sm:$0xff] %vm611, %v590
    %657 = vst.msk [vmem:[%s610 + $0x249] sm:$0xff] %vm611, %v591
    %658 = vst.msk [vmem:[%s610 + $0x259] sm:$0xff] %vm611, %v592
    %659 = vst.msk [vmem:[%s610 + $0x261] sm:$0xff] %vm611, %v593
    %660 = vst.msk [vmem:[%s610 + $0x271] sm:$0xff] %vm611, %v594
    %661 = vst.msk [vmem:[%s610 + $0x279] sm:$0xff] %vm611, %v595
    %662 = vst.msk [vmem:[%s610 + $0x289] sm:$0xff] %vm611, %v596
    %663 = vst.msk [vmem:[%s610 + $0x291] sm:$0xff] %vm611, %v597
    %664 = vst.msk [vmem:[%s610 + $0x2a1] sm:$0xff] %vm611, %v598
    %665 = vst.msk [vmem:[%s610 + $0x2a9] sm:$0xff] %vm611, %v599
    %666 = vst.msk [vmem:[%s610 + $0x2b9] sm:$0xff] %vm611, %v600
    %667 = vst.msk [vmem:[%s610 + $0x2c1] sm:$0xff] %vm611, %v601
    %668 = vst.msk [vmem:[%s610 + $0x2d1] sm:$0xff] %vm611, %v602
    %669 = vst.msk [vmem:[%s610 + $0x2d9] sm:$0xff] %vm611, %v603
    %670 = vst.msk [vmem:[%s610 + $0x2e9] sm:$0xff] %vm611, %v604
    %671 = vst.msk [vmem:[%s610 + $0x2f1] sm:$0xff] %vm611, %v605
    %672 = vst.msk [vmem:[%s610 + $0x301] sm:$0xff] %vm611, %v606
    %673 = vst.msk [vmem:[%s610 + $0x309] sm:$0xff] %vm611, %v607
    %674 = vst.msk [vmem:[%s610 + $0x319] sm:$0xff] %vm611, %v608
    %675 = vst.msk [vmem:[%s610 + $0x321] sm:$0xff] %vm611, %v609
    %v676 = vld [vmem:[#allocation2] ss:$2 sm:$0xff]
    %s677 = scalar_lea.vmem [#allocation2], 48
    %v678 = vld [vmem:[%s677] ss:$2 sm:$0xff]
    %s679 = scalar_lea.vmem [#allocation2], 96
    %v680 = vld [vmem:[%s679] ss:$2 sm:$0xff]
    %s681 = scalar_lea.vmem [#allocation2], 144
    %v682 = vld [vmem:[%s681] ss:$2 sm:$0xff]
    %s683 = scalar_lea.vmem [#allocation2], 192
    %v684 = vld [vmem:[%s683] ss:$2 sm:$0xff]
    %s685 = scalar_lea.vmem [#allocation2], 240
    %v686 = vld [vmem:[%s685] ss:$2 sm:$0xff]
    %s687 = scalar_lea.vmem [#allocation2], 288
    %v688 = vld [vmem:[%s687] ss:$2 sm:$0xff]
    %s689 = scalar_lea.vmem [#allocation2], 336
    %v690 = vld [vmem:[%s689] ss:$2 sm:$0xff]
    %s691 = scalar_lea.vmem [#allocation2], 432
    %v692 = vld [vmem:[%s691] ss:$2 sm:$0xff]
    %s693 = scalar_lea.vmem [#allocation2], 480
    %v694 = vld [vmem:[%s693] ss:$2 sm:$0xff]
    %s695 = scalar_lea.vmem [#allocation2], 528
    %v696 = vld [vmem:[%s695] ss:$2 sm:$0xff]
    %s697 = scalar_lea.vmem [#allocation2], 576
    %v698 = vld [vmem:[%s697] ss:$2 sm:$0xff]
    %s699 = scalar_lea.vmem [#allocation2], 624
    %v700 = vld [vmem:[%s699] ss:$2 sm:$0xff]
    %s701 = scalar_lea.vmem [#allocation2], 672
    %v702 = vld [vmem:[%s701] ss:$2 sm:$0xff]
    %s703 = scalar_lea.vmem [#allocation2], 720
    %v704 = vld [vmem:[%s703] ss:$2 sm:$0xff]
    %s705 = scalar_lea.vmem [#allocation2], 768
    %v706 = vld [vmem:[%s705] ss:$2 sm:$0xff]
    %707 = vst.msk [vmem:[#allocation3] sm:$0xff] %vm611, %v676
    %708 = vst.msk [vmem:[#allocation3 + $0x8] sm:$0xff] %vm611, %v678
    %709 = vst.msk [vmem:[#allocation3 + $0x10] sm:$0xff] %vm611, %v680
    %710 = vst.msk [vmem:[#allocation3 + $0x18] sm:$0xff] %vm611, %v682
    %711 = vst.msk [vmem:[#allocation3 + $0x20] sm:$0xff] %vm611, %v684
    %712 = vst.msk [vmem:[#allocation3 + $0x28] sm:$0xff] %vm611, %v686
    %713 = vst.msk [vmem:[#allocation3 + $0x30] sm:$0xff] %vm611, %v688
    %714 = vst.msk [vmem:[#allocation3 + $0x38] sm:$0xff] %vm611, %v690
    %715 = vst.msk [vmem:[#allocation3 + $0x40] sm:$0xff] %vm611, %v692
    %716 = vst.msk [vmem:[#allocation3 + $0x48] sm:$0xff] %vm611, %v694
    %717 = vst.msk [vmem:[#allocation3 + $0x50] sm:$0xff] %vm611, %v696
    %718 = vst.msk [vmem:[#allocation3 + $0x58] sm:$0xff] %vm611, %v698
    %719 = vst.msk [vmem:[#allocation3 + $0x60] sm:$0xff] %vm611, %v700
    %720 = vst.msk [vmem:[#allocation3 + $0x68] sm:$0xff] %vm611, %v702
    %721 = vst.msk [vmem:[#allocation3 + $0x70] sm:$0xff] %vm611, %v704
    %722 = vst.msk [vmem:[#allocation3 + $0x78] sm:$0xff] %vm611, %v706
    %s723 = scalar_lea.vmem [#allocation2], 1
    %v724 = vld [vmem:[%s723] ss:$2 sm:$0xff]
    %s725 = scalar_lea.vmem [#allocation2], 49
    %v726 = vld [vmem:[%s725] ss:$2 sm:$0xff]
    %s727 = scalar_lea.vmem [#allocation2], 97
    %v728 = vld [vmem:[%s727] ss:$2 sm:$0xff]
    %s729 = scalar_lea.vmem [#allocation2], 145
    %v730 = vld [vmem:[%s729] ss:$2 sm:$0xff]
    %s731 = scalar_lea.vmem [#allocation2], 193
    %v732 = vld [vmem:[%s731] ss:$2 sm:$0xff]
    %s733 = scalar_lea.vmem [#allocation2], 241
    %v734 = vld [vmem:[%s733] ss:$2 sm:$0xff]
    %s735 = scalar_lea.vmem [#allocation2], 289
    %v736 = vld [vmem:[%s735] ss:$2 sm:$0xff]
    %s737 = scalar_lea.vmem [#allocation2], 337
    %v738 = vld [vmem:[%s737] ss:$2 sm:$0xff]
    %s739 = scalar_lea.vmem [#allocation2], 433
    %v740 = vld [vmem:[%s739] ss:$2 sm:$0xff]
    %s741 = scalar_lea.vmem [#allocation2], 481
    %v742 = vld [vmem:[%s741] ss:$2 sm:$0xff]
    %s743 = scalar_lea.vmem [#allocation2], 529
    %v744 = vld [vmem:[%s743] ss:$2 sm:$0xff]
    %s745 = scalar_lea.vmem [#allocation2], 577
    %v746 = vld [vmem:[%s745] ss:$2 sm:$0xff]
    %s747 = scalar_lea.vmem [#allocation2], 625
    %v748 = vld [vmem:[%s747] ss:$2 sm:$0xff]
    %s749 = scalar_lea.vmem [#allocation2], 673
    %v750 = vld [vmem:[%s749] ss:$2 sm:$0xff]
    %s751 = scalar_lea.vmem [#allocation2], 721
    %v752 = vld [vmem:[%s751] ss:$2 sm:$0xff]
    %s753 = scalar_lea.vmem [#allocation2], 769
    %v754 = vld [vmem:[%s753] ss:$2 sm:$0xff]
    %771 = vrot.lane.b32.xlu0 %v724, 4
    %v772 = vpop.permute.xlu0 %771
    %773 = vrot.lane.b32.xlu0 %v726, 4
    %v774 = vpop.permute.xlu0 %773
    %775 = vrot.lane.b32.xlu0 %v728, 4
    %v776 = vpop.permute.xlu0 %775
    %777 = vrot.lane.b32.xlu0 %v730, 4
    %v778 = vpop.permute.xlu0 %777
    %779 = vrot.lane.b32.xlu0 %v732, 4
    %v780 = vpop.permute.xlu0 %779
    %781 = vrot.lane.b32.xlu0 %v734, 4
    %v782 = vpop.permute.xlu0 %781
    %783 = vrot.lane.b32.xlu0 %v736, 4
    %v784 = vpop.permute.xlu0 %783
    %785 = vrot.lane.b32.xlu0 %v738, 4
    %v786 = vpop.permute.xlu0 %785
    %787 = vrot.lane.b32.xlu0 %v740, 4
    %v788 = vpop.permute.xlu0 %787
    %789 = vrot.lane.b32.xlu0 %v742, 4
    %v790 = vpop.permute.xlu0 %789
    %791 = vrot.lane.b32.xlu0 %v744, 4
    %v792 = vpop.permute.xlu0 %791
    %793 = vrot.lane.b32.xlu0 %v746, 4
    %v794 = vpop.permute.xlu0 %793
    %795 = vrot.lane.b32.xlu0 %v748, 4
    %v796 = vpop.permute.xlu0 %795
    %797 = vrot.lane.b32.xlu0 %v750, 4
    %v798 = vpop.permute.xlu0 %797
    %799 = vrot.lane.b32.xlu0 %v752, 4
    %v800 = vpop.permute.xlu0 %799
    %801 = vrot.lane.b32.xlu0 %v754, 4
    %v802 = vpop.permute.xlu0 %801
    %vm819 = vcmask 64544
    %820 = vst.msk [vmem:[#allocation3] sm:$0xff] %vm819, %v772
    %821 = vst.msk [vmem:[#allocation3 + $0x8] sm:$0xff] %vm819, %v774
    %822 = vst.msk [vmem:[#allocation3 + $0x10] sm:$0xff] %vm819, %v776
    %823 = vst.msk [vmem:[#allocation3 + $0x18] sm:$0xff] %vm819, %v778
    %824 = vst.msk [vmem:[#allocation3 + $0x20] sm:$0xff] %vm819, %v780
    %825 = vst.msk [vmem:[#allocation3 + $0x28] sm:$0xff] %vm819, %v782
    %826 = vst.msk [vmem:[#allocation3 + $0x30] sm:$0xff] %vm819, %v784
    %827 = vst.msk [vmem:[#allocation3 + $0x38] sm:$0xff] %vm819, %v786
    %828 = vst.msk [vmem:[#allocation3 + $0x40] sm:$0xff] %vm819, %v788
    %829 = vst.msk [vmem:[#allocation3 + $0x48] sm:$0xff] %vm819, %v790
    %830 = vst.msk [vmem:[#allocation3 + $0x50] sm:$0xff] %vm819, %v792
    %831 = vst.msk [vmem:[#allocation3 + $0x58] sm:$0xff] %vm819, %v794
    %832 = vst.msk [vmem:[#allocation3 + $0x60] sm:$0xff] %vm819, %v796
    %833 = vst.msk [vmem:[#allocation3 + $0x68] sm:$0xff] %vm819, %v798
    %834 = vst.msk [vmem:[#allocation3 + $0x70] sm:$0xff] %vm819, %v800
    %835 = vst.msk [vmem:[#allocation3 + $0x78] sm:$0xff] %vm819, %v802
    %s836 = scalar_lea.vmem [#allocation2], 2
    %v837 = vld [vmem:[%s836] ss:$2 sm:$0xff]
    %s838 = scalar_lea.vmem [#allocation2], 50
    %v839 = vld [vmem:[%s838] ss:$2 sm:$0xff]
    %s840 = scalar_lea.vmem [#allocation2], 98
    %v841 = vld [vmem:[%s840] ss:$2 sm:$0xff]
    %s842 = scalar_lea.vmem [#allocation2], 146
    %v843 = vld [vmem:[%s842] ss:$2 sm:$0xff]
    %s844 = scalar_lea.vmem [#allocation2], 194
    %v845 = vld [vmem:[%s844] ss:$2 sm:$0xff]
    %s846 = scalar_lea.vmem [#allocation2], 242
    %v847 = vld [vmem:[%s846] ss:$2 sm:$0xff]
    %s848 = scalar_lea.vmem [#allocation2], 290
    %v849 = vld [vmem:[%s848] ss:$2 sm:$0xff]
    %s850 = scalar_lea.vmem [#allocation2], 338
    %v851 = vld [vmem:[%s850] ss:$2 sm:$0xff]
    %s852 = scalar_lea.vmem [#allocation2], 434
    %v853 = vld [vmem:[%s852] ss:$2 sm:$0xff]
    %s854 = scalar_lea.vmem [#allocation2], 482
    %v855 = vld [vmem:[%s854] ss:$2 sm:$0xff]
    %s856 = scalar_lea.vmem [#allocation2], 530
    %v857 = vld [vmem:[%s856] ss:$2 sm:$0xff]
    %s858 = scalar_lea.vmem [#allocation2], 578
    %v859 = vld [vmem:[%s858] ss:$2 sm:$0xff]
    %s860 = scalar_lea.vmem [#allocation2], 626
    %v861 = vld [vmem:[%s860] ss:$2 sm:$0xff]
    %s862 = scalar_lea.vmem [#allocation2], 674
    %v863 = vld [vmem:[%s862] ss:$2 sm:$0xff]
    %s864 = scalar_lea.vmem [#allocation2], 722
    %v865 = vld [vmem:[%s864] ss:$2 sm:$0xff]
    %s866 = scalar_lea.vmem [#allocation2], 770
    %v867 = vld [vmem:[%s866] ss:$2 sm:$0xff]
    %884 = vrot.lane.b32.xlu0 %v837, 8
    %v885 = vpop.permute.xlu0 %884
    %886 = vrot.lane.b32.xlu0 %v839, 8
    %v887 = vpop.permute.xlu0 %886
    %888 = vrot.lane.b32.xlu0 %v841, 8
    %v889 = vpop.permute.xlu0 %888
    %890 = vrot.lane.b32.xlu0 %v843, 8
    %v891 = vpop.permute.xlu0 %890
    %892 = vrot.lane.b32.xlu0 %v845, 8
    %v893 = vpop.permute.xlu0 %892
    %894 = vrot.lane.b32.xlu0 %v847, 8
    %v895 = vpop.permute.xlu0 %894
    %896 = vrot.lane.b32.xlu0 %v849, 8
    %v897 = vpop.permute.xlu0 %896
    %898 = vrot.lane.b32.xlu0 %v851, 8
    %v899 = vpop.permute.xlu0 %898
    %900 = vrot.lane.b32.xlu0 %v853, 8
    %v901 = vpop.permute.xlu0 %900
    %902 = vrot.lane.b32.xlu0 %v855, 8
    %v903 = vpop.permute.xlu0 %902
    %904 = vrot.lane.b32.xlu0 %v857, 8
    %v905 = vpop.permute.xlu0 %904
    %906 = vrot.lane.b32.xlu0 %v859, 8
    %v907 = vpop.permute.xlu0 %906
    %908 = vrot.lane.b32.xlu0 %v861, 8
    %v909 = vpop.permute.xlu0 %908
    %910 = vrot.lane.b32.xlu0 %v863, 8
    %v911 = vpop.permute.xlu0 %910
    %912 = vrot.lane.b32.xlu0 %v865, 8
    %v913 = vpop.permute.xlu0 %912
    %914 = vrot.lane.b32.xlu0 %v867, 8
    %v915 = vpop.permute.xlu0 %914
    %vm932 = vcmask 97344
    %933 = vst.msk [vmem:[#allocation3] sm:$0xff] %vm932, %v885
    %934 = vst.msk [vmem:[#allocation3 + $0x8] sm:$0xff] %vm932, %v887
    %935 = vst.msk [vmem:[#allocation3 + $0x10] sm:$0xff] %vm932, %v889
    %936 = vst.msk [vmem:[#allocation3 + $0x18] sm:$0xff] %vm932, %v891
    %937 = vst.msk [vmem:[#allocation3 + $0x20] sm:$0xff] %vm932, %v893
    %938 = vst.msk [vmem:[#allocation3 + $0x28] sm:$0xff] %vm932, %v895
    %939 = vst.msk [vmem:[#allocation3 + $0x30] sm:$0xff] %vm932, %v897
    %940 = vst.msk [vmem:[#allocation3 + $0x38] sm:$0xff] %vm932, %v899
    %941 = vst.msk [vmem:[#allocation3 + $0x40] sm:$0xff] %vm932, %v901
    %942 = vst.msk [vmem:[#allocation3 + $0x48] sm:$0xff] %vm932, %v903
    %943 = vst.msk [vmem:[#allocation3 + $0x50] sm:$0xff] %vm932, %v905
    %944 = vst.msk [vmem:[#allocation3 + $0x58] sm:$0xff] %vm932, %v907
    %945 = vst.msk [vmem:[#allocation3 + $0x60] sm:$0xff] %vm932, %v909
    %946 = vst.msk [vmem:[#allocation3 + $0x68] sm:$0xff] %vm932, %v911
    %947 = vst.msk [vmem:[#allocation3 + $0x70] sm:$0xff] %vm932, %v913
    %948 = vst.msk [vmem:[#allocation3 + $0x78] sm:$0xff] %vm932, %v915
    %v949 = vld [vmem:[%s610] ss:$2 sm:$0xff]
    %s950 = scalar_lea.vmem %s610, 48 [#allocation2]
    %v951 = vld [vmem:[%s950] ss:$2 sm:$0xff]
    %s952 = scalar_lea.vmem %s610, 96 [#allocation2]
    %v953 = vld [vmem:[%s952] ss:$2 sm:$0xff]
    %s954 = scalar_lea.vmem %s610, 144 [#allocation2]
    %v955 = vld [vmem:[%s954] ss:$2 sm:$0xff]
    %s956 = scalar_lea.vmem %s610, 192 [#allocation2]
    %v957 = vld [vmem:[%s956] ss:$2 sm:$0xff]
    %s958 = scalar_lea.vmem %s610, 240 [#allocation2]
    %v959 = vld [vmem:[%s958] ss:$2 sm:$0xff]
    %s960 = scalar_lea.vmem %s610, 288 [#allocation2]
    %v961 = vld [vmem:[%s960] ss:$2 sm:$0xff]
    %s962 = scalar_lea.vmem %s610, 336 [#allocation2]
    %v963 = vld [vmem:[%s962] ss:$2 sm:$0xff]
    %s964 = scalar_lea.vmem %s610, 432 [#allocation2]
    %v965 = vld [vmem:[%s964] ss:$2 sm:$0xff]
    %s966 = scalar_lea.vmem %s610, 480 [#allocation2]
    %v967 = vld [vmem:[%s966] ss:$2 sm:$0xff]
    %s968 = scalar_lea.vmem %s610, 528 [#allocation2]
    %v969 = vld [vmem:[%s968] ss:$2 sm:$0xff]
    %s970 = scalar_lea.vmem %s610, 576 [#allocation2]
    %v971 = vld [vmem:[%s970] ss:$2 sm:$0xff]
    %s972 = scalar_lea.vmem %s610, 624 [#allocation2]
    %v973 = vld [vmem:[%s972] ss:$2 sm:$0xff]
    %s974 = scalar_lea.vmem %s610, 672 [#allocation2]
    %v975 = vld [vmem:[%s974] ss:$2 sm:$0xff]
    %s976 = scalar_lea.vmem %s610, 720 [#allocation2]
    %v977 = vld [vmem:[%s976] ss:$2 sm:$0xff]
    %s978 = scalar_lea.vmem %s610, 768 [#allocation2]
    %v979 = vld [vmem:[%s978] ss:$2 sm:$0xff]
    %996 = vrot.lane.b32.xlu0 %v949, 12
    %v997 = vpop.permute.xlu0 %996
    %998 = vrot.lane.b32.xlu0 %v951, 12
    %v999 = vpop.permute.xlu0 %998
    %1000 = vrot.lane.b32.xlu0 %v953, 12
    %v1001 = vpop.permute.xlu0 %1000
    %1002 = vrot.lane.b32.xlu0 %v955, 12
    %v1003 = vpop.permute.xlu0 %1002
    %1004 = vrot.lane.b32.xlu0 %v957, 12
    %v1005 = vpop.permute.xlu0 %1004
    %1006 = vrot.lane.b32.xlu0 %v959, 12
    %v1007 = vpop.permute.xlu0 %1006
    %1008 = vrot.lane.b32.xlu0 %v961, 12
    %v1009 = vpop.permute.xlu0 %1008
    %1010 = vrot.lane.b32.xlu0 %v963, 12
    %v1011 = vpop.permute.xlu0 %1010
    %1012 = vrot.lane.b32.xlu0 %v965, 12
    %v1013 = vpop.permute.xlu0 %1012
    %1014 = vrot.lane.b32.xlu0 %v967, 12
    %v1015 = vpop.permute.xlu0 %1014
    %1016 = vrot.lane.b32.xlu0 %v969, 12
    %v1017 = vpop.permute.xlu0 %1016
    %1018 = vrot.lane.b32.xlu0 %v971, 12
    %v1019 = vpop.permute.xlu0 %1018
    %1020 = vrot.lane.b32.xlu0 %v973, 12
    %v1021 = vpop.permute.xlu0 %1020
    %1022 = vrot.lane.b32.xlu0 %v975, 12
    %v1023 = vpop.permute.xlu0 %1022
    %1024 = vrot.lane.b32.xlu0 %v977, 12
    %v1025 = vpop.permute.xlu0 %1024
    %1026 = vrot.lane.b32.xlu0 %v979, 12
    %v1027 = vpop.permute.xlu0 %1026
    %vm1044 = vcmask 130144
    %1045 = vst.msk [vmem:[#allocation3] sm:$0xff] %vm1044, %v997
    %1046 = vst.msk [vmem:[#allocation3 + $0x8] sm:$0xff] %vm1044, %v999
    %1047 = vst.msk [vmem:[#allocation3 + $0x10] sm:$0xff] %vm1044, %v1001
    %1048 = vst.msk [vmem:[#allocation3 + $0x18] sm:$0xff] %vm1044, %v1003
    %1049 = vst.msk [vmem:[#allocation3 + $0x20] sm:$0xff] %vm1044, %v1005
    %1050 = vst.msk [vmem:[#allocation3 + $0x28] sm:$0xff] %vm1044, %v1007
    %1051 = vst.msk [vmem:[#allocation3 + $0x30] sm:$0xff] %vm1044, %v1009
    %1052 = vst.msk [vmem:[#allocation3 + $0x38] sm:$0xff] %vm1044, %v1011
    %1053 = vst.msk [vmem:[#allocation3 + $0x40] sm:$0xff] %vm1044, %v1013
    %1054 = vst.msk [vmem:[#allocation3 + $0x48] sm:$0xff] %vm1044, %v1015
    %1055 = vst.msk [vmem:[#allocation3 + $0x50] sm:$0xff] %vm1044, %v1017
    %1056 = vst.msk [vmem:[#allocation3 + $0x58] sm:$0xff] %vm1044, %v1019
    %1057 = vst.msk [vmem:[#allocation3 + $0x60] sm:$0xff] %vm1044, %v1021
    %1058 = vst.msk [vmem:[#allocation3 + $0x68] sm:$0xff] %vm1044, %v1023
    %1059 = vst.msk [vmem:[#allocation3 + $0x70] sm:$0xff] %vm1044, %v1025
    %1060 = vst.msk [vmem:[#allocation3 + $0x78] sm:$0xff] %vm1044, %v1027
    %s1061 = scalar_lea.vmem %s610, 1 [#allocation2]
    %v1062 = vld [vmem:[%s1061] ss:$2 sm:$0xff]
    %s1063 = scalar_lea.vmem %s610, 49 [#allocation2]
    %v1064 = vld [vmem:[%s1063] ss:$2 sm:$0xff]
    %s1065 = scalar_lea.vmem %s610, 97 [#allocation2]
    %v1066 = vld [vmem:[%s1065] ss:$2 sm:$0xff]
    %s1067 = scalar_lea.vmem %s610, 145 [#allocation2]
    %v1068 = vld [vmem:[%s1067] ss:$2 sm:$0xff]
    %s1069 = scalar_lea.vmem %s610, 193 [#allocation2]
    %v1070 = vld [vmem:[%s1069] ss:$2 sm:$0xff]
    %s1071 = scalar_lea.vmem %s610, 241 [#allocation2]
    %v1072 = vld [vmem:[%s1071] ss:$2 sm:$0xff]
    %s1073 = scalar_lea.vmem %s610, 289 [#allocation2]
    %v1074 = vld [vmem:[%s1073] ss:$2 sm:$0xff]
    %s1075 = scalar_lea.vmem %s610, 337 [#allocation2]
    %v1076 = vld [vmem:[%s1075] ss:$2 sm:$0xff]
    %s1077 = scalar_lea.vmem %s610, 433 [#allocation2]
    %v1078 = vld [vmem:[%s1077] ss:$2 sm:$0xff]
    %s1079 = scalar_lea.vmem %s610, 481 [#allocation2]
    %v1080 = vld [vmem:[%s1079] ss:$2 sm:$0xff]
    %s1081 = scalar_lea.vmem %s610, 529 [#allocation2]
    %v1082 = vld [vmem:[%s1081] ss:$2 sm:$0xff]
    %s1083 = scalar_lea.vmem %s610, 577 [#allocation2]
    %v1084 = vld [vmem:[%s1083] ss:$2 sm:$0xff]
    %s1085 = scalar_lea.vmem %s610, 625 [#allocation2]
    %v1086 = vld [vmem:[%s1085] ss:$2 sm:$0xff]
    %s1087 = scalar_lea.vmem %s610, 673 [#allocation2]
    %v1088 = vld [vmem:[%s1087] ss:$2 sm:$0xff]
    %s1089 = scalar_lea.vmem %s610, 721 [#allocation2]
    %v1090 = vld [vmem:[%s1089] ss:$2 sm:$0xff]
    %s1091 = scalar_lea.vmem %s610, 769 [#allocation2]
    %v1092 = vld [vmem:[%s1091] ss:$2 sm:$0xff]
    %1109 = vrot.lane.b32.xlu0 %v1062, 16
    %v1110 = vpop.permute.xlu0 %1109
    %1111 = vrot.lane.b32.xlu0 %v1064, 16
    %v1112 = vpop.permute.xlu0 %1111
    %1113 = vrot.lane.b32.xlu0 %v1066, 16
    %v1114 = vpop.permute.xlu0 %1113
    %1115 = vrot.lane.b32.xlu0 %v1068, 16
    %v1116 = vpop.permute.xlu0 %1115
    %1117 = vrot.lane.b32.xlu0 %v1070, 16
    %v1118 = vpop.permute.xlu0 %1117
    %1119 = vrot.lane.b32.xlu0 %v1072, 16
    %v1120 = vpop.permute.xlu0 %1119
    %1121 = vrot.lane.b32.xlu0 %v1074, 16
    %v1122 = vpop.permute.xlu0 %1121
    %1123 = vrot.lane.b32.xlu0 %v1076, 16
    %v1124 = vpop.permute.xlu0 %1123
    %1125 = vrot.lane.b32.xlu0 %v1078, 16
    %v1126 = vpop.permute.xlu0 %1125
    %1127 = vrot.lane.b32.xlu0 %v1080, 16
    %v1128 = vpop.permute.xlu0 %1127
    %1129 = vrot.lane.b32.xlu0 %v1082, 16
    %v1130 = vpop.permute.xlu0 %1129
    %1131 = vrot.lane.b32.xlu0 %v1084, 16
    %v1132 = vpop.permute.xlu0 %1131
    %1133 = vrot.lane.b32.xlu0 %v1086, 16
    %v1134 = vpop.permute.xlu0 %1133
    %1135 = vrot.lane.b32.xlu0 %v1088, 16
    %v1136 = vpop.permute.xlu0 %1135
    %1137 = vrot.lane.b32.xlu0 %v1090, 16
    %v1138 = vpop.permute.xlu0 %1137
    %1139 = vrot.lane.b32.xlu0 %v1092, 16
    %v1140 = vpop.permute.xlu0 %1139
    %vm1157 = vcmask 162944
    %1158 = vst.msk [vmem:[#allocation3] sm:$0xff] %vm1157, %v1110
    %1159 = vst.msk [vmem:[#allocation3 + $0x8] sm:$0xff] %vm1157, %v1112
    %1160 = vst.msk [vmem:[#allocation3 + $0x10] sm:$0xff] %vm1157, %v1114
    %1161 = vst.msk [vmem:[#allocation3 + $0x18] sm:$0xff] %vm1157, %v1116
    %1162 = vst.msk [vmem:[#allocation3 + $0x20] sm:$0xff] %vm1157, %v1118
    %1163 = vst.msk [vmem:[#allocation3 + $0x28] sm:$0xff] %vm1157, %v1120
    %1164 = vst.msk [vmem:[#allocation3 + $0x30] sm:$0xff] %vm1157, %v1122
    %1165 = vst.msk [vmem:[#allocation3 + $0x38] sm:$0xff] %vm1157, %v1124
    %1166 = vst.msk [vmem:[#allocation3 + $0x40] sm:$0xff] %vm1157, %v1126
    %1167 = vst.msk [vmem:[#allocation3 + $0x48] sm:$0xff] %vm1157, %v1128
    %1168 = vst.msk [vmem:[#allocation3 + $0x50] sm:$0xff] %vm1157, %v1130
    %1169 = vst.msk [vmem:[#allocation3 + $0x58] sm:$0xff] %vm1157, %v1132
    %1170 = vst.msk [vmem:[#allocation3 + $0x60] sm:$0xff] %vm1157, %v1134
    %1171 = vst.msk [vmem:[#allocation3 + $0x68] sm:$0xff] %vm1157, %v1136
    %1172 = vst.msk [vmem:[#allocation3 + $0x70] sm:$0xff] %vm1157, %v1138
    %1173 = vst.msk [vmem:[#allocation3 + $0x78] sm:$0xff] %vm1157, %v1140
    %s1174 = scalar_lea.vmem %s610, 2 [#allocation2]
    %v1175 = vld [vmem:[%s1174] ss:$2 sm:$0xff]
    %s1176 = scalar_lea.vmem %s610, 50 [#allocation2]
    %v1177 = vld [vmem:[%s1176] ss:$2 sm:$0xff]
    %s1178 = scalar_lea.vmem %s610, 98 [#allocation2]
    %v1179 = vld [vmem:[%s1178] ss:$2 sm:$0xff]
    %s1180 = scalar_lea.vmem %s610, 146 [#allocation2]
    %v1181 = vld [vmem:[%s1180] ss:$2 sm:$0xff]
    %s1182 = scalar_lea.vmem %s610, 194 [#allocation2]
    %v1183 = vld [vmem:[%s1182] ss:$2 sm:$0xff]
    %s1184 = scalar_lea.vmem %s610, 242 [#allocation2]
    %v1185 = vld [vmem:[%s1184] ss:$2 sm:$0xff]
    %s1186 = scalar_lea.vmem %s610, 290 [#allocation2]
    %v1187 = vld [vmem:[%s1186] ss:$2 sm:$0xff]
    %s1188 = scalar_lea.vmem %s610, 338 [#allocation2]
    %v1189 = vld [vmem:[%s1188] ss:$2 sm:$0xff]
    %s1190 = scalar_lea.vmem %s610, 434 [#allocation2]
    %v1191 = vld [vmem:[%s1190] ss:$2 sm:$0xff]
    %s1192 = scalar_lea.vmem %s610, 482 [#allocation2]
    %v1193 = vld [vmem:[%s1192] ss:$2 sm:$0xff]
    %s1194 = scalar_lea.vmem %s610, 530 [#allocation2]
    %v1195 = vld [vmem:[%s1194] ss:$2 sm:$0xff]
    %s1196 = scalar_lea.vmem %s610, 578 [#allocation2]
    %v1197 = vld [vmem:[%s1196] ss:$2 sm:$0xff]
    %s1198 = scalar_lea.vmem %s610, 626 [#allocation2]
    %v1199 = vld [vmem:[%s1198] ss:$2 sm:$0xff]
    %s1200 = scalar_lea.vmem %s610, 674 [#allocation2]
    %v1201 = vld [vmem:[%s1200] ss:$2 sm:$0xff]
    %s1202 = scalar_lea.vmem %s610, 722 [#allocation2]
    %v1203 = vld [vmem:[%s1202] ss:$2 sm:$0xff]
    %s1204 = scalar_lea.vmem %s610, 770 [#allocation2]
    %v1205 = vld [vmem:[%s1204] ss:$2 sm:$0xff]
    %1222 = vrot.lane.b32.xlu0 %v1175, 20
    %v1223 = vpop.permute.xlu0 %1222
    %1224 = vrot.lane.b32.xlu0 %v1177, 20
    %v1225 = vpop.permute.xlu0 %1224
    %1226 = vrot.lane.b32.xlu0 %v1179, 20
    %v1227 = vpop.permute.xlu0 %1226
    %1228 = vrot.lane.b32.xlu0 %v1181, 20
    %v1229 = vpop.permute.xlu0 %1228
    %1230 = vrot.lane.b32.xlu0 %v1183, 20
    %v1231 = vpop.permute.xlu0 %1230
    %1232 = vrot.lane.b32.xlu0 %v1185, 20
    %v1233 = vpop.permute.xlu0 %1232
    %1234 = vrot.lane.b32.xlu0 %v1187, 20
    %v1235 = vpop.permute.xlu0 %1234
    %1236 = vrot.lane.b32.xlu0 %v1189, 20
    %v1237 = vpop.permute.xlu0 %1236
    %1238 = vrot.lane.b32.xlu0 %v1191, 20
    %v1239 = vpop.permute.xlu0 %1238
    %1240 = vrot.lane.b32.xlu0 %v1193, 20
    %v1241 = vpop.permute.xlu0 %1240
    %1242 = vrot.lane.b32.xlu0 %v1195, 20
    %v1243 = vpop.permute.xlu0 %1242
    %1244 = vrot.lane.b32.xlu0 %v1197, 20
    %v1245 = vpop.permute.xlu0 %1244
    %1246 = vrot.lane.b32.xlu0 %v1199, 20
    %v1247 = vpop.permute.xlu0 %1246
    %1248 = vrot.lane.b32.xlu0 %v1201, 20
    %v1249 = vpop.permute.xlu0 %1248
    %1250 = vrot.lane.b32.xlu0 %v1203, 20
    %v1251 = vpop.permute.xlu0 %1250
    %1252 = vrot.lane.b32.xlu0 %v1205, 20
    %v1253 = vpop.permute.xlu0 %1252
    %vm1270 = vcmask 195744
    %1271 = vst.msk [vmem:[#allocation3] sm:$0xff] %vm1270, %v1223
    %1272 = vst.msk [vmem:[#allocation3 + $0x8] sm:$0xff] %vm1270, %v1225
    %1273 = vst.msk [vmem:[#allocation3 + $0x10] sm:$0xff] %vm1270, %v1227
    %1274 = vst.msk [vmem:[#allocation3 + $0x18] sm:$0xff] %vm1270, %v1229
    %1275 = vst.msk [vmem:[#allocation3 + $0x20] sm:$0xff] %vm1270, %v1231
    %1276 = vst.msk [vmem:[#allocation3 + $0x28] sm:$0xff] %vm1270, %v1233
    %1277 = vst.msk [vmem:[#allocation3 + $0x30] sm:$0xff] %vm1270, %v1235
    %1278 = vst.msk [vmem:[#allocation3 + $0x38] sm:$0xff] %vm1270, %v1237
    %1279 = vst.msk [vmem:[#allocation3 + $0x40] sm:$0xff] %vm1270, %v1239
    %1280 = vst.msk [vmem:[#allocation3 + $0x48] sm:$0xff] %vm1270, %v1241
    %1281 = vst.msk [vmem:[#allocation3 + $0x50] sm:$0xff] %vm1270, %v1243
    %1282 = vst.msk [vmem:[#allocation3 + $0x58] sm:$0xff] %vm1270, %v1245
    %1283 = vst.msk [vmem:[#allocation3 + $0x60] sm:$0xff] %vm1270, %v1247
    %1284 = vst.msk [vmem:[#allocation3 + $0x68] sm:$0xff] %vm1270, %v1249
    %1285 = vst.msk [vmem:[#allocation3 + $0x70] sm:$0xff] %vm1270, %v1251
    %1286 = vst.msk [vmem:[#allocation3 + $0x78] sm:$0xff] %vm1270, %v1253
    %s1287 = scalar_lea.vmem [#allocation2], 48
    %v1288 = vld [vmem:[%s1287] ss:$2 sm:$0xff]
    %s1289 = scalar_lea.vmem %s1287, 48 [#allocation2]
    %v1290 = vld [vmem:[%s1289] ss:$2 sm:$0xff]
    %s1291 = scalar_lea.vmem %s1287, 96 [#allocation2]
    %v1292 = vld [vmem:[%s1291] ss:$2 sm:$0xff]
    %s1293 = scalar_lea.vmem %s1287, 144 [#allocation2]
    %v1294 = vld [vmem:[%s1293] ss:$2 sm:$0xff]
    %s1295 = scalar_lea.vmem %s1287, 192 [#allocation2]
    %v1296 = vld [vmem:[%s1295] ss:$2 sm:$0xff]
    %s1297 = scalar_lea.vmem %s1287, 240 [#allocation2]
    %v1298 = vld [vmem:[%s1297] ss:$2 sm:$0xff]
    %s1299 = scalar_lea.vmem %s1287, 288 [#allocation2]
    %v1300 = vld [vmem:[%s1299] ss:$2 sm:$0xff]
    %s1301 = scalar_lea.vmem %s1287, 336 [#allocation2]
    %v1302 = vld [vmem:[%s1301] ss:$2 sm:$0xff]
    %s1303 = scalar_lea.vmem %s1287, 432 [#allocation2]
    %v1304 = vld [vmem:[%s1303] ss:$2 sm:$0xff]
    %s1305 = scalar_lea.vmem %s1287, 480 [#allocation2]
    %v1306 = vld [vmem:[%s1305] ss:$2 sm:$0xff]
    %s1307 = scalar_lea.vmem %s1287, 528 [#allocation2]
    %v1308 = vld [vmem:[%s1307] ss:$2 sm:$0xff]
    %s1309 = scalar_lea.vmem %s1287, 576 [#allocation2]
    %v1310 = vld [vmem:[%s1309] ss:$2 sm:$0xff]
    %s1311 = scalar_lea.vmem %s1287, 624 [#allocation2]
    %v1312 = vld [vmem:[%s1311] ss:$2 sm:$0xff]
    %s1313 = scalar_lea.vmem %s1287, 672 [#allocation2]
    %v1314 = vld [vmem:[%s1313] ss:$2 sm:$0xff]
    %s1315 = scalar_lea.vmem %s1287, 720 [#allocation2]
    %v1316 = vld [vmem:[%s1315] ss:$2 sm:$0xff]
    %s1317 = scalar_lea.vmem %s1287, 768 [#allocation2]
    %v1318 = vld [vmem:[%s1317] ss:$2 sm:$0xff]
    %1335 = vrot.lane.b32.xlu0 %v1288, 24
    %v1336 = vpop.permute.xlu0 %1335
    %1337 = vrot.lane.b32.xlu0 %v1290, 24
    %v1338 = vpop.permute.xlu0 %1337
    %1339 = vrot.lane.b32.xlu0 %v1292, 24
    %v1340 = vpop.permute.xlu0 %1339
    %1341 = vrot.lane.b32.xlu0 %v1294, 24
    %v1342 = vpop.permute.xlu0 %1341
    %1343 = vrot.lane.b32.xlu0 %v1296, 24
    %v1344 = vpop.permute.xlu0 %1343
    %1345 = vrot.lane.b32.xlu0 %v1298, 24
    %v1346 = vpop.permute.xlu0 %1345
    %1347 = vrot.lane.b32.xlu0 %v1300, 24
    %v1348 = vpop.permute.xlu0 %1347
    %1349 = vrot.lane.b32.xlu0 %v1302, 24
    %v1350 = vpop.permute.xlu0 %1349
    %1351 = vrot.lane.b32.xlu0 %v1304, 24
    %v1352 = vpop.permute.xlu0 %1351
    %1353 = vrot.lane.b32.xlu0 %v1306, 24
    %v1354 = vpop.permute.xlu0 %1353
    %1355 = vrot.lane.b32.xlu0 %v1308, 24
    %v1356 = vpop.permute.xlu0 %1355
    %1357 = vrot.lane.b32.xlu0 %v1310, 24
    %v1358 = vpop.permute.xlu0 %1357
    %1359 = vrot.lane.b32.xlu0 %v1312, 24
    %v1360 = vpop.permute.xlu0 %1359
    %1361 = vrot.lane.b32.xlu0 %v1314, 24
    %v1362 = vpop.permute.xlu0 %1361
    %1363 = vrot.lane.b32.xlu0 %v1316, 24
    %v1364 = vpop.permute.xlu0 %1363
    %1365 = vrot.lane.b32.xlu0 %v1318, 24
    %v1366 = vpop.permute.xlu0 %1365
    %vm1383 = vcmask 228544
    %1384 = vst.msk [vmem:[#allocation3] sm:$0xff] %vm1383, %v1336
    %1385 = vst.msk [vmem:[#allocation3 + $0x8] sm:$0xff] %vm1383, %v1338
    %1386 = vst.msk [vmem:[#allocation3 + $0x10] sm:$0xff] %vm1383, %v1340
    %1387 = vst.msk [vmem:[#allocation3 + $0x18] sm:$0xff] %vm1383, %v1342
    %1388 = vst.msk [vmem:[#allocation3 + $0x20] sm:$0xff] %vm1383, %v1344
    %1389 = vst.msk [vmem:[#allocation3 + $0x28] sm:$0xff] %vm1383, %v1346
    %1390 = vst.msk [vmem:[#allocation3 + $0x30] sm:$0xff] %vm1383, %v1348
    %1391 = vst.msk [vmem:[#allocation3 + $0x38] sm:$0xff] %vm1383, %v1350
    %1392 = vst.msk [vmem:[#allocation3 + $0x40] sm:$0xff] %vm1383, %v1352
    %1393 = vst.msk [vmem:[#allocation3 + $0x48] sm:$0xff] %vm1383, %v1354
    %1394 = vst.msk [vmem:[#allocation3 + $0x50] sm:$0xff] %vm1383, %v1356
    %1395 = vst.msk [vmem:[#allocation3 + $0x58] sm:$0xff] %vm1383, %v1358
    %1396 = vst.msk [vmem:[#allocation3 + $0x60] sm:$0xff] %vm1383, %v1360
    %1397 = vst.msk [vmem:[#allocation3 + $0x68] sm:$0xff] %vm1383, %v1362
    %1398 = vst.msk [vmem:[#allocation3 + $0x70] sm:$0xff] %vm1383, %v1364
    %1399 = vst.msk [vmem:[#allocation3 + $0x78] sm:$0xff] %vm1383, %v1366
    %s1400 = scalar_lea.vmem %s1287, 1 [#allocation2]
    %v1401 = vld [vmem:[%s1400] ss:$2 sm:$0xff]
    %s1402 = scalar_lea.vmem %s1287, 49 [#allocation2]
    %v1403 = vld [vmem:[%s1402] ss:$2 sm:$0xff]
    %s1404 = scalar_lea.vmem %s1287, 97 [#allocation2]
    %v1405 = vld [vmem:[%s1404] ss:$2 sm:$0xff]
    %s1406 = scalar_lea.vmem %s1287, 145 [#allocation2]
    %v1407 = vld [vmem:[%s1406] ss:$2 sm:$0xff]
    %s1408 = scalar_lea.vmem %s1287, 193 [#allocation2]
    %v1409 = vld [vmem:[%s1408] ss:$2 sm:$0xff]
    %s1410 = scalar_lea.vmem %s1287, 241 [#allocation2]
    %v1411 = vld [vmem:[%s1410] ss:$2 sm:$0xff]
    %s1412 = scalar_lea.vmem %s1287, 289 [#allocation2]
    %v1413 = vld [vmem:[%s1412] ss:$2 sm:$0xff]
    %s1414 = scalar_lea.vmem %s1287, 337 [#allocation2]
    %v1415 = vld [vmem:[%s1414] ss:$2 sm:$0xff]
    %s1416 = scalar_lea.vmem %s1287, 433 [#allocation2]
    %v1417 = vld [vmem:[%s1416] ss:$2 sm:$0xff]
    %s1418 = scalar_lea.vmem %s1287, 481 [#allocation2]
    %v1419 = vld [vmem:[%s1418] ss:$2 sm:$0xff]
    %s1420 = scalar_lea.vmem %s1287, 529 [#allocation2]
    %v1421 = vld [vmem:[%s1420] ss:$2 sm:$0xff]
    %s1422 = scalar_lea.vmem %s1287, 577 [#allocation2]
    %v1423 = vld [vmem:[%s1422] ss:$2 sm:$0xff]
    %s1424 = scalar_lea.vmem %s1287, 625 [#allocation2]
    %v1425 = vld [vmem:[%s1424] ss:$2 sm:$0xff]
    %s1426 = scalar_lea.vmem %s1287, 673 [#allocation2]
    %v1427 = vld [vmem:[%s1426] ss:$2 sm:$0xff]
    %s1428 = scalar_lea.vmem %s1287, 721 [#allocation2]
    %v1429 = vld [vmem:[%s1428] ss:$2 sm:$0xff]
    %s1430 = scalar_lea.vmem %s1287, 769 [#allocation2]
    %v1431 = vld [vmem:[%s1430] ss:$2 sm:$0xff]
    %1448 = vrot.lane.b32.xlu0 %v1401, 28
    %v1449 = vpop.permute.xlu0 %1448
    %1450 = vrot.lane.b32.xlu0 %v1403, 28
    %v1451 = vpop.permute.xlu0 %1450
    %1452 = vrot.lane.b32.xlu0 %v1405, 28
    %v1453 = vpop.permute.xlu0 %1452
    %1454 = vrot.lane.b32.xlu0 %v1407, 28
    %v1455 = vpop.permute.xlu0 %1454
    %1456 = vrot.lane.b32.xlu0 %v1409, 28
    %v1457 = vpop.permute.xlu0 %1456
    %1458 = vrot.lane.b32.xlu0 %v1411, 28
    %v1459 = vpop.permute.xlu0 %1458
    %1460 = vrot.lane.b32.xlu0 %v1413, 28
    %v1461 = vpop.permute.xlu0 %1460
    %1462 = vrot.lane.b32.xlu0 %v1415, 28
    %v1463 = vpop.permute.xlu0 %1462
    %1464 = vrot.lane.b32.xlu0 %v1417, 28
    %v1465 = vpop.permute.xlu0 %1464
    %1466 = vrot.lane.b32.xlu0 %v1419, 28
    %v1467 = vpop.permute.xlu0 %1466
    %1468 = vrot.lane.b32.xlu0 %v1421, 28
    %v1469 = vpop.permute.xlu0 %1468
    %1470 = vrot.lane.b32.xlu0 %v1423, 28
    %v1471 = vpop.permute.xlu0 %1470
    %1472 = vrot.lane.b32.xlu0 %v1425, 28
    %v1473 = vpop.permute.xlu0 %1472
    %1474 = vrot.lane.b32.xlu0 %v1427, 28
    %v1475 = vpop.permute.xlu0 %1474
    %1476 = vrot.lane.b32.xlu0 %v1429, 28
    %v1477 = vpop.permute.xlu0 %1476
    %1478 = vrot.lane.b32.xlu0 %v1431, 28
    %v1479 = vpop.permute.xlu0 %1478
    %vm1496 = vcmask 261344
    %1497 = vst.msk [vmem:[#allocation3] sm:$0xff] %vm1496, %v1449
    %1498 = vst.msk [vmem:[#allocation3 + $0x8] sm:$0xff] %vm1496, %v1451
    %1499 = vst.msk [vmem:[#allocation3 + $0x10] sm:$0xff] %vm1496, %v1453
    %1500 = vst.msk [vmem:[#allocation3 + $0x18] sm:$0xff] %vm1496, %v1455
    %1501 = vst.msk [vmem:[#allocation3 + $0x20] sm:$0xff] %vm1496, %v1457
    %1502 = vst.msk [vmem:[#allocation3 + $0x28] sm:$0xff] %vm1496, %v1459
    %1503 = vst.msk [vmem:[#allocation3 + $0x30] sm:$0xff] %vm1496, %v1461
    %1504 = vst.msk [vmem:[#allocation3 + $0x38] sm:$0xff] %vm1496, %v1463
    %1505 = vst.msk [vmem:[#allocation3 + $0x40] sm:$0xff] %vm1496, %v1465
    %1506 = vst.msk [vmem:[#allocation3 + $0x48] sm:$0xff] %vm1496, %v1467
    %1507 = vst.msk [vmem:[#allocation3 + $0x50] sm:$0xff] %vm1496, %v1469
    %1508 = vst.msk [vmem:[#allocation3 + $0x58] sm:$0xff] %vm1496, %v1471
    %1509 = vst.msk [vmem:[#allocation3 + $0x60] sm:$0xff] %vm1496, %v1473
    %1510 = vst.msk [vmem:[#allocation3 + $0x68] sm:$0xff] %vm1496, %v1475
    %1511 = vst.msk [vmem:[#allocation3 + $0x70] sm:$0xff] %vm1496, %v1477
    %1512 = vst.msk [vmem:[#allocation3 + $0x78] sm:$0xff] %vm1496, %v1479
    %s1513 = scalar_lea.vmem %s1287, 2 [#allocation2]
    %v1514 = vld [vmem:[%s1513] ss:$2 sm:$0xff]
    %s1515 = scalar_lea.vmem %s1287, 50 [#allocation2]
    %v1516 = vld [vmem:[%s1515] ss:$2 sm:$0xff]
    %s1517 = scalar_lea.vmem %s1287, 98 [#allocation2]
    %v1518 = vld [vmem:[%s1517] ss:$2 sm:$0xff]
    %s1519 = scalar_lea.vmem %s1287, 146 [#allocation2]
    %v1520 = vld [vmem:[%s1519] ss:$2 sm:$0xff]
    %s1521 = scalar_lea.vmem %s1287, 194 [#allocation2]
    %v1522 = vld [vmem:[%s1521] ss:$2 sm:$0xff]
    %s1523 = scalar_lea.vmem %s1287, 242 [#allocation2]
    %v1524 = vld [vmem:[%s1523] ss:$2 sm:$0xff]
    %s1525 = scalar_lea.vmem %s1287, 290 [#allocation2]
    %v1526 = vld [vmem:[%s1525] ss:$2 sm:$0xff]
    %s1527 = scalar_lea.vmem %s1287, 338 [#allocation2]
    %v1528 = vld [vmem:[%s1527] ss:$2 sm:$0xff]
    %s1529 = scalar_lea.vmem %s1287, 434 [#allocation2]
    %v1530 = vld [vmem:[%s1529] ss:$2 sm:$0xff]
    %s1531 = scalar_lea.vmem %s1287, 482 [#allocation2]
    %v1532 = vld [vmem:[%s1531] ss:$2 sm:$0xff]
    %s1533 = scalar_lea.vmem %s1287, 530 [#allocation2]
    %v1534 = vld [vmem:[%s1533] ss:$2 sm:$0xff]
    %s1535 = scalar_lea.vmem %s1287, 578 [#allocation2]
    %v1536 = vld [vmem:[%s1535] ss:$2 sm:$0xff]
    %s1537 = scalar_lea.vmem %s1287, 626 [#allocation2]
    %v1538 = vld [vmem:[%s1537] ss:$2 sm:$0xff]
    %s1539 = scalar_lea.vmem %s1287, 674 [#allocation2]
    %v1540 = vld [vmem:[%s1539] ss:$2 sm:$0xff]
    %s1541 = scalar_lea.vmem %s1287, 722 [#allocation2]
    %v1542 = vld [vmem:[%s1541] ss:$2 sm:$0xff]
    %s1543 = scalar_lea.vmem %s1287, 770 [#allocation2]
    %v1544 = vld [vmem:[%s1543] ss:$2 sm:$0xff]
    %1561 = vrot.lane.b32.xlu0 %v1514, 32
    %v1562 = vpop.permute.xlu0 %1561
    %1563 = vrot.lane.b32.xlu0 %v1516, 32
    %v1564 = vpop.permute.xlu0 %1563
    %1565 = vrot.lane.b32.xlu0 %v1518, 32
    %v1566 = vpop.permute.xlu0 %1565
    %1567 = vrot.lane.b32.xlu0 %v1520, 32
    %v1568 = vpop.permute.xlu0 %1567
    %1569 = vrot.lane.b32.xlu0 %v1522, 32
    %v1570 = vpop.permute.xlu0 %1569
    %1571 = vrot.lane.b32.xlu0 %v1524, 32
    %v1572 = vpop.permute.xlu0 %1571
    %1573 = vrot.lane.b32.xlu0 %v1526, 32
    %v1574 = vpop.permute.xlu0 %1573
    %1575 = vrot.lane.b32.xlu0 %v1528, 32
    %v1576 = vpop.permute.xlu0 %1575
    %1577 = vrot.lane.b32.xlu0 %v1530, 32
    %v1578 = vpop.permute.xlu0 %1577
    %1579 = vrot.lane.b32.xlu0 %v1532, 32
    %v1580 = vpop.permute.xlu0 %1579
    %1581 = vrot.lane.b32.xlu0 %v1534, 32
    %v1582 = vpop.permute.xlu0 %1581
    %1583 = vrot.lane.b32.xlu0 %v1536, 32
    %v1584 = vpop.permute.xlu0 %1583
    %1585 = vrot.lane.b32.xlu0 %v1538, 32
    %v1586 = vpop.permute.xlu0 %1585
    %1587 = vrot.lane.b32.xlu0 %v1540, 32
    %v1588 = vpop.permute.xlu0 %1587
    %1589 = vrot.lane.b32.xlu0 %v1542, 32
    %v1590 = vpop.permute.xlu0 %1589
    %1591 = vrot.lane.b32.xlu0 %v1544, 32
    %v1592 = vpop.permute.xlu0 %1591
    %vm1609 = vcmask 294144
    %1610 = vst.msk [vmem:[#allocation3] sm:$0xff] %vm1609, %v1562
    %1611 = vst.msk [vmem:[#allocation3 + $0x8] sm:$0xff] %vm1609, %v1564
    %1612 = vst.msk [vmem:[#allocation3 + $0x10] sm:$0xff] %vm1609, %v1566
    %1613 = vst.msk [vmem:[#allocation3 + $0x18] sm:$0xff] %vm1609, %v1568
    %1614 = vst.msk [vmem:[#allocation3 + $0x20] sm:$0xff] %vm1609, %v1570
    %1615 = vst.msk [vmem:[#allocation3 + $0x28] sm:$0xff] %vm1609, %v1572
    %1616 = vst.msk [vmem:[#allocation3 + $0x30] sm:$0xff] %vm1609, %v1574
    %1617 = vst.msk [vmem:[#allocation3 + $0x38] sm:$0xff] %vm1609, %v1576
    %1618 = vst.msk [vmem:[#allocation3 + $0x40] sm:$0xff] %vm1609, %v1578
    %1619 = vst.msk [vmem:[#allocation3 + $0x48] sm:$0xff] %vm1609, %v1580
    %1620 = vst.msk [vmem:[#allocation3 + $0x50] sm:$0xff] %vm1609, %v1582
    %1621 = vst.msk [vmem:[#allocation3 + $0x58] sm:$0xff] %vm1609, %v1584
    %1622 = vst.msk [vmem:[#allocation3 + $0x60] sm:$0xff] %vm1609, %v1586
    %1623 = vst.msk [vmem:[#allocation3 + $0x68] sm:$0xff] %vm1609, %v1588
    %1624 = vst.msk [vmem:[#allocation3 + $0x70] sm:$0xff] %vm1609, %v1590
    %1625 = vst.msk [vmem:[#allocation3 + $0x78] sm:$0xff] %vm1609, %v1592
    %v1626 = vld [vmem:[#allocation3] sm:$0xff]
    %v1627 = vld [vmem:[#allocation3 + $0x8] sm:$0xff]
    %v1628 = vld [vmem:[#allocation3 + $0x10] sm:$0xff]
    %v1629 = vld [vmem:[#allocation3 + $0x18] sm:$0xff]
    %v1630 = vld [vmem:[#allocation3 + $0x20] sm:$0xff]
    %v1631 = vld [vmem:[#allocation3 + $0x28] sm:$0xff]
    %v1632 = vld [vmem:[#allocation3 + $0x30] sm:$0xff]
    %v1633 = vld [vmem:[#allocation3 + $0x38] sm:$0xff]
    %v1634 = vld [vmem:[#allocation3 + $0x40] sm:$0xff]
    %v1635 = vld [vmem:[#allocation3 + $0x48] sm:$0xff]
    %v1636 = vld [vmem:[#allocation3 + $0x50] sm:$0xff]
    %v1637 = vld [vmem:[#allocation3 + $0x58] sm:$0xff]
    %v1638 = vld [vmem:[#allocation3 + $0x60] sm:$0xff]
    %v1639 = vld [vmem:[#allocation3 + $0x68] sm:$0xff]
    %v1640 = vld [vmem:[#allocation3 + $0x70] sm:$0xff]
    %v1641 = vld [vmem:[#allocation3 + $0x78] sm:$0xff]
    %v1642 = vpack.c.bf16 %v1627, %v1626
    %v1643 = vpack.c.bf16 %v1629, %v1628
    %v1644 = vpack.c.bf16 %v1631, %v1630
    %v1645 = vpack.c.bf16 %v1633, %v1632
    %v1646 = vpack.c.bf16 %v1635, %v1634
    %v1647 = vpack.c.bf16 %v1637, %v1636
    %v1648 = vpack.c.bf16 %v1639, %v1638
    %v1649 = vpack.c.bf16 %v1641, %v1640
    %v1650 = vld [vmem:[%s1] sm:$0xf]
    %v1651 = vld [vmem:[%s1 + $0x4] sm:$0xf]
    %v1652 = vld [vmem:[%s1 + $0x8] sm:$0xf]
    %v1653 = vld [vmem:[%s1 + $0xc] sm:$0xf]
    %v1654 = vld [vmem:[%s1 + $0x10] sm:$0xf]
    %v1655 = vld [vmem:[%s1 + $0x14] sm:$0xf]
    %v1656 = vld [vmem:[%s1 + $0x18] sm:$0xf]
    %v1657 = vld [vmem:[%s1 + $0x1c] sm:$0xf]
    %v1658 = vld [vmem:[%s1 + $0x20] sm:$0xf]
    %v1659 = vld [vmem:[%s1 + $0x24] sm:$0xf]
    %v1660 = vld [vmem:[%s1 + $0x28] sm:$0xf]
    %v1661 = vld [vmem:[%s1 + $0x2c] sm:$0xf]
    %v1662 = vld [vmem:[%s1 + $0x30] sm:$0xf]
    %v1663 = vld [vmem:[%s1 + $0x34] sm:$0xf]
    %v1664 = vld [vmem:[%s1 + $0x38] sm:$0xf]
    %v1665 = vld [vmem:[%s1 + $0x3c] sm:$0xf]
    %v1682 = vunpack.c.l.b16 %v1650
    %v1683 = vunpack.c.l.b16 %v1651
    %v1684 = vunpack.c.l.b16 %v1652
    %v1685 = vunpack.c.l.b16 %v1653
    %v1686 = vunpack.c.l.b16 %v1654
    %v1687 = vunpack.c.l.b16 %v1655
    %v1688 = vunpack.c.l.b16 %v1656
    %v1689 = vunpack.c.l.b16 %v1657
    %v1690 = vunpack.c.l.b16 %v1658
    %v1691 = vunpack.c.l.b16 %v1659
    %v1692 = vunpack.c.l.b16 %v1660
    %v1693 = vunpack.c.l.b16 %v1661
    %v1694 = vunpack.c.l.b16 %v1662
    %v1695 = vunpack.c.l.b16 %v1663
    %v1696 = vunpack.c.l.b16 %v1664
    %v1697 = vunpack.c.l.b16 %v1665
    %v1698 = vpack.c.b16 %v1683, %v1682
    %v1699 = vpack.c.b16 %v1685, %v1684
    %v1700 = vpack.c.b16 %v1687, %v1686
    %v1701 = vpack.c.b16 %v1689, %v1688
    %v1702 = vpack.c.b16 %v1691, %v1690
    %v1703 = vpack.c.b16 %v1693, %v1692
    %v1704 = vpack.c.b16 %v1695, %v1694
    %v1705 = vpack.c.b16 %v1697, %v1696
    %1714 = vmatpush.bf16.msra.mxu0 %v1705
    %1715 = vmatpush.bf16.msra.mxu0 %v1704
    %1716 = vmatpush.bf16.msra.mxu0 %v1703
    %1717 = vmatpush.bf16.msra.mxu0 %v1702
    %1718 = vmatpush.bf16.msra.mxu0 %v1701
    %1719 = vmatpush.bf16.msra.mxu0 %v1700
    %1720 = vmatpush.bf16.msra.mxu0 %v1699
    %1721 = vmatpush.bf16.msra.mxu0 %v1698
    %1722 = vmatmul.bf16.gmra.mxu0 %v1642
    %v1723 = vpop.f32.mrf.mxu0
    %v1724 = vadd.f32 0.0, %v1723
    %v1725 = vpop.f32.mrf.mxu0
    %v1726 = vadd.f32 0.0, %v1725
    %1727 = vmatmul.bf16.gmra.mxu0 %v1643
    %v1728 = vpop.f32.mrf.mxu0
    %v1729 = vadd.f32 0.0, %v1728
    %v1730 = vpop.f32.mrf.mxu0
    %v1731 = vadd.f32 0.0, %v1730
    %1732 = vmatmul.bf16.gmra.mxu0 %v1644
    %v1733 = vpop.f32.mrf.mxu0
    %v1734 = vadd.f32 0.0, %v1733
    %v1735 = vpop.f32.mrf.mxu0
    %v1736 = vadd.f32 0.0, %v1735
    %1737 = vmatmul.bf16.gmra.mxu0 %v1645
    %v1738 = vpop.f32.mrf.mxu0
    %v1739 = vadd.f32 0.0, %v1738
    %v1740 = vpop.f32.mrf.mxu0
    %v1741 = vadd.f32 0.0, %v1740
    %1742 = vmatmul.bf16.gmra.mxu0 %v1646
    %v1743 = vpop.f32.mrf.mxu0
    %v1744 = vadd.f32 0.0, %v1743
    %v1745 = vpop.f32.mrf.mxu0
    %v1746 = vadd.f32 0.0, %v1745
    %1747 = vmatmul.bf16.gmra.mxu0 %v1647
    %v1748 = vpop.f32.mrf.mxu0
    %v1749 = vadd.f32 0.0, %v1748
    %v1750 = vpop.f32.mrf.mxu0
    %v1751 = vadd.f32 0.0, %v1750
    %1752 = vmatmul.bf16.gmra.mxu0 %v1648
    %v1753 = vpop.f32.mrf.mxu0
    %v1754 = vadd.f32 0.0, %v1753
    %v1755 = vpop.f32.mrf.mxu0
    %v1756 = vadd.f32 0.0, %v1755
    %1757 = vmatmul.bf16.gmra.mxu0 %v1649
    %v1758 = vpop.f32.mrf.mxu0
    %v1759 = vadd.f32 0.0, %v1758
    %v1760 = vpop.f32.mrf.mxu0
    %v1761 = vadd.f32 0.0, %v1760
    %1762 = vdwg.mxu0
    %v1763 = vld [vmem:[%s4] sm:$0x1]
    %v1765 = vperm.slane %v1763, 0
    %v1767 = vmul.f32 %v1724, %v1765
    %v1768 = vmul.f32 %v1726, %v1765
    %v1769 = vmul.f32 %v1729, %v1765
    %v1770 = vmul.f32 %v1731, %v1765
    %v1771 = vmul.f32 %v1734, %v1765
    %v1772 = vmul.f32 %v1736, %v1765
    %v1773 = vmul.f32 %v1739, %v1765
    %v1774 = vmul.f32 %v1741, %v1765
    %v1775 = vmul.f32 %v1744, %v1765
    %v1776 = vmul.f32 %v1746, %v1765
    %v1777 = vmul.f32 %v1749, %v1765
    %v1778 = vmul.f32 %v1751, %v1765
    %v1779 = vmul.f32 %v1754, %v1765
    %v1780 = vmul.f32 %v1756, %v1765
    %v1781 = vmul.f32 %v1759, %v1765
    %v1782 = vmul.f32 %v1761, %v1765
    %v1783 = vld [vmem:[%s5] sm:$0x1]
    %v1785 = vperm.slane %v1783, 0
    %v1787 = vadd.f32 %v1767, %v1785
    %v1788 = vadd.f32 %v1768, %v1785
    %v1789 = vadd.f32 %v1769, %v1785
    %v1790 = vadd.f32 %v1770, %v1785
    %v1791 = vadd.f32 %v1771, %v1785
    %v1792 = vadd.f32 %v1772, %v1785
    %v1793 = vadd.f32 %v1773, %v1785
    %v1794 = vadd.f32 %v1774, %v1785
    %v1795 = vadd.f32 %v1775, %v1785
    %v1796 = vadd.f32 %v1776, %v1785
    %v1797 = vadd.f32 %v1777, %v1785
    %v1798 = vadd.f32 %v1778, %v1785
    %v1799 = vadd.f32 %v1779, %v1785
    %v1800 = vadd.f32 %v1780, %v1785
    %v1801 = vadd.f32 %v1781, %v1785
    %v1802 = vadd.f32 %v1782, %v1785
    %vm1803 = vcmp.gt.f32.partialorder %v1787, 0.0
    %vm1804 = vcmp.gt.f32.partialorder %v1788, 0.0
    %vm1805 = vcmp.gt.f32.partialorder %v1789, 0.0
    %vm1806 = vcmp.gt.f32.partialorder %v1790, 0.0
    %vm1807 = vcmp.gt.f32.partialorder %v1791, 0.0
    %vm1808 = vcmp.gt.f32.partialorder %v1792, 0.0
    %vm1809 = vcmp.gt.f32.partialorder %v1793, 0.0
    %vm1810 = vcmp.gt.f32.partialorder %v1794, 0.0
    %vm1811 = vcmp.gt.f32.partialorder %v1795, 0.0
    %vm1812 = vcmp.gt.f32.partialorder %v1796, 0.0
    %vm1813 = vcmp.gt.f32.partialorder %v1797, 0.0
    %vm1814 = vcmp.gt.f32.partialorder %v1798, 0.0
    %vm1815 = vcmp.gt.f32.partialorder %v1799, 0.0
    %vm1816 = vcmp.gt.f32.partialorder %v1800, 0.0
    %vm1817 = vcmp.gt.f32.partialorder %v1801, 0.0
    %vm1818 = vcmp.gt.f32.partialorder %v1802, 0.0
    %v1819 = vmul.f32 %v1787, 0.1
    %v1820 = vmul.f32 %v1788, 0.1
    %v1821 = vmul.f32 %v1789, 0.1
    %v1822 = vmul.f32 %v1790, 0.1
    %v1823 = vmul.f32 %v1791, 0.1
    %v1824 = vmul.f32 %v1792, 0.1
    %v1825 = vmul.f32 %v1793, 0.1
    %v1826 = vmul.f32 %v1794, 0.1
    %v1827 = vmul.f32 %v1795, 0.1
    %v1828 = vmul.f32 %v1796, 0.1
    %v1829 = vmul.f32 %v1797, 0.1
    %v1830 = vmul.f32 %v1798, 0.1
    %v1831 = vmul.f32 %v1799, 0.1
    %v1832 = vmul.f32 %v1800, 0.1
    %v1833 = vmul.f32 %v1801, 0.1
    %v1834 = vmul.f32 %v1802, 0.1
    %v1835 = vsel %vm1803, %v1787, %v1819
    %v1836 = vsel %vm1804, %v1788, %v1820
    %v1837 = vsel %vm1805, %v1789, %v1821
    %v1838 = vsel %vm1806, %v1790, %v1822
    %v1839 = vsel %vm1807, %v1791, %v1823
    %v1840 = vsel %vm1808, %v1792, %v1824
    %v1841 = vsel %vm1809, %v1793, %v1825
    %v1842 = vsel %vm1810, %v1794, %v1826
    %v1843 = vsel %vm1811, %v1795, %v1827
    %v1844 = vsel %vm1812, %v1796, %v1828
    %v1845 = vsel %vm1813, %v1797, %v1829
    %v1846 = vsel %vm1814, %v1798, %v1830
    %v1847 = vsel %vm1815, %v1799, %v1831
    %v1848 = vsel %vm1816, %v1800, %v1832
    %v1849 = vsel %vm1817, %v1801, %v1833
    %v1850 = vsel %vm1818, %v1802, %v1834
    %s1851 = scalar_lea.vmem [#allocation4], 16
    %vm1852 = vcmask 64512
    %1853 = vst.msk [vmem:[%s1851 + $0x1] sm:$0xff] %vm1852, %v1835
    %1854 = vst.msk [vmem:[%s1851 + $0x11] sm:$0xff] %vm1852, %v1836
    %1855 = vst.msk [vmem:[%s1851 + $0x21] sm:$0xff] %vm1852, %v1837
    %1856 = vst.msk [vmem:[%s1851 + $0x31] sm:$0xff] %vm1852, %v1838
    %1857 = vst.msk [vmem:[%s1851 + $0x41] sm:$0xff] %vm1852, %v1839
    %1858 = vst.msk [vmem:[%s1851 + $0x51] sm:$0xff] %vm1852, %v1840
    %1859 = vst.msk [vmem:[%s1851 + $0x61] sm:$0xff] %vm1852, %v1841
    %1860 = vst.msk [vmem:[%s1851 + $0x71] sm:$0xff] %vm1852, %v1842
    %1861 = vst.msk [vmem:[%s1851 + $0xa1] sm:$0xff] %vm1852, %v1843
    %1862 = vst.msk [vmem:[%s1851 + $0xb1] sm:$0xff] %vm1852, %v1844
    %1863 = vst.msk [vmem:[%s1851 + $0xc1] sm:$0xff] %vm1852, %v1845
    %1864 = vst.msk [vmem:[%s1851 + $0xd1] sm:$0xff] %vm1852, %v1846
    %1865 = vst.msk [vmem:[%s1851 + $0xe1] sm:$0xff] %vm1852, %v1847
    %1866 = vst.msk [vmem:[%s1851 + $0xf1] sm:$0xff] %vm1852, %v1848
    %1867 = vst.msk [vmem:[%s1851 + $0x101] sm:$0xff] %vm1852, %v1849
    %1868 = vst.msk [vmem:[%s1851 + $0x111] sm:$0xff] %vm1852, %v1850
    %v1869 = vld [vmem:[#allocation4] sm:$0xff]
    %v1870 = vld [vmem:[#allocation4 + $0x10] sm:$0xff]
    %v1871 = vld [vmem:[#allocation4 + $0x20] sm:$0xff]
    %v1872 = vld [vmem:[#allocation4 + $0x30] sm:$0xff]
    %v1873 = vld [vmem:[#allocation4 + $0x40] sm:$0xff]
    %v1874 = vld [vmem:[#allocation4 + $0x50] sm:$0xff]
    %v1875 = vld [vmem:[#allocation4 + $0x60] sm:$0xff]
    %v1876 = vld [vmem:[#allocation4 + $0x70] sm:$0xff]
    %v1877 = vld [vmem:[#allocation4 + $0xa0] sm:$0xff]
    %v1878 = vld [vmem:[#allocation4 + $0xb0] sm:$0xff]
    %v1879 = vld [vmem:[#allocation4 + $0xc0] sm:$0xff]
    %v1880 = vld [vmem:[#allocation4 + $0xd0] sm:$0xff]
    %v1881 = vld [vmem:[#allocation4 + $0xe0] sm:$0xff]
    %v1882 = vld [vmem:[#allocation4 + $0xf0] sm:$0xff]
    %v1883 = vld [vmem:[#allocation4 + $0x100] sm:$0xff]
    %v1884 = vld [vmem:[#allocation4 + $0x110] sm:$0xff]
    %1885 = vst.msk [vmem:[#allocation5] sm:$0xff] %vm1852, %v1869
    %1886 = vst.msk [vmem:[#allocation5 + $0x8] sm:$0xff] %vm1852, %v1870
    %1887 = vst.msk [vmem:[#allocation5 + $0x10] sm:$0xff] %vm1852, %v1871
    %1888 = vst.msk [vmem:[#allocation5 + $0x18] sm:$0xff] %vm1852, %v1872
    %1889 = vst.msk [vmem:[#allocation5 + $0x20] sm:$0xff] %vm1852, %v1873
    %1890 = vst.msk [vmem:[#allocation5 + $0x28] sm:$0xff] %vm1852, %v1874
    %1891 = vst.msk [vmem:[#allocation5 + $0x30] sm:$0xff] %vm1852, %v1875
    %1892 = vst.msk [vmem:[#allocation5 + $0x38] sm:$0xff] %vm1852, %v1876
    %1893 = vst.msk [vmem:[#allocation5 + $0x40] sm:$0xff] %vm1852, %v1877
    %1894 = vst.msk [vmem:[#allocation5 + $0x48] sm:$0xff] %vm1852, %v1878
    %1895 = vst.msk [vmem:[#allocation5 + $0x50] sm:$0xff] %vm1852, %v1879
    %1896 = vst.msk [vmem:[#allocation5 + $0x58] sm:$0xff] %vm1852, %v1880
    %1897 = vst.msk [vmem:[#allocation5 + $0x60] sm:$0xff] %vm1852, %v1881
    %1898 = vst.msk [vmem:[#allocation5 + $0x68] sm:$0xff] %vm1852, %v1882
    %1899 = vst.msk [vmem:[#allocation5 + $0x70] sm:$0xff] %vm1852, %v1883
    %1900 = vst.msk [vmem:[#allocation5 + $0x78] sm:$0xff] %vm1852, %v1884
    %v1901 = vld [vmem:[#allocation4 + $0x1] sm:$0xff]
    %v1902 = vld [vmem:[#allocation4 + $0x11] sm:$0xff]
    %v1903 = vld [vmem:[#allocation4 + $0x21] sm:$0xff]
    %v1904 = vld [vmem:[#allocation4 + $0x31] sm:$0xff]
    %v1905 = vld [vmem:[#allocation4 + $0x41] sm:$0xff]
    %v1906 = vld [vmem:[#allocation4 + $0x51] sm:$0xff]
    %v1907 = vld [vmem:[#allocation4 + $0x61] sm:$0xff]
    %v1908 = vld [vmem:[#allocation4 + $0x71] sm:$0xff]
    %v1909 = vld [vmem:[#allocation4 + $0xa1] sm:$0xff]
    %v1910 = vld [vmem:[#allocation4 + $0xb1] sm:$0xff]
    %v1911 = vld [vmem:[#allocation4 + $0xc1] sm:$0xff]
    %v1912 = vld [vmem:[#allocation4 + $0xd1] sm:$0xff]
    %v1913 = vld [vmem:[#allocation4 + $0xe1] sm:$0xff]
    %v1914 = vld [vmem:[#allocation4 + $0xf1] sm:$0xff]
    %v1915 = vld [vmem:[#allocation4 + $0x101] sm:$0xff]
    %v1916 = vld [vmem:[#allocation4 + $0x111] sm:$0xff]
    %1933 = vrot.lane.b32.xlu0 %v1901, 8
    %v1934 = vpop.permute.xlu0 %1933
    %1935 = vrot.lane.b32.xlu0 %v1902, 8
    %v1936 = vpop.permute.xlu0 %1935
    %1937 = vrot.lane.b32.xlu0 %v1903, 8
    %v1938 = vpop.permute.xlu0 %1937
    %1939 = vrot.lane.b32.xlu0 %v1904, 8
    %v1940 = vpop.permute.xlu0 %1939
    %1941 = vrot.lane.b32.xlu0 %v1905, 8
    %v1942 = vpop.permute.xlu0 %1941
    %1943 = vrot.lane.b32.xlu0 %v1906, 8
    %v1944 = vpop.permute.xlu0 %1943
    %1945 = vrot.lane.b32.xlu0 %v1907, 8
    %v1946 = vpop.permute.xlu0 %1945
    %1947 = vrot.lane.b32.xlu0 %v1908, 8
    %v1948 = vpop.permute.xlu0 %1947
    %1949 = vrot.lane.b32.xlu0 %v1909, 8
    %v1950 = vpop.permute.xlu0 %1949
    %1951 = vrot.lane.b32.xlu0 %v1910, 8
    %v1952 = vpop.permute.xlu0 %1951
    %1953 = vrot.lane.b32.xlu0 %v1911, 8
    %v1954 = vpop.permute.xlu0 %1953
    %1955 = vrot.lane.b32.xlu0 %v1912, 8
    %v1956 = vpop.permute.xlu0 %1955
    %1957 = vrot.lane.b32.xlu0 %v1913, 8
    %v1958 = vpop.permute.xlu0 %1957
    %1959 = vrot.lane.b32.xlu0 %v1914, 8
    %v1960 = vpop.permute.xlu0 %1959
    %1961 = vrot.lane.b32.xlu0 %v1915, 8
    %v1962 = vpop.permute.xlu0 %1961
    %1963 = vrot.lane.b32.xlu0 %v1916, 8
    %v1964 = vpop.permute.xlu0 %1963
    %vm1981 = vcmask 130112
    %1982 = vst.msk [vmem:[#allocation5] sm:$0xff] %vm1981, %v1934
    %1983 = vst.msk [vmem:[#allocation5 + $0x8] sm:$0xff] %vm1981, %v1936
    %1984 = vst.msk [vmem:[#allocation5 + $0x10] sm:$0xff] %vm1981, %v1938
    %1985 = vst.msk [vmem:[#allocation5 + $0x18] sm:$0xff] %vm1981, %v1940
    %1986 = vst.msk [vmem:[#allocation5 + $0x20] sm:$0xff] %vm1981, %v1942
    %1987 = vst.msk [vmem:[#allocation5 + $0x28] sm:$0xff] %vm1981, %v1944
    %1988 = vst.msk [vmem:[#allocation5 + $0x30] sm:$0xff] %vm1981, %v1946
    %1989 = vst.msk [vmem:[#allocation5 + $0x38] sm:$0xff] %vm1981, %v1948
    %1990 = vst.msk [vmem:[#allocation5 + $0x40] sm:$0xff] %vm1981, %v1950
    %1991 = vst.msk [vmem:[#allocation5 + $0x48] sm:$0xff] %vm1981, %v1952
    %1992 = vst.msk [vmem:[#allocation5 + $0x50] sm:$0xff] %vm1981, %v1954
    %1993 = vst.msk [vmem:[#allocation5 + $0x58] sm:$0xff] %vm1981, %v1956
    %1994 = vst.msk [vmem:[#allocation5 + $0x60] sm:$0xff] %vm1981, %v1958
    %1995 = vst.msk [vmem:[#allocation5 + $0x68] sm:$0xff] %vm1981, %v1960
    %1996 = vst.msk [vmem:[#allocation5 + $0x70] sm:$0xff] %vm1981, %v1962
    %1997 = vst.msk [vmem:[#allocation5 + $0x78] sm:$0xff] %vm1981, %v1964
    %v1998 = vld [vmem:[#allocation4 + $0x2] sm:$0xff]
    %v1999 = vld [vmem:[#allocation4 + $0x12] sm:$0xff]
    %v2000 = vld [vmem:[#allocation4 + $0x22] sm:$0xff]
    %v2001 = vld [vmem:[#allocation4 + $0x32] sm:$0xff]
    %v2002 = vld [vmem:[#allocation4 + $0x42] sm:$0xff]
    %v2003 = vld [vmem:[#allocation4 + $0x52] sm:$0xff]
    %v2004 = vld [vmem:[#allocation4 + $0x62] sm:$0xff]
    %v2005 = vld [vmem:[#allocation4 + $0x72] sm:$0xff]
    %v2006 = vld [vmem:[#allocation4 + $0xa2] sm:$0xff]
    %v2007 = vld [vmem:[#allocation4 + $0xb2] sm:$0xff]
    %v2008 = vld [vmem:[#allocation4 + $0xc2] sm:$0xff]
    %v2009 = vld [vmem:[#allocation4 + $0xd2] sm:$0xff]
    %v2010 = vld [vmem:[#allocation4 + $0xe2] sm:$0xff]
    %v2011 = vld [vmem:[#allocation4 + $0xf2] sm:$0xff]
    %v2012 = vld [vmem:[#allocation4 + $0x102] sm:$0xff]
    %v2013 = vld [vmem:[#allocation4 + $0x112] sm:$0xff]
    %2030 = vrot.lane.b32.xlu0 %v1998, 16
    %v2031 = vpop.permute.xlu0 %2030
    %2032 = vrot.lane.b32.xlu0 %v1999, 16
    %v2033 = vpop.permute.xlu0 %2032
    %2034 = vrot.lane.b32.xlu0 %v2000, 16
    %v2035 = vpop.permute.xlu0 %2034
    %2036 = vrot.lane.b32.xlu0 %v2001, 16
    %v2037 = vpop.permute.xlu0 %2036
    %2038 = vrot.lane.b32.xlu0 %v2002, 16
    %v2039 = vpop.permute.xlu0 %2038
    %2040 = vrot.lane.b32.xlu0 %v2003, 16
    %v2041 = vpop.permute.xlu0 %2040
    %2042 = vrot.lane.b32.xlu0 %v2004, 16
    %v2043 = vpop.permute.xlu0 %2042
    %2044 = vrot.lane.b32.xlu0 %v2005, 16
    %v2045 = vpop.permute.xlu0 %2044
    %2046 = vrot.lane.b32.xlu0 %v2006, 16
    %v2047 = vpop.permute.xlu0 %2046
    %2048 = vrot.lane.b32.xlu0 %v2007, 16
    %v2049 = vpop.permute.xlu0 %2048
    %2050 = vrot.lane.b32.xlu0 %v2008, 16
    %v2051 = vpop.permute.xlu0 %2050
    %2052 = vrot.lane.b32.xlu0 %v2009, 16
    %v2053 = vpop.permute.xlu0 %2052
    %2054 = vrot.lane.b32.xlu0 %v2010, 16
    %v2055 = vpop.permute.xlu0 %2054
    %2056 = vrot.lane.b32.xlu0 %v2011, 16
    %v2057 = vpop.permute.xlu0 %2056
    %2058 = vrot.lane.b32.xlu0 %v2012, 16
    %v2059 = vpop.permute.xlu0 %2058
    %2060 = vrot.lane.b32.xlu0 %v2013, 16
    %v2061 = vpop.permute.xlu0 %2060
    %vm2078 = vcmask 195712
    %2079 = vst.msk [vmem:[#allocation5] sm:$0xff] %vm2078, %v2031
    %2080 = vst.msk [vmem:[#allocation5 + $0x8] sm:$0xff] %vm2078, %v2033
    %2081 = vst.msk [vmem:[#allocation5 + $0x10] sm:$0xff] %vm2078, %v2035
    %2082 = vst.msk [vmem:[#allocation5 + $0x18] sm:$0xff] %vm2078, %v2037
    %2083 = vst.msk [vmem:[#allocation5 + $0x20] sm:$0xff] %vm2078, %v2039
    %2084 = vst.msk [vmem:[#allocation5 + $0x28] sm:$0xff] %vm2078, %v2041
    %2085 = vst.msk [vmem:[#allocation5 + $0x30] sm:$0xff] %vm2078, %v2043
    %2086 = vst.msk [vmem:[#allocation5 + $0x38] sm:$0xff] %vm2078, %v2045
    %2087 = vst.msk [vmem:[#allocation5 + $0x40] sm:$0xff] %vm2078, %v2047
    %2088 = vst.msk [vmem:[#allocation5 + $0x48] sm:$0xff] %vm2078, %v2049
    %2089 = vst.msk [vmem:[#allocation5 + $0x50] sm:$0xff] %vm2078, %v2051
    %2090 = vst.msk [vmem:[#allocation5 + $0x58] sm:$0xff] %vm2078, %v2053
    %2091 = vst.msk [vmem:[#allocation5 + $0x60] sm:$0xff] %vm2078, %v2055
    %2092 = vst.msk [vmem:[#allocation5 + $0x68] sm:$0xff] %vm2078, %v2057
    %2093 = vst.msk [vmem:[#allocation5 + $0x70] sm:$0xff] %vm2078, %v2059
    %2094 = vst.msk [vmem:[#allocation5 + $0x78] sm:$0xff] %vm2078, %v2061
    %v2095 = vld [vmem:[%s1851] sm:$0xff]
    %v2096 = vld [vmem:[%s1851 + $0x10] sm:$0xff]
    %v2097 = vld [vmem:[%s1851 + $0x20] sm:$0xff]
    %v2098 = vld [vmem:[%s1851 + $0x30] sm:$0xff]
    %v2099 = vld [vmem:[%s1851 + $0x40] sm:$0xff]
    %v2100 = vld [vmem:[%s1851 + $0x50] sm:$0xff]
    %v2101 = vld [vmem:[%s1851 + $0x60] sm:$0xff]
    %v2102 = vld [vmem:[%s1851 + $0x70] sm:$0xff]
    %v2103 = vld [vmem:[%s1851 + $0xa0] sm:$0xff]
    %v2104 = vld [vmem:[%s1851 + $0xb0] sm:$0xff]
    %v2105 = vld [vmem:[%s1851 + $0xc0] sm:$0xff]
    %v2106 = vld [vmem:[%s1851 + $0xd0] sm:$0xff]
    %v2107 = vld [vmem:[%s1851 + $0xe0] sm:$0xff]
    %v2108 = vld [vmem:[%s1851 + $0xf0] sm:$0xff]
    %v2109 = vld [vmem:[%s1851 + $0x100] sm:$0xff]
    %v2110 = vld [vmem:[%s1851 + $0x110] sm:$0xff]
    %2127 = vrot.lane.b32.xlu0 %v2095, 24
    %v2128 = vpop.permute.xlu0 %2127
    %2129 = vrot.lane.b32.xlu0 %v2096, 24
    %v2130 = vpop.permute.xlu0 %2129
    %2131 = vrot.lane.b32.xlu0 %v2097, 24
    %v2132 = vpop.permute.xlu0 %2131
    %2133 = vrot.lane.b32.xlu0 %v2098, 24
    %v2134 = vpop.permute.xlu0 %2133
    %2135 = vrot.lane.b32.xlu0 %v2099, 24
    %v2136 = vpop.permute.xlu0 %2135
    %2137 = vrot.lane.b32.xlu0 %v2100, 24
    %v2138 = vpop.permute.xlu0 %2137
    %2139 = vrot.lane.b32.xlu0 %v2101, 24
    %v2140 = vpop.permute.xlu0 %2139
    %2141 = vrot.lane.b32.xlu0 %v2102, 24
    %v2142 = vpop.permute.xlu0 %2141
    %2143 = vrot.lane.b32.xlu0 %v2103, 24
    %v2144 = vpop.permute.xlu0 %2143
    %2145 = vrot.lane.b32.xlu0 %v2104, 24
    %v2146 = vpop.permute.xlu0 %2145
    %2147 = vrot.lane.b32.xlu0 %v2105, 24
    %v2148 = vpop.permute.xlu0 %2147
    %2149 = vrot.lane.b32.xlu0 %v2106, 24
    %v2150 = vpop.permute.xlu0 %2149
    %2151 = vrot.lane.b32.xlu0 %v2107, 24
    %v2152 = vpop.permute.xlu0 %2151
    %2153 = vrot.lane.b32.xlu0 %v2108, 24
    %v2154 = vpop.permute.xlu0 %2153
    %2155 = vrot.lane.b32.xlu0 %v2109, 24
    %v2156 = vpop.permute.xlu0 %2155
    %2157 = vrot.lane.b32.xlu0 %v2110, 24
    %v2158 = vpop.permute.xlu0 %2157
    %vm2175 = vcmask 261312
    %2176 = vst.msk [vmem:[#allocation5] sm:$0xff] %vm2175, %v2128
    %2177 = vst.msk [vmem:[#allocation5 + $0x8] sm:$0xff] %vm2175, %v2130
    %2178 = vst.msk [vmem:[#allocation5 + $0x10] sm:$0xff] %vm2175, %v2132
    %2179 = vst.msk [vmem:[#allocation5 + $0x18] sm:$0xff] %vm2175, %v2134
    %2180 = vst.msk [vmem:[#allocation5 + $0x20] sm:$0xff] %vm2175, %v2136
    %2181 = vst.msk [vmem:[#allocation5 + $0x28] sm:$0xff] %vm2175, %v2138
    %2182 = vst.msk [vmem:[#allocation5 + $0x30] sm:$0xff] %vm2175, %v2140
    %2183 = vst.msk [vmem:[#allocation5 + $0x38] sm:$0xff] %vm2175, %v2142
    %2184 = vst.msk [vmem:[#allocation5 + $0x40] sm:$0xff] %vm2175, %v2144
    %2185 = vst.msk [vmem:[#allocation5 + $0x48] sm:$0xff] %vm2175, %v2146
    %2186 = vst.msk [vmem:[#allocation5 + $0x50] sm:$0xff] %vm2175, %v2148
    %2187 = vst.msk [vmem:[#allocation5 + $0x58] sm:$0xff] %vm2175, %v2150
    %2188 = vst.msk [vmem:[#allocation5 + $0x60] sm:$0xff] %vm2175, %v2152
    %2189 = vst.msk [vmem:[#allocation5 + $0x68] sm:$0xff] %vm2175, %v2154
    %2190 = vst.msk [vmem:[#allocation5 + $0x70] sm:$0xff] %vm2175, %v2156
    %2191 = vst.msk [vmem:[#allocation5 + $0x78] sm:$0xff] %vm2175, %v2158
    %v2192 = vld [vmem:[%s1851 + $0x1] sm:$0xff]
    %v2193 = vld [vmem:[%s1851 + $0x11] sm:$0xff]
    %v2194 = vld [vmem:[%s1851 + $0x21] sm:$0xff]
    %v2195 = vld [vmem:[%s1851 + $0x31] sm:$0xff]
    %v2196 = vld [vmem:[%s1851 + $0x41] sm:$0xff]
    %v2197 = vld [vmem:[%s1851 + $0x51] sm:$0xff]
    %v2198 = vld [vmem:[%s1851 + $0x61] sm:$0xff]
    %v2199 = vld [vmem:[%s1851 + $0x71] sm:$0xff]
    %v2200 = vld [vmem:[%s1851 + $0xa1] sm:$0xff]
    %v2201 = vld [vmem:[%s1851 + $0xb1] sm:$0xff]
    %v2202 = vld [vmem:[%s1851 + $0xc1] sm:$0xff]
    %v2203 = vld [vmem:[%s1851 + $0xd1] sm:$0xff]
    %v2204 = vld [vmem:[%s1851 + $0xe1] sm:$0xff]
    %v2205 = vld [vmem:[%s1851 + $0xf1] sm:$0xff]
    %v2206 = vld [vmem:[%s1851 + $0x101] sm:$0xff]
    %v2207 = vld [vmem:[%s1851 + $0x111] sm:$0xff]
    %2224 = vrot.lane.b32.xlu0 %v2192, 32
    %v2225 = vpop.permute.xlu0 %2224
    %2226 = vrot.lane.b32.xlu0 %v2193, 32
    %v2227 = vpop.permute.xlu0 %2226
    %2228 = vrot.lane.b32.xlu0 %v2194, 32
    %v2229 = vpop.permute.xlu0 %2228
    %2230 = vrot.lane.b32.xlu0 %v2195, 32
    %v2231 = vpop.permute.xlu0 %2230
    %2232 = vrot.lane.b32.xlu0 %v2196, 32
    %v2233 = vpop.permute.xlu0 %2232
    %2234 = vrot.lane.b32.xlu0 %v2197, 32
    %v2235 = vpop.permute.xlu0 %2234
    %2236 = vrot.lane.b32.xlu0 %v2198, 32
    %v2237 = vpop.permute.xlu0 %2236
    %2238 = vrot.lane.b32.xlu0 %v2199, 32
    %v2239 = vpop.permute.xlu0 %2238
    %2240 = vrot.lane.b32.xlu0 %v2200, 32
    %v2241 = vpop.permute.xlu0 %2240
    %2242 = vrot.lane.b32.xlu0 %v2201, 32
    %v2243 = vpop.permute.xlu0 %2242
    %2244 = vrot.lane.b32.xlu0 %v2202, 32
    %v2245 = vpop.permute.xlu0 %2244
    %2246 = vrot.lane.b32.xlu0 %v2203, 32
    %v2247 = vpop.permute.xlu0 %2246
    %2248 = vrot.lane.b32.xlu0 %v2204, 32
    %v2249 = vpop.permute.xlu0 %2248
    %2250 = vrot.lane.b32.xlu0 %v2205, 32
    %v2251 = vpop.permute.xlu0 %2250
    %2252 = vrot.lane.b32.xlu0 %v2206, 32
    %v2253 = vpop.permute.xlu0 %2252
    %2254 = vrot.lane.b32.xlu0 %v2207, 32
    %v2255 = vpop.permute.xlu0 %2254
    %vm2272 = vcmask 326912
    %2273 = vst.msk [vmem:[#allocation5] sm:$0xff] %vm2272, %v2225
    %2274 = vst.msk [vmem:[#allocation5 + $0x8] sm:$0xff] %vm2272, %v2227
    %2275 = vst.msk [vmem:[#allocation5 + $0x10] sm:$0xff] %vm2272, %v2229
    %2276 = vst.msk [vmem:[#allocation5 + $0x18] sm:$0xff] %vm2272, %v2231
    %2277 = vst.msk [vmem:[#allocation5 + $0x20] sm:$0xff] %vm2272, %v2233
    %2278 = vst.msk [vmem:[#allocation5 + $0x28] sm:$0xff] %vm2272, %v2235
    %2279 = vst.msk [vmem:[#allocation5 + $0x30] sm:$0xff] %vm2272, %v2237
    %2280 = vst.msk [vmem:[#allocation5 + $0x38] sm:$0xff] %vm2272, %v2239
    %2281 = vst.msk [vmem:[#allocation5 + $0x40] sm:$0xff] %vm2272, %v2241
    %2282 = vst.msk [vmem:[#allocation5 + $0x48] sm:$0xff] %vm2272, %v2243
    %2283 = vst.msk [vmem:[#allocation5 + $0x50] sm:$0xff] %vm2272, %v2245
    %2284 = vst.msk [vmem:[#allocation5 + $0x58] sm:$0xff] %vm2272, %v2247
    %2285 = vst.msk [vmem:[#allocation5 + $0x60] sm:$0xff] %vm2272, %v2249
    %2286 = vst.msk [vmem:[#allocation5 + $0x68] sm:$0xff] %vm2272, %v2251
    %2287 = vst.msk [vmem:[#allocation5 + $0x70] sm:$0xff] %vm2272, %v2253
    %2288 = vst.msk [vmem:[#allocation5 + $0x78] sm:$0xff] %vm2272, %v2255
    %v2289 = vld [vmem:[%s1851 + $0x2] sm:$0xff]
    %v2290 = vld [vmem:[%s1851 + $0x12] sm:$0xff]
    %v2291 = vld [vmem:[%s1851 + $0x22] sm:$0xff]
    %v2292 = vld [vmem:[%s1851 + $0x32] sm:$0xff]
    %v2293 = vld [vmem:[%s1851 + $0x42] sm:$0xff]
    %v2294 = vld [vmem:[%s1851 + $0x52] sm:$0xff]
    %v2295 = vld [vmem:[%s1851 + $0x62] sm:$0xff]
    %v2296 = vld [vmem:[%s1851 + $0x72] sm:$0xff]
    %v2297 = vld [vmem:[%s1851 + $0xa2] sm:$0xff]
    %v2298 = vld [vmem:[%s1851 + $0xb2] sm:$0xff]
    %v2299 = vld [vmem:[%s1851 + $0xc2] sm:$0xff]
    %v2300 = vld [vmem:[%s1851 + $0xd2] sm:$0xff]
    %v2301 = vld [vmem:[%s1851 + $0xe2] sm:$0xff]
    %v2302 = vld [vmem:[%s1851 + $0xf2] sm:$0xff]
    %v2303 = vld [vmem:[%s1851 + $0x102] sm:$0xff]
    %v2304 = vld [vmem:[%s1851 + $0x112] sm:$0xff]
    %2321 = vrot.lane.b32.xlu0 %v2289, 40
    %v2322 = vpop.permute.xlu0 %2321
    %2323 = vrot.lane.b32.xlu0 %v2290, 40
    %v2324 = vpop.permute.xlu0 %2323
    %2325 = vrot.lane.b32.xlu0 %v2291, 40
    %v2326 = vpop.permute.xlu0 %2325
    %2327 = vrot.lane.b32.xlu0 %v2292, 40
    %v2328 = vpop.permute.xlu0 %2327
    %2329 = vrot.lane.b32.xlu0 %v2293, 40
    %v2330 = vpop.permute.xlu0 %2329
    %2331 = vrot.lane.b32.xlu0 %v2294, 40
    %v2332 = vpop.permute.xlu0 %2331
    %2333 = vrot.lane.b32.xlu0 %v2295, 40
    %v2334 = vpop.permute.xlu0 %2333
    %2335 = vrot.lane.b32.xlu0 %v2296, 40
    %v2336 = vpop.permute.xlu0 %2335
    %2337 = vrot.lane.b32.xlu0 %v2297, 40
    %v2338 = vpop.permute.xlu0 %2337
    %2339 = vrot.lane.b32.xlu0 %v2298, 40
    %v2340 = vpop.permute.xlu0 %2339
    %2341 = vrot.lane.b32.xlu0 %v2299, 40
    %v2342 = vpop.permute.xlu0 %2341
    %2343 = vrot.lane.b32.xlu0 %v2300, 40
    %v2344 = vpop.permute.xlu0 %2343
    %2345 = vrot.lane.b32.xlu0 %v2301, 40
    %v2346 = vpop.permute.xlu0 %2345
    %2347 = vrot.lane.b32.xlu0 %v2302, 40
    %v2348 = vpop.permute.xlu0 %2347
    %2349 = vrot.lane.b32.xlu0 %v2303, 40
    %v2350 = vpop.permute.xlu0 %2349
    %2351 = vrot.lane.b32.xlu0 %v2304, 40
    %v2352 = vpop.permute.xlu0 %2351
    %vm2369 = vcmask 392512
    %2370 = vst.msk [vmem:[#allocation5] sm:$0xff] %vm2369, %v2322
    %2371 = vst.msk [vmem:[#allocation5 + $0x8] sm:$0xff] %vm2369, %v2324
    %2372 = vst.msk [vmem:[#allocation5 + $0x10] sm:$0xff] %vm2369, %v2326
    %2373 = vst.msk [vmem:[#allocation5 + $0x18] sm:$0xff] %vm2369, %v2328
    %2374 = vst.msk [vmem:[#allocation5 + $0x20] sm:$0xff] %vm2369, %v2330
    %2375 = vst.msk [vmem:[#allocation5 + $0x28] sm:$0xff] %vm2369, %v2332
    %2376 = vst.msk [vmem:[#allocation5 + $0x30] sm:$0xff] %vm2369, %v2334
    %2377 = vst.msk [vmem:[#allocation5 + $0x38] sm:$0xff] %vm2369, %v2336
    %2378 = vst.msk [vmem:[#allocation5 + $0x40] sm:$0xff] %vm2369, %v2338
    %2379 = vst.msk [vmem:[#allocation5 + $0x48] sm:$0xff] %vm2369, %v2340
    %2380 = vst.msk [vmem:[#allocation5 + $0x50] sm:$0xff] %vm2369, %v2342
    %2381 = vst.msk [vmem:[#allocation5 + $0x58] sm:$0xff] %vm2369, %v2344
    %2382 = vst.msk [vmem:[#allocation5 + $0x60] sm:$0xff] %vm2369, %v2346
    %2383 = vst.msk [vmem:[#allocation5 + $0x68] sm:$0xff] %vm2369, %v2348
    %2384 = vst.msk [vmem:[#allocation5 + $0x70] sm:$0xff] %vm2369, %v2350
    %2385 = vst.msk [vmem:[#allocation5 + $0x78] sm:$0xff] %vm2369, %v2352
    %s2386 = scalar_lea.vmem [#allocation4], 32
    %v2387 = vld [vmem:[%s2386] sm:$0xff]
    %v2388 = vld [vmem:[%s2386 + $0x10] sm:$0xff]
    %v2389 = vld [vmem:[%s2386 + $0x20] sm:$0xff]
    %v2390 = vld [vmem:[%s2386 + $0x30] sm:$0xff]
    %v2391 = vld [vmem:[%s2386 + $0x40] sm:$0xff]
    %v2392 = vld [vmem:[%s2386 + $0x50] sm:$0xff]
    %v2393 = vld [vmem:[%s2386 + $0x60] sm:$0xff]
    %v2394 = vld [vmem:[%s2386 + $0x70] sm:$0xff]
    %v2395 = vld [vmem:[%s2386 + $0xa0] sm:$0xff]
    %v2396 = vld [vmem:[%s2386 + $0xb0] sm:$0xff]
    %v2397 = vld [vmem:[%s2386 + $0xc0] sm:$0xff]
    %v2398 = vld [vmem:[%s2386 + $0xd0] sm:$0xff]
    %v2399 = vld [vmem:[%s2386 + $0xe0] sm:$0xff]
    %v2400 = vld [vmem:[%s2386 + $0xf0] sm:$0xff]
    %v2401 = vld [vmem:[%s2386 + $0x100] sm:$0xff]
    %v2402 = vld [vmem:[%s2386 + $0x110] sm:$0xff]
    %2419 = vrot.lane.b32.xlu0 %v2387, 48
    %v2420 = vpop.permute.xlu0 %2419
    %2421 = vrot.lane.b32.xlu0 %v2388, 48
    %v2422 = vpop.permute.xlu0 %2421
    %2423 = vrot.lane.b32.xlu0 %v2389, 48
    %v2424 = vpop.permute.xlu0 %2423
    %2425 = vrot.lane.b32.xlu0 %v2390, 48
    %v2426 = vpop.permute.xlu0 %2425
    %2427 = vrot.lane.b32.xlu0 %v2391, 48
    %v2428 = vpop.permute.xlu0 %2427
    %2429 = vrot.lane.b32.xlu0 %v2392, 48
    %v2430 = vpop.permute.xlu0 %2429
    %2431 = vrot.lane.b32.xlu0 %v2393, 48
    %v2432 = vpop.permute.xlu0 %2431
    %2433 = vrot.lane.b32.xlu0 %v2394, 48
    %v2434 = vpop.permute.xlu0 %2433
    %2435 = vrot.lane.b32.xlu0 %v2395, 48
    %v2436 = vpop.permute.xlu0 %2435
    %2437 = vrot.lane.b32.xlu0 %v2396, 48
    %v2438 = vpop.permute.xlu0 %2437
    %2439 = vrot.lane.b32.xlu0 %v2397, 48
    %v2440 = vpop.permute.xlu0 %2439
    %2441 = vrot.lane.b32.xlu0 %v2398, 48
    %v2442 = vpop.permute.xlu0 %2441
    %2443 = vrot.lane.b32.xlu0 %v2399, 48
    %v2444 = vpop.permute.xlu0 %2443
    %2445 = vrot.lane.b32.xlu0 %v2400, 48
    %v2446 = vpop.permute.xlu0 %2445
    %2447 = vrot.lane.b32.xlu0 %v2401, 48
    %v2448 = vpop.permute.xlu0 %2447
    %2449 = vrot.lane.b32.xlu0 %v2402, 48
    %v2450 = vpop.permute.xlu0 %2449
    %vm2467 = vcmask 458112
    %2468 = vst.msk [vmem:[#allocation5] sm:$0xff] %vm2467, %v2420
    %2469 = vst.msk [vmem:[#allocation5 + $0x8] sm:$0xff] %vm2467, %v2422
    %2470 = vst.msk [vmem:[#allocation5 + $0x10] sm:$0xff] %vm2467, %v2424
    %2471 = vst.msk [vmem:[#allocation5 + $0x18] sm:$0xff] %vm2467, %v2426
    %2472 = vst.msk [vmem:[#allocation5 + $0x20] sm:$0xff] %vm2467, %v2428
    %2473 = vst.msk [vmem:[#allocation5 + $0x28] sm:$0xff] %vm2467, %v2430
    %2474 = vst.msk [vmem:[#allocation5 + $0x30] sm:$0xff] %vm2467, %v2432
    %2475 = vst.msk [vmem:[#allocation5 + $0x38] sm:$0xff] %vm2467, %v2434
    %2476 = vst.msk [vmem:[#allocation5 + $0x40] sm:$0xff] %vm2467, %v2436
    %2477 = vst.msk [vmem:[#allocation5 + $0x48] sm:$0xff] %vm2467, %v2438
    %2478 = vst.msk [vmem:[#allocation5 + $0x50] sm:$0xff] %vm2467, %v2440
    %2479 = vst.msk [vmem:[#allocation5 + $0x58] sm:$0xff] %vm2467, %v2442
    %2480 = vst.msk [vmem:[#allocation5 + $0x60] sm:$0xff] %vm2467, %v2444
    %2481 = vst.msk [vmem:[#allocation5 + $0x68] sm:$0xff] %vm2467, %v2446
    %2482 = vst.msk [vmem:[#allocation5 + $0x70] sm:$0xff] %vm2467, %v2448
    %2483 = vst.msk [vmem:[#allocation5 + $0x78] sm:$0xff] %vm2467, %v2450
    %v2484 = vld [vmem:[%s2386 + $0x1] sm:$0xff]
    %v2485 = vld [vmem:[%s2386 + $0x11] sm:$0xff]
    %v2486 = vld [vmem:[%s2386 + $0x21] sm:$0xff]
    %v2487 = vld [vmem:[%s2386 + $0x31] sm:$0xff]
    %v2488 = vld [vmem:[%s2386 + $0x41] sm:$0xff]
    %v2489 = vld [vmem:[%s2386 + $0x51] sm:$0xff]
    %v2490 = vld [vmem:[%s2386 + $0x61] sm:$0xff]
    %v2491 = vld [vmem:[%s2386 + $0x71] sm:$0xff]
    %v2492 = vld [vmem:[%s2386 + $0xa1] sm:$0xff]
    %v2493 = vld [vmem:[%s2386 + $0xb1] sm:$0xff]
    %v2494 = vld [vmem:[%s2386 + $0xc1] sm:$0xff]
    %v2495 = vld [vmem:[%s2386 + $0xd1] sm:$0xff]
    %v2496 = vld [vmem:[%s2386 + $0xe1] sm:$0xff]
    %v2497 = vld [vmem:[%s2386 + $0xf1] sm:$0xff]
    %v2498 = vld [vmem:[%s2386 + $0x101] sm:$0xff]
    %v2499 = vld [vmem:[%s2386 + $0x111] sm:$0xff]
    %2516 = vrot.lane.b32.xlu0 %v2484, 56
    %v2517 = vpop.permute.xlu0 %2516
    %2518 = vrot.lane.b32.xlu0 %v2485, 56
    %v2519 = vpop.permute.xlu0 %2518
    %2520 = vrot.lane.b32.xlu0 %v2486, 56
    %v2521 = vpop.permute.xlu0 %2520
    %2522 = vrot.lane.b32.xlu0 %v2487, 56
    %v2523 = vpop.permute.xlu0 %2522
    %2524 = vrot.lane.b32.xlu0 %v2488, 56
    %v2525 = vpop.permute.xlu0 %2524
    %2526 = vrot.lane.b32.xlu0 %v2489, 56
    %v2527 = vpop.permute.xlu0 %2526
    %2528 = vrot.lane.b32.xlu0 %v2490, 56
    %v2529 = vpop.permute.xlu0 %2528
    %2530 = vrot.lane.b32.xlu0 %v2491, 56
    %v2531 = vpop.permute.xlu0 %2530
    %2532 = vrot.lane.b32.xlu0 %v2492, 56
    %v2533 = vpop.permute.xlu0 %2532
    %2534 = vrot.lane.b32.xlu0 %v2493, 56
    %v2535 = vpop.permute.xlu0 %2534
    %2536 = vrot.lane.b32.xlu0 %v2494, 56
    %v2537 = vpop.permute.xlu0 %2536
    %2538 = vrot.lane.b32.xlu0 %v2495, 56
    %v2539 = vpop.permute.xlu0 %2538
    %2540 = vrot.lane.b32.xlu0 %v2496, 56
    %v2541 = vpop.permute.xlu0 %2540
    %2542 = vrot.lane.b32.xlu0 %v2497, 56
    %v2543 = vpop.permute.xlu0 %2542
    %2544 = vrot.lane.b32.xlu0 %v2498, 56
    %v2545 = vpop.permute.xlu0 %2544
    %2546 = vrot.lane.b32.xlu0 %v2499, 56
    %v2547 = vpop.permute.xlu0 %2546
    %vm2564 = vcmask 523712
    %2565 = vst.msk [vmem:[#allocation5] sm:$0xff] %vm2564, %v2517
    %2566 = vst.msk [vmem:[#allocation5 + $0x8] sm:$0xff] %vm2564, %v2519
    %2567 = vst.msk [vmem:[#allocation5 + $0x10] sm:$0xff] %vm2564, %v2521
    %2568 = vst.msk [vmem:[#allocation5 + $0x18] sm:$0xff] %vm2564, %v2523
    %2569 = vst.msk [vmem:[#allocation5 + $0x20] sm:$0xff] %vm2564, %v2525
    %2570 = vst.msk [vmem:[#allocation5 + $0x28] sm:$0xff] %vm2564, %v2527
    %2571 = vst.msk [vmem:[#allocation5 + $0x30] sm:$0xff] %vm2564, %v2529
    %2572 = vst.msk [vmem:[#allocation5 + $0x38] sm:$0xff] %vm2564, %v2531
    %2573 = vst.msk [vmem:[#allocation5 + $0x40] sm:$0xff] %vm2564, %v2533
    %2574 = vst.msk [vmem:[#allocation5 + $0x48] sm:$0xff] %vm2564, %v2535
    %2575 = vst.msk [vmem:[#allocation5 + $0x50] sm:$0xff] %vm2564, %v2537
    %2576 = vst.msk [vmem:[#allocation5 + $0x58] sm:$0xff] %vm2564, %v2539
    %2577 = vst.msk [vmem:[#allocation5 + $0x60] sm:$0xff] %vm2564, %v2541
    %2578 = vst.msk [vmem:[#allocation5 + $0x68] sm:$0xff] %vm2564, %v2543
    %2579 = vst.msk [vmem:[#allocation5 + $0x70] sm:$0xff] %vm2564, %v2545
    %2580 = vst.msk [vmem:[#allocation5 + $0x78] sm:$0xff] %vm2564, %v2547
    %v2581 = vld [vmem:[%s2386 + $0x2] sm:$0xff]
    %v2582 = vld [vmem:[%s2386 + $0x12] sm:$0xff]
    %v2583 = vld [vmem:[%s2386 + $0x22] sm:$0xff]
    %v2584 = vld [vmem:[%s2386 + $0x32] sm:$0xff]
    %v2585 = vld [vmem:[%s2386 + $0x42] sm:$0xff]
    %v2586 = vld [vmem:[%s2386 + $0x52] sm:$0xff]
    %v2587 = vld [vmem:[%s2386 + $0x62] sm:$0xff]
    %v2588 = vld [vmem:[%s2386 + $0x72] sm:$0xff]
    %v2589 = vld [vmem:[%s2386 + $0xa2] sm:$0xff]
    %v2590 = vld [vmem:[%s2386 + $0xb2] sm:$0xff]
    %v2591 = vld [vmem:[%s2386 + $0xc2] sm:$0xff]
    %v2592 = vld [vmem:[%s2386 + $0xd2] sm:$0xff]
    %v2593 = vld [vmem:[%s2386 + $0xe2] sm:$0xff]
    %v2594 = vld [vmem:[%s2386 + $0xf2] sm:$0xff]
    %v2595 = vld [vmem:[%s2386 + $0x102] sm:$0xff]
    %v2596 = vld [vmem:[%s2386 + $0x112] sm:$0xff]
    %2613 = vrot.lane.b32.xlu0 %v2581, 64
    %v2614 = vpop.permute.xlu0 %2613
    %2615 = vrot.lane.b32.xlu0 %v2582, 64
    %v2616 = vpop.permute.xlu0 %2615
    %2617 = vrot.lane.b32.xlu0 %v2583, 64
    %v2618 = vpop.permute.xlu0 %2617
    %2619 = vrot.lane.b32.xlu0 %v2584, 64
    %v2620 = vpop.permute.xlu0 %2619
    %2621 = vrot.lane.b32.xlu0 %v2585, 64
    %v2622 = vpop.permute.xlu0 %2621
    %2623 = vrot.lane.b32.xlu0 %v2586, 64
    %v2624 = vpop.permute.xlu0 %2623
    %2625 = vrot.lane.b32.xlu0 %v2587, 64
    %v2626 = vpop.permute.xlu0 %2625
    %2627 = vrot.lane.b32.xlu0 %v2588, 64
    %v2628 = vpop.permute.xlu0 %2627
    %2629 = vrot.lane.b32.xlu0 %v2589, 64
    %v2630 = vpop.permute.xlu0 %2629
    %2631 = vrot.lane.b32.xlu0 %v2590, 64
    %v2632 = vpop.permute.xlu0 %2631
    %2633 = vrot.lane.b32.xlu0 %v2591, 64
    %v2634 = vpop.permute.xlu0 %2633
    %2635 = vrot.lane.b32.xlu0 %v2592, 64
    %v2636 = vpop.permute.xlu0 %2635
    %2637 = vrot.lane.b32.xlu0 %v2593, 64
    %v2638 = vpop.permute.xlu0 %2637
    %2639 = vrot.lane.b32.xlu0 %v2594, 64
    %v2640 = vpop.permute.xlu0 %2639
    %2641 = vrot.lane.b32.xlu0 %v2595, 64
    %v2642 = vpop.permute.xlu0 %2641
    %2643 = vrot.lane.b32.xlu0 %v2596, 64
    %v2644 = vpop.permute.xlu0 %2643
    %vm2661 = vcmask 589312
    %2662 = vst.msk [vmem:[#allocation5] sm:$0xff] %vm2661, %v2614
    %2663 = vst.msk [vmem:[#allocation5 + $0x8] sm:$0xff] %vm2661, %v2616
    %2664 = vst.msk [vmem:[#allocation5 + $0x10] sm:$0xff] %vm2661, %v2618
    %2665 = vst.msk [vmem:[#allocation5 + $0x18] sm:$0xff] %vm2661, %v2620
    %2666 = vst.msk [vmem:[#allocation5 + $0x20] sm:$0xff] %vm2661, %v2622
    %2667 = vst.msk [vmem:[#allocation5 + $0x28] sm:$0xff] %vm2661, %v2624
    %2668 = vst.msk [vmem:[#allocation5 + $0x30] sm:$0xff] %vm2661, %v2626
    %2669 = vst.msk [vmem:[#allocation5 + $0x38] sm:$0xff] %vm2661, %v2628
    %2670 = vst.msk [vmem:[#allocation5 + $0x40] sm:$0xff] %vm2661, %v2630
    %2671 = vst.msk [vmem:[#allocation5 + $0x48] sm:$0xff] %vm2661, %v2632
    %2672 = vst.msk [vmem:[#allocation5 + $0x50] sm:$0xff] %vm2661, %v2634
    %2673 = vst.msk [vmem:[#allocation5 + $0x58] sm:$0xff] %vm2661, %v2636
    %2674 = vst.msk [vmem:[#allocation5 + $0x60] sm:$0xff] %vm2661, %v2638
    %2675 = vst.msk [vmem:[#allocation5 + $0x68] sm:$0xff] %vm2661, %v2640
    %2676 = vst.msk [vmem:[#allocation5 + $0x70] sm:$0xff] %vm2661, %v2642
    %2677 = vst.msk [vmem:[#allocation5 + $0x78] sm:$0xff] %vm2661, %v2644
    %v2678 = vld [vmem:[#allocation5] sm:$0xff]
    %v2679 = vld [vmem:[#allocation5 + $0x8] sm:$0xff]
    %v2680 = vld [vmem:[#allocation5 + $0x10] sm:$0xff]
    %v2681 = vld [vmem:[#allocation5 + $0x18] sm:$0xff]
    %v2682 = vld [vmem:[#allocation5 + $0x20] sm:$0xff]
    %v2683 = vld [vmem:[#allocation5 + $0x28] sm:$0xff]
    %v2684 = vld [vmem:[#allocation5 + $0x30] sm:$0xff]
    %v2685 = vld [vmem:[#allocation5 + $0x38] sm:$0xff]
    %v2686 = vld [vmem:[#allocation5 + $0x40] sm:$0xff]
    %v2687 = vld [vmem:[#allocation5 + $0x48] sm:$0xff]
    %v2688 = vld [vmem:[#allocation5 + $0x50] sm:$0xff]
    %v2689 = vld [vmem:[#allocation5 + $0x58] sm:$0xff]
    %v2690 = vld [vmem:[#allocation5 + $0x60] sm:$0xff]
    %v2691 = vld [vmem:[#allocation5 + $0x68] sm:$0xff]
    %v2692 = vld [vmem:[#allocation5 + $0x70] sm:$0xff]
    %v2693 = vld [vmem:[#allocation5 + $0x78] sm:$0xff]
    %v2694 = vpack.c.bf16 %v2679, %v2678
    %v2695 = vpack.c.bf16 %v2681, %v2680
    %v2696 = vpack.c.bf16 %v2683, %v2682
    %v2697 = vpack.c.bf16 %v2685, %v2684
    %v2698 = vpack.c.bf16 %v2687, %v2686
    %v2699 = vpack.c.bf16 %v2689, %v2688
    %v2700 = vpack.c.bf16 %v2691, %v2690
    %v2701 = vpack.c.bf16 %v2693, %v2692
    %v2702 = vld [vmem:[%s6] sm:$0xf]
    %v2703 = vld [vmem:[%s6 + $0x4] sm:$0xf]
    %v2704 = vld [vmem:[%s6 + $0x8] sm:$0xf]
    %v2705 = vld [vmem:[%s6 + $0xc] sm:$0xf]
    %v2706 = vld [vmem:[%s6 + $0x10] sm:$0xf]
    %v2707 = vld [vmem:[%s6 + $0x14] sm:$0xf]
    %v2708 = vld [vmem:[%s6 + $0x18] sm:$0xf]
    %v2709 = vld [vmem:[%s6 + $0x1c] sm:$0xf]
    %v2710 = vld [vmem:[%s6 + $0x20] sm:$0xf]
    %v2711 = vld [vmem:[%s6 + $0x24] sm:$0xf]
    %v2712 = vld [vmem:[%s6 + $0x28] sm:$0xf]
    %v2713 = vld [vmem:[%s6 + $0x2c] sm:$0xf]
    %v2714 = vld [vmem:[%s6 + $0x30] sm:$0xf]
    %v2715 = vld [vmem:[%s6 + $0x34] sm:$0xf]
    %v2716 = vld [vmem:[%s6 + $0x38] sm:$0xf]
    %v2717 = vld [vmem:[%s6 + $0x3c] sm:$0xf]
    %v2718 = vld [vmem:[#allocation3] sm:$0xff]
    %v2719 = vld [vmem:[#allocation3 + $0x8] sm:$0xff]
    %v2720 = vld [vmem:[#allocation3 + $0x10] sm:$0xff]
    %v2721 = vld [vmem:[#allocation3 + $0x18] sm:$0xff]
    %v2722 = vld [vmem:[#allocation3 + $0x20] sm:$0xff]
    %v2723 = vld [vmem:[#allocation3 + $0x28] sm:$0xff]
    %v2724 = vld [vmem:[#allocation3 + $0x30] sm:$0xff]
    %v2725 = vld [vmem:[#allocation3 + $0x38] sm:$0xff]
    %v2726 = vld [vmem:[#allocation3 + $0x40] sm:$0xff]
    %v2727 = vld [vmem:[#allocation3 + $0x48] sm:$0xff]
    %v2728 = vld [vmem:[#allocation3 + $0x50] sm:$0xff]
    %v2729 = vld [vmem:[#allocation3 + $0x58] sm:$0xff]
    %v2730 = vld [vmem:[#allocation3 + $0x60] sm:$0xff]
    %v2731 = vld [vmem:[#allocation3 + $0x68] sm:$0xff]
    %v2732 = vld [vmem:[#allocation3 + $0x70] sm:$0xff]
    %v2733 = vld [vmem:[#allocation3 + $0x78] sm:$0xff]
    %v2734 = vpack.c.bf16 %v2719, %v2718
    %v2735 = vpack.c.bf16 %v2721, %v2720
    %v2736 = vpack.c.bf16 %v2723, %v2722
    %v2737 = vpack.c.bf16 %v2725, %v2724
    %v2738 = vpack.c.bf16 %v2727, %v2726
    %v2739 = vpack.c.bf16 %v2729, %v2728
    %v2740 = vpack.c.bf16 %v2731, %v2730
    %v2741 = vpack.c.bf16 %v2733, %v2732
    %v2742 = vld [vmem:[%s7] sm:$0xf]
    %v2743 = vld [vmem:[%s7 + $0x4] sm:$0xf]
    %v2744 = vld [vmem:[%s7 + $0x8] sm:$0xf]
    %v2745 = vld [vmem:[%s7 + $0xc] sm:$0xf]
    %v2746 = vld [vmem:[%s7 + $0x10] sm:$0xf]
    %v2747 = vld [vmem:[%s7 + $0x14] sm:$0xf]
    %v2748 = vld [vmem:[%s7 + $0x18] sm:$0xf]
    %v2749 = vld [vmem:[%s7 + $0x1c] sm:$0xf]
    %v2750 = vld [vmem:[%s7 + $0x20] sm:$0xf]
    %v2751 = vld [vmem:[%s7 + $0x24] sm:$0xf]
    %v2752 = vld [vmem:[%s7 + $0x28] sm:$0xf]
    %v2753 = vld [vmem:[%s7 + $0x2c] sm:$0xf]
    %v2754 = vld [vmem:[%s7 + $0x30] sm:$0xf]
    %v2755 = vld [vmem:[%s7 + $0x34] sm:$0xf]
    %v2756 = vld [vmem:[%s7 + $0x38] sm:$0xf]
    %v2757 = vld [vmem:[%s7 + $0x3c] sm:$0xf]
    %v2774 = vunpack.c.l.b16 %v2742
    %v2775 = vunpack.c.l.b16 %v2743
    %v2776 = vunpack.c.l.b16 %v2744
    %v2777 = vunpack.c.l.b16 %v2745
    %v2778 = vunpack.c.l.b16 %v2746
    %v2779 = vunpack.c.l.b16 %v2747
    %v2780 = vunpack.c.l.b16 %v2748
    %v2781 = vunpack.c.l.b16 %v2749
    %v2782 = vunpack.c.l.b16 %v2750
    %v2783 = vunpack.c.l.b16 %v2751
    %v2784 = vunpack.c.l.b16 %v2752
    %v2785 = vunpack.c.l.b16 %v2753
    %v2786 = vunpack.c.l.b16 %v2754
    %v2787 = vunpack.c.l.b16 %v2755
    %v2788 = vunpack.c.l.b16 %v2756
    %v2789 = vunpack.c.l.b16 %v2757
    %v2790 = vpack.c.b16 %v2775, %v2774
    %v2791 = vpack.c.b16 %v2777, %v2776
    %v2792 = vpack.c.b16 %v2779, %v2778
    %v2793 = vpack.c.b16 %v2781, %v2780
    %v2794 = vpack.c.b16 %v2783, %v2782
    %v2795 = vpack.c.b16 %v2785, %v2784
    %v2796 = vpack.c.b16 %v2787, %v2786
    %v2797 = vpack.c.b16 %v2789, %v2788
    %2806 = vmatpush.bf16.msra.mxu0 %v2797
    %2807 = vmatpush.bf16.msra.mxu0 %v2796
    %2808 = vmatpush.bf16.msra.mxu0 %v2795
    %2809 = vmatpush.bf16.msra.mxu0 %v2794
    %2810 = vmatpush.bf16.msra.mxu0 %v2793
    %2811 = vmatpush.bf16.msra.mxu0 %v2792
    %2812 = vmatpush.bf16.msra.mxu0 %v2791
    %2813 = vmatpush.bf16.msra.mxu0 %v2790
    %2814 = vmatmul.bf16.gmra.mxu0 %v2734
    %v2815 = vpop.f32.mrf.mxu0
    %v2816 = vadd.f32 0.0, %v2815
    %v2817 = vpop.f32.mrf.mxu0
    %v2818 = vadd.f32 0.0, %v2817
    %2819 = vmatmul.bf16.gmra.mxu0 %v2735
    %v2820 = vpop.f32.mrf.mxu0
    %v2821 = vadd.f32 0.0, %v2820
    %v2822 = vpop.f32.mrf.mxu0
    %v2823 = vadd.f32 0.0, %v2822
    %2824 = vmatmul.bf16.gmra.mxu0 %v2736
    %v2825 = vpop.f32.mrf.mxu0
    %v2826 = vadd.f32 0.0, %v2825
    %v2827 = vpop.f32.mrf.mxu0
    %v2828 = vadd.f32 0.0, %v2827
    %2829 = vmatmul.bf16.gmra.mxu0 %v2737
    %v2830 = vpop.f32.mrf.mxu0
    %v2831 = vadd.f32 0.0, %v2830
    %v2832 = vpop.f32.mrf.mxu0
    %v2833 = vadd.f32 0.0, %v2832
    %2834 = vmatmul.bf16.gmra.mxu0 %v2738
    %v2835 = vpop.f32.mrf.mxu0
    %v2836 = vadd.f32 0.0, %v2835
    %v2837 = vpop.f32.mrf.mxu0
    %v2838 = vadd.f32 0.0, %v2837
    %2839 = vmatmul.bf16.gmra.mxu0 %v2739
    %v2840 = vpop.f32.mrf.mxu0
    %v2841 = vadd.f32 0.0, %v2840
    %v2842 = vpop.f32.mrf.mxu0
    %v2843 = vadd.f32 0.0, %v2842
    %2844 = vmatmul.bf16.gmra.mxu0 %v2740
    %v2845 = vpop.f32.mrf.mxu0
    %v2846 = vadd.f32 0.0, %v2845
    %v2847 = vpop.f32.mrf.mxu0
    %v2848 = vadd.f32 0.0, %v2847
    %2849 = vmatmul.bf16.gmra.mxu0 %v2741
    %v2850 = vpop.f32.mrf.mxu0
    %v2851 = vadd.f32 0.0, %v2850
    %v2852 = vpop.f32.mrf.mxu0
    %v2853 = vadd.f32 0.0, %v2852
    %2854 = vdwg.mxu0
    %v2871 = vunpack.c.l.b16 %v2702
    %v2872 = vunpack.c.l.b16 %v2703
    %v2873 = vunpack.c.l.b16 %v2704
    %v2874 = vunpack.c.l.b16 %v2705
    %v2875 = vunpack.c.l.b16 %v2706
    %v2876 = vunpack.c.l.b16 %v2707
    %v2877 = vunpack.c.l.b16 %v2708
    %v2878 = vunpack.c.l.b16 %v2709
    %v2879 = vunpack.c.l.b16 %v2710
    %v2880 = vunpack.c.l.b16 %v2711
    %v2881 = vunpack.c.l.b16 %v2712
    %v2882 = vunpack.c.l.b16 %v2713
    %v2883 = vunpack.c.l.b16 %v2714
    %v2884 = vunpack.c.l.b16 %v2715
    %v2885 = vunpack.c.l.b16 %v2716
    %v2886 = vunpack.c.l.b16 %v2717
    %v2887 = vpack.c.b16 %v2872, %v2871
    %v2888 = vpack.c.b16 %v2874, %v2873
    %v2889 = vpack.c.b16 %v2876, %v2875
    %v2890 = vpack.c.b16 %v2878, %v2877
    %v2891 = vpack.c.b16 %v2880, %v2879
    %v2892 = vpack.c.b16 %v2882, %v2881
    %v2893 = vpack.c.b16 %v2884, %v2883
    %v2894 = vpack.c.b16 %v2886, %v2885
    %2903 = vmatpush.bf16.msra.mxu0 %v2894
    %2904 = vmatpush.bf16.msra.mxu0 %v2893
    %2905 = vmatpush.bf16.msra.mxu0 %v2892
    %2906 = vmatpush.bf16.msra.mxu0 %v2891
    %2907 = vmatpush.bf16.msra.mxu0 %v2890
    %2908 = vmatpush.bf16.msra.mxu0 %v2889
    %2909 = vmatpush.bf16.msra.mxu0 %v2888
    %2910 = vmatpush.bf16.msra.mxu0 %v2887
    %2911 = vmatmul.bf16.gmra.mxu0 %v2694
    %v2912 = vpop.f32.mrf.mxu0
    %v2913 = vadd.f32 %v2816, %v2912
    %v2914 = vpop.f32.mrf.mxu0
    %v2915 = vadd.f32 %v2818, %v2914
    %2916 = vmatmul.bf16.gmra.mxu0 %v2695
    %v2917 = vpop.f32.mrf.mxu0
    %v2918 = vadd.f32 %v2821, %v2917
    %v2919 = vpop.f32.mrf.mxu0
    %v2920 = vadd.f32 %v2823, %v2919
    %2921 = vmatmul.bf16.gmra.mxu0 %v2696
    %v2922 = vpop.f32.mrf.mxu0
    %v2923 = vadd.f32 %v2826, %v2922
    %v2924 = vpop.f32.mrf.mxu0
    %v2925 = vadd.f32 %v2828, %v2924
    %2926 = vmatmul.bf16.gmra.mxu0 %v2697
    %v2927 = vpop.f32.mrf.mxu0
    %v2928 = vadd.f32 %v2831, %v2927
    %v2929 = vpop.f32.mrf.mxu0
    %v2930 = vadd.f32 %v2833, %v2929
    %2931 = vmatmul.bf16.gmra.mxu0 %v2698
    %v2932 = vpop.f32.mrf.mxu0
    %v2933 = vadd.f32 %v2836, %v2932
    %v2934 = vpop.f32.mrf.mxu0
    %v2935 = vadd.f32 %v2838, %v2934
    %2936 = vmatmul.bf16.gmra.mxu0 %v2699
    %v2937 = vpop.f32.mrf.mxu0
    %v2938 = vadd.f32 %v2841, %v2937
    %v2939 = vpop.f32.mrf.mxu0
    %v2940 = vadd.f32 %v2843, %v2939
    %2941 = vmatmul.bf16.gmra.mxu0 %v2700
    %v2942 = vpop.f32.mrf.mxu0
    %v2943 = vadd.f32 %v2846, %v2942
    %v2944 = vpop.f32.mrf.mxu0
    %v2945 = vadd.f32 %v2848, %v2944
    %2946 = vmatmul.bf16.gmra.mxu0 %v2701
    %v2947 = vpop.f32.mrf.mxu0
    %v2948 = vadd.f32 %v2851, %v2947
    %v2949 = vpop.f32.mrf.mxu0
    %v2950 = vadd.f32 %v2853, %v2949
    %2951 = vdwg.mxu0
    %2952 = vst [vmem:[#allocation6] sm:$0xff] %v2913
    %2953 = vst [vmem:[#allocation6 + $0x8] sm:$0xff] %v2915
    %2954 = vst [vmem:[#allocation6 + $0x10] sm:$0xff] %v2918
    %2955 = vst [vmem:[#allocation6 + $0x18] sm:$0xff] %v2920
    %2956 = vst [vmem:[#allocation6 + $0x20] sm:$0xff] %v2923
    %2957 = vst [vmem:[#allocation6 + $0x28] sm:$0xff] %v2925
    %2958 = vst [vmem:[#allocation6 + $0x30] sm:$0xff] %v2928
    %2959 = vst [vmem:[#allocation6 + $0x38] sm:$0xff] %v2930
    %2960 = vst [vmem:[#allocation6 + $0x40] sm:$0xff] %v2933
    %2961 = vst [vmem:[#allocation6 + $0x48] sm:$0xff] %v2935
    %2962 = vst [vmem:[#allocation6 + $0x50] sm:$0xff] %v2938
    %2963 = vst [vmem:[#allocation6 + $0x58] sm:$0xff] %v2940
    %2964 = vst [vmem:[#allocation6 + $0x60] sm:$0xff] %v2943
    %2965 = vst [vmem:[#allocation6 + $0x68] sm:$0xff] %v2945
    %2966 = vst [vmem:[#allocation6 + $0x70] sm:$0xff] %v2948
    %2967 = vst [vmem:[#allocation6 + $0x78] sm:$0xff] %v2950
    // Predicated region
    $region38: #{tpu_custom_call.1} parent=1 // pred_check
      _
    $region39: #{tpu_custom_call.1} parent=1 // pred_check_branch
      %2969 = sbr.rel (0) target = $region41
    $region40: #{tpu_custom_call.1} parent=1 // pred_region
      %2971 = vsyncadd [#allocation7], 0
      %s2972 = sshll.u32 [#allocation6], 4
      %s2973 = int_to_ptr.vmem [resolvable:$true] %s2972
      %s2974 = sshll.u32 %s8, 4
      %s2975 = int_to_ptr.hbm [resolvable:$true] %s2974
      %2980 = dma.vmem_to_hbm [thread:$0]  %s2973, 2048, %s2975, [#allocation7], 128, 128, 8
    $region41: #{tpu_custom_call.1} parent=1 // pred_fallthru
      _
    // Predicated region
    $region42: #{tpu_custom_call.1} parent=1 // pred_check
      _
    $region43: #{tpu_custom_call.1} parent=1 // pred_check_branch
      %2982 = sbr.rel (0) target = $region45
    $region44: #{tpu_custom_call.1} parent=1 // pred_region
      %2984 = dma.done [#allocation7], 2048
    $region45: #{tpu_custom_call.1} parent=1 // pred_fallthru
      _
    %2985 = vsyncpa [#allocation7], 1

</llo_original>
